<compile_context>
chip_gen: v6e
topology: v6e:2x2x1
jax: 0.10.0
libtpu: 0.0.40
codegen_flags: <defaults>
</compile_context>

<pallas_src>
import functools

import jax
import jax.numpy as jnp
from jax.experimental import pallas as pl
from jax.experimental.pallas import tpu as pltpu

# ---- static configuration (small, but lane/MXU aligned) ---------------------
DEPTH = 3
IN_FEATURES = 16           # raw node-feature width (kept unpadded; full-dim block)
HIDDEN = 128               # module default hidden_features -> already lane-dense
OUT_FEATURES = 1           # raw head width
OUT_PAD = 128              # lane-dense kernel output; sliced back to 1 outside

NODES_PER_GRAPH = 8
NUM_GRAPHS = 32
N_NODES = NUM_GRAPHS * NODES_PER_GRAPH       # 256


def dgl_rep_kernel(h_ref, a_ref,
                   w_in_ref, b_in_ref,
                   wg_ref, bg_ref,
                   w_out_ref, b_out_ref,
                   w_ff_ref, b_ff_ref,
                   o_ref,
                   *, graphs_per_block, nodes_per_graph):
    """One node tile of whole graphs per grid point (bf16 MXU, f32 acc/agg)."""
    f32, bf16 = jnp.float32, jnp.bfloat16

    def silu(x):
        # x * sigmoid(x); exp and approx-reciprocal both use the EUP slot,
        # keeping the VALU free of divide Newton iterations.
        return x * pl.reciprocal(1.0 + jnp.exp(-x), approx=True)

    a = a_ref[...]                                   # (T, T) diagonal block of A_norm, f32

    # embedding_in: Linear + SiLU (bf16 MXU operands, f32 accumulation)
    x = jnp.dot(h_ref[...].astype(bf16), w_in_ref[...],
                preferred_element_type=f32) + b_in_ref[...]
    h = silu(x)                                      # f32 activations

    # depth x (GraphConv norm='both' + SiLU): aggregate (f32) then project (bf16 MXU)
    for d in range(DEPTH):                           # unrolled; wg_ref is (DEPTH,H,H)
        agg = jnp.dot(a, h, preferred_element_type=f32)          # f32 aggregation path
        x = jnp.dot(agg.astype(bf16), wg_ref[d],
                    preferred_element_type=f32) + bg_ref[d]
        h = silu(x)

    # embedding_out (no activation), f32 result
    h = jnp.dot(h.astype(bf16), w_out_ref[...],
                preferred_element_type=f32) + b_out_ref[...]

    # sum_nodes: equal-sized contiguous graphs -> reshape + sum (no pool matrix)
    # TODO(synk): ragged / unequal-sized batched graphs would need a segment-sum
    #             driven by scalar-prefetched per-graph offsets.
    pooled = h.reshape(graphs_per_block, nodes_per_graph, HIDDEN).sum(axis=1)

    # ff head -> lane-dense (graphs_per_block, OUT_PAD) store
    o_ref[...] = (jnp.dot(pooled.astype(bf16), w_ff_ref[...],
                          preferred_element_type=f32) + b_ff_ref[...])


def _pad2d(x, rows=None, cols=None):
    r = x.shape[0] if rows is None else rows
    c = x.shape[1] if cols is None else cols
    return jnp.zeros((r, c), x.dtype).at[:x.shape[0], :x.shape[1]].set(x)


def prepare_params(params):
    """One-time pad/cast of the static parameters (hoisted out of forward)."""
    (w_in, b_in, wgs, bgs, w_out, b_out, w_ff, b_ff) = params
    f32, bf16 = jnp.float32, jnp.bfloat16
    wg = jnp.stack([w.astype(bf16) for w in wgs])            # (DEPTH, H, H) bf16
    bg = jnp.stack([b.astype(f32) for b in bgs])             # (DEPTH, 1, H) f32
    return (
        w_in.astype(bf16),                                   # (16, H)
        b_in.astype(f32),                                    # (1, H)
        wg, bg,
        w_out.astype(bf16),                                  # (H, H)
        b_out.astype(f32),                                   # (1, H)
        _pad2d(w_ff, cols=OUT_PAD).astype(bf16),             # (H, OUT_PAD)
        _pad2d(b_ff, cols=OUT_PAD).astype(f32),              # (1, OUT_PAD)
    )


def _num_node_blocks():
    """v7x (2 TensorCores/chip): keep 2 parallel 128-node tiles.
    v5e/v6e (1 TC): a single 256-node tile (better MXU fill, no extra grid step)."""
    try:
        kind = jax.devices()[0].device_kind.lower()
    except Exception:
        kind = ""
    return 2 if "v7" in kind else 1
    # TODO(synk): on v7x, verify in a profile that both TCs run a block; if not,
    # switch the node axis to pltpu.CORE_PARALLEL / pl.core_map.


def dgl_representation_forward(h, a_norm, prepared, *, num_blocks):
    """Launch the tiled kernel. `prepared` must come from prepare_params()."""
    assert h.shape == (N_NODES, IN_FEATURES)
    assert a_norm.shape == (N_NODES, N_NODES)
    assert N_NODES % num_blocks == 0 and NUM_GRAPHS % num_blocks == 0
    T = N_NODES // num_blocks                     # nodes per tile
    GPB = NUM_GRAPHS // num_blocks                # graphs per tile
    # Diagonal-only A tiles + reshape-sum pooling require contiguous graphs that
    # never straddle a node-tile boundary.
    assert T == GPB * NODES_PER_GRAPH

    (w_in, b_in, wg, bg, w_out, b_out, w_ff, b_ff) = prepared

    const2 = lambda i: (0, 0)
    const3 = lambda i: (0, 0, 0)
    in_specs = [
        pl.BlockSpec((T, IN_FEATURES), lambda i: (i, 0)),     # node-feature tile (f32, 16 lanes)
        pl.BlockSpec((T, T), lambda i: (i, i)),               # diagonal A_norm tile (f32)
        pl.BlockSpec((IN_FEATURES, HIDDEN), const2),          # embedding_in
        pl.BlockSpec((1, HIDDEN), const2),
        pl.BlockSpec((DEPTH, HIDDEN, HIDDEN), const3),        # stacked GraphConv weights
        pl.BlockSpec((DEPTH, 1, HIDDEN), const3),             # stacked GraphConv biases
        pl.BlockSpec((HIDDEN, HIDDEN), const2),               # embedding_out
        pl.BlockSpec((1, HIDDEN), const2),
        pl.BlockSpec((HIDDEN, OUT_PAD), const2),              # ff
        pl.BlockSpec((1, OUT_PAD), const2),
    ]
    out_spec = pl.BlockSpec((GPB, OUT_PAD), lambda i: (i, 0))

    # Advisory cost estimate so XLA schedules surrounding ops around the call.
    flops = (2 * N_NODES * IN_FEATURES * HIDDEN
             + DEPTH * (2 * N_NODES * T * HIDDEN + 2 * N_NODES * HIDDEN * HIDDEN)
             + 2 * N_NODES * HIDDEN * HIDDEN
             + 2 * NUM_GRAPHS * HIDDEN * OUT_PAD)
    transcendentals = 2 * (DEPTH + 1) * N_NODES * HIDDEN       # exp + reciprocal per SiLU
    bytes_accessed = (h.size * h.dtype.itemsize
                      + num_blocks * T * T * a_norm.dtype.itemsize
                      + sum(int(p.size) * p.dtype.itemsize for p in prepared)
                      + NUM_GRAPHS * OUT_PAD * 4)

    kernel = functools.partial(dgl_rep_kernel,
                               graphs_per_block=GPB,
                               nodes_per_graph=NODES_PER_GRAPH)

    out_padded = pl.pallas_call(
        kernel,
        out_shape=jax.ShapeDtypeStruct((NUM_GRAPHS, OUT_PAD), jnp.float32),
        grid=(num_blocks,),
        in_specs=in_specs,
        out_specs=out_spec,
        compiler_params=pltpu.CompilerParams(
            dimension_semantics=("parallel",)),   # independent node tiles
        cost_estimate=pl.CostEstimate(flops=flops,
                                      transcendentals=transcendentals,
                                      bytes_accessed=bytes_accessed),
    )(h, a_norm, w_in, b_in, wg, bg, w_out, b_out, w_ff, b_ff)
    return out_padded[:, :OUT_FEATURES]


def build_graph(num_nodes, src, dst):
    """Normalized adjacency matching DGL GraphConv norm='both' with degree clamp."""
    A = jnp.zeros((num_nodes, num_nodes), jnp.float32).at[dst, src].add(1.0)
    out_deg = jnp.clip(A.sum(axis=0), 1.0)   # out-degree of each src node
    in_deg = jnp.clip(A.sum(axis=1), 1.0)    # in-degree of each dst node
    return A * (in_deg[:, None] ** -0.5) * (out_deg[None, :] ** -0.5)


def init_params(key, in_features, hidden, out_features, depth):
    ks = jax.random.split(key, 2 * (depth + 3))
    k = iter(ks)

    def lin(kw, kb, fan_in, fan_out):
        bound = 1.0 / jnp.sqrt(jnp.float32(fan_in))
        w = jax.random.uniform(kw, (fan_in, fan_out), jnp.float32, -bound, bound)
        b = jax.random.uniform(kb, (1, fan_out), jnp.float32, -bound, bound)
        return w, b

    w_in, b_in = lin(next(k), next(k), in_features, hidden)
    wgs, bgs = [], []
    for _ in range(depth):
        w, b = lin(next(k), next(k), hidden, hidden)
        wgs.append(w); bgs.append(b)
    w_out, b_out = lin(next(k), next(k), hidden, hidden)
    w_ff, b_ff = lin(next(k), next(k), hidden, out_features)
    return (w_in, b_in, wgs, bgs, w_out, b_out, w_ff, b_ff)


def reference_forward(h, a_norm, params):
    """Pure-JAX f32 reference of the original module semantics."""
    (w_in, b_in, wgs, bgs, w_out, b_out, w_ff, b_ff) = params
    silu = lambda x: x * jax.nn.sigmoid(x)
    h = silu(h @ w_in + b_in)
    for i in range(DEPTH):
        h = silu((a_norm @ h) @ wgs[i] + bgs[i])
    h = h @ w_out + b_out
    pooled = h.reshape(NUM_GRAPHS, NODES_PER_GRAPH, HIDDEN).sum(axis=1)
    return pooled @ w_ff + b_ff


if __name__ == "__main__":
    key = jax.random.PRNGKey(0)
    k_feat, k_param = jax.random.split(key)

    # deterministic edges: directed ring inside each graph + one chord per graph
    src_list, dst_list = [], []
    for g in range(NUM_GRAPHS):
        base = g * NODES_PER_GRAPH
        for i in range(NODES_PER_GRAPH):
            src_list.append(base + i)
            dst_list.append(base + (i + 1) % NODES_PER_GRAPH)
        src_list.append(base + 0)
        dst_list.append(base + 4)
    src = jnp.array(src_list, jnp.int32)
    dst = jnp.array(dst_list, jnp.int32)

    a_norm = build_graph(N_NODES, src, dst)                      # stays f32
    h0 = jax.random.normal(k_feat, (N_NODES, IN_FEATURES), jnp.float32)
    params = init_params(k_param, IN_FEATURES, HIDDEN, OUT_FEATURES, DEPTH)

    # one-time parameter prep (pad/cast hoisted out of the forward path)
    prepared = jax.block_until_ready(prepare_params(params))

    fwd = jax.jit(functools.partial(dgl_representation_forward,
                                    num_blocks=_num_node_blocks()))
    out = jax.block_until_ready(fwd(h0, a_norm, prepared))

    ref = reference_forward(h0, a_norm, params)
    assert out.shape == (NUM_GRAPHS, OUT_FEATURES)
    # bf16 weight matmuls + approx-reciprocal sigmoid -> modest tolerance
    scale = jnp.maximum(1.0, jnp.max(jnp.abs(ref)))
    err = jnp.max(jnp.abs(out - ref))
    assert err <= 5e-2 * scale, (float(err), float(scale))

    print("KERNEL_OK")
</pallas_src>

<mosaic_0001>
module attributes {stable_mosaic.version = 11 : i64} {
  func.func @dgl_rep_kernel(%arg0: i32, %arg1: memref<256x16xf32, #tpu.memory_space<vmem>>, %arg2: memref<256x256xf32, #tpu.memory_space<vmem>>, %arg3: memref<16x128xbf16, #tpu.memory_space<vmem>>, %arg4: memref<1x128xf32, #tpu.memory_space<vmem>>, %arg5: memref<3x128x128xbf16, #tpu.memory_space<vmem>>, %arg6: memref<3x1x128xf32, #tpu.memory_space<vmem>>, %arg7: memref<128x128xbf16, #tpu.memory_space<vmem>>, %arg8: memref<1x128xf32, #tpu.memory_space<vmem>>, %arg9: memref<128x128xbf16, #tpu.memory_space<vmem>>, %arg10: memref<1x128xf32, #tpu.memory_space<vmem>>, %arg11: memref<32x128xf32, #tpu.memory_space<vmem>>) attributes {dimension_semantics = [#tpu.dimension_semantics<parallel>], iteration_bounds = array<i64: 1>, scalar_prefetch = 0 : i64, scratch_operands = 0 : i64, tpu.core_type = #tpu.core_type<tc>, window_params = [{transform_indices = @transform_0, window_bounds = array<i64: 256, 16>}, {transform_indices = @transform_1, window_bounds = array<i64: 256, 256>}, {pipeline_mode = #tpu.pipeline_mode<synchronous>, transform_indices = @transform_2, window_bounds = array<i64: 16, 128>}, {pipeline_mode = #tpu.pipeline_mode<synchronous>, transform_indices = @transform_3, window_bounds = array<i64: 1, 128>}, {pipeline_mode = #tpu.pipeline_mode<synchronous>, transform_indices = @transform_4, window_bounds = array<i64: 3, 128, 128>}, {pipeline_mode = #tpu.pipeline_mode<synchronous>, transform_indices = @transform_5, window_bounds = array<i64: 3, 1, 128>}, {pipeline_mode = #tpu.pipeline_mode<synchronous>, transform_indices = @transform_6, window_bounds = array<i64: 128, 128>}, {pipeline_mode = #tpu.pipeline_mode<synchronous>, transform_indices = @transform_7, window_bounds = array<i64: 1, 128>}, {pipeline_mode = #tpu.pipeline_mode<synchronous>, transform_indices = @transform_8, window_bounds = array<i64: 128, 128>}, {pipeline_mode = #tpu.pipeline_mode<synchronous>, transform_indices = @transform_9, window_bounds = array<i64: 1, 128>}, {transform_indices = @transform_10, window_bounds = array<i64: 32, 128>}]} {
    %c0 = arith.constant 0 : index
    %c0_0 = arith.constant 0 : index
    %0 = vector.load %arg2[%c0, %c0_0] : memref<256x256xf32, #tpu.memory_space<vmem>>, vector<256x256xf32>
    %c0_1 = arith.constant 0 : index
    %c0_2 = arith.constant 0 : index
    %1 = vector.load %arg1[%c0_1, %c0_2] : memref<256x16xf32, #tpu.memory_space<vmem>>, vector<256x16xf32>
    %2 = arith.truncf %1 : vector<256x16xf32> to vector<256x16xbf16>
    %c0_3 = arith.constant 0 : index
    %c0_4 = arith.constant 0 : index
    %3 = vector.load %arg3[%c0_3, %c0_4] : memref<16x128xbf16, #tpu.memory_space<vmem>>, vector<16x128xbf16>
    %cst = arith.constant dense<0.000000e+00> : vector<256x128xf32>
    %4 = tpu.matmul %2, %3, %cst {dimension_numbers = #tpu.dot_dimension_numbers<[1], [0], [0], [1], [0, 0, 1, 1], [], []>} : vector<256x16xbf16>, vector<16x128xbf16>, vector<256x128xf32> -> vector<256x128xf32>
    %c0_5 = arith.constant 0 : index
    %c0_6 = arith.constant 0 : index
    %5 = vector.load %arg4[%c0_5, %c0_6] : memref<1x128xf32, #tpu.memory_space<vmem>>, vector<1x128xf32>
    %6 = vector.broadcast %5 : vector<1x128xf32> to vector<256x128xf32>
    %7 = arith.addf %4, %6 : vector<256x128xf32>
    %cst_7 = arith.constant 0.000000e+00 : f32
    %8 = vector.broadcast %cst_7 : f32 to vector<256x128xf32>
    %9 = arith.subf %8, %7 : vector<256x128xf32>
    %10 = math.exp %9 : vector<256x128xf32>
    %cst_8 = arith.constant 1.000000e+00 : f32
    %11 = vector.broadcast %cst_8 : f32 to vector<256x128xf32>
    %12 = arith.addf %11, %10 : vector<256x128xf32>
    %13 = tpu.reciprocal %12 {approx = true} : vector<256x128xf32> -> vector<256x128xf32>
    %14 = arith.mulf %7, %13 : vector<256x128xf32>
    %cst_9 = arith.constant dense<0.000000e+00> : vector<256x128xf32>
    %15 = tpu.matmul %0, %14, %cst_9 {dimension_numbers = #tpu.dot_dimension_numbers<[1], [0], [0], [1], [0, 0, 1, 1], [], []>} : vector<256x256xf32>, vector<256x128xf32>, vector<256x128xf32> -> vector<256x128xf32>
    %16 = arith.truncf %15 : vector<256x128xf32> to vector<256x128xbf16>
    %c0_10 = arith.constant 0 : index
    %c0_11 = arith.constant 0 : index
    %c0_12 = arith.constant 0 : index
    %17 = vector.load %arg5[%c0_10, %c0_11, %c0_12] : memref<3x128x128xbf16, #tpu.memory_space<vmem>>, vector<1x128x128xbf16>
    %18 = vector.shape_cast %17 : vector<1x128x128xbf16> to vector<128x128xbf16>
    %cst_13 = arith.constant dense<0.000000e+00> : vector<256x128xf32>
    %19 = tpu.matmul %16, %18, %cst_13 {dimension_numbers = #tpu.dot_dimension_numbers<[1], [0], [0], [1], [0, 0, 1, 1], [], []>} : vector<256x128xbf16>, vector<128x128xbf16>, vector<256x128xf32> -> vector<256x128xf32>
    %c0_14 = arith.constant 0 : index
    %c0_15 = arith.constant 0 : index
    %c0_16 = arith.constant 0 : index
    %20 = vector.load %arg6[%c0_14, %c0_15, %c0_16] : memref<3x1x128xf32, #tpu.memory_space<vmem>>, vector<1x1x128xf32>
    %21 = vector.shape_cast %20 : vector<1x1x128xf32> to vector<1x128xf32>
    %22 = vector.broadcast %21 : vector<1x128xf32> to vector<256x128xf32>
    %23 = arith.addf %19, %22 : vector<256x128xf32>
    %cst_17 = arith.constant 0.000000e+00 : f32
    %24 = vector.broadcast %cst_17 : f32 to vector<256x128xf32>
    %25 = arith.subf %24, %23 : vector<256x128xf32>
    %26 = math.exp %25 : vector<256x128xf32>
    %cst_18 = arith.constant 1.000000e+00 : f32
    %27 = vector.broadcast %cst_18 : f32 to vector<256x128xf32>
    %28 = arith.addf %27, %26 : vector<256x128xf32>
    %29 = tpu.reciprocal %28 {approx = true} : vector<256x128xf32> -> vector<256x128xf32>
    %30 = arith.mulf %23, %29 : vector<256x128xf32>
    %cst_19 = arith.constant dense<0.000000e+00> : vector<256x128xf32>
    %31 = tpu.matmul %0, %30, %cst_19 {dimension_numbers = #tpu.dot_dimension_numbers<[1], [0], [0], [1], [0, 0, 1, 1], [], []>} : vector<256x256xf32>, vector<256x128xf32>, vector<256x128xf32> -> vector<256x128xf32>
    %32 = arith.truncf %31 : vector<256x128xf32> to vector<256x128xbf16>
    %c1 = arith.constant 1 : index
    %c0_20 = arith.constant 0 : index
    %c0_21 = arith.constant 0 : index
    %33 = vector.load %arg5[%c1, %c0_20, %c0_21] : memref<3x128x128xbf16, #tpu.memory_space<vmem>>, vector<1x128x128xbf16>
    %34 = vector.shape_cast %33 : vector<1x128x128xbf16> to vector<128x128xbf16>
    %cst_22 = arith.constant dense<0.000000e+00> : vector<256x128xf32>
    %35 = tpu.matmul %32, %34, %cst_22 {dimension_numbers = #tpu.dot_dimension_numbers<[1], [0], [0], [1], [0, 0, 1, 1], [], []>} : vector<256x128xbf16>, vector<128x128xbf16>, vector<256x128xf32> -> vector<256x128xf32>
    %c1_23 = arith.constant 1 : index
    %c0_24 = arith.constant 0 : index
    %c0_25 = arith.constant 0 : index
    %36 = vector.load %arg6[%c1_23, %c0_24, %c0_25] : memref<3x1x128xf32, #tpu.memory_space<vmem>>, vector<1x1x128xf32>
    %37 = vector.shape_cast %36 : vector<1x1x128xf32> to vector<1x128xf32>
    %38 = vector.broadcast %37 : vector<1x128xf32> to vector<256x128xf32>
    %39 = arith.addf %35, %38 : vector<256x128xf32>
    %cst_26 = arith.constant 0.000000e+00 : f32
    %40 = vector.broadcast %cst_26 : f32 to vector<256x128xf32>
    %41 = arith.subf %40, %39 : vector<256x128xf32>
    %42 = math.exp %41 : vector<256x128xf32>
    %cst_27 = arith.constant 1.000000e+00 : f32
    %43 = vector.broadcast %cst_27 : f32 to vector<256x128xf32>
    %44 = arith.addf %43, %42 : vector<256x128xf32>
    %45 = tpu.reciprocal %44 {approx = true} : vector<256x128xf32> -> vector<256x128xf32>
    %46 = arith.mulf %39, %45 : vector<256x128xf32>
    %cst_28 = arith.constant dense<0.000000e+00> : vector<256x128xf32>
    %47 = tpu.matmul %0, %46, %cst_28 {dimension_numbers = #tpu.dot_dimension_numbers<[1], [0], [0], [1], [0, 0, 1, 1], [], []>} : vector<256x256xf32>, vector<256x128xf32>, vector<256x128xf32> -> vector<256x128xf32>
    %48 = arith.truncf %47 : vector<256x128xf32> to vector<256x128xbf16>
    %c2 = arith.constant 2 : index
    %c0_29 = arith.constant 0 : index
    %c0_30 = arith.constant 0 : index
    %49 = vector.load %arg5[%c2, %c0_29, %c0_30] : memref<3x128x128xbf16, #tpu.memory_space<vmem>>, vector<1x128x128xbf16>
    %50 = vector.shape_cast %49 : vector<1x128x128xbf16> to vector<128x128xbf16>
    %cst_31 = arith.constant dense<0.000000e+00> : vector<256x128xf32>
    %51 = tpu.matmul %48, %50, %cst_31 {dimension_numbers = #tpu.dot_dimension_numbers<[1], [0], [0], [1], [0, 0, 1, 1], [], []>} : vector<256x128xbf16>, vector<128x128xbf16>, vector<256x128xf32> -> vector<256x128xf32>
    %c2_32 = arith.constant 2 : index
    %c0_33 = arith.constant 0 : index
    %c0_34 = arith.constant 0 : index
    %52 = vector.load %arg6[%c2_32, %c0_33, %c0_34] : memref<3x1x128xf32, #tpu.memory_space<vmem>>, vector<1x1x128xf32>
    %53 = vector.shape_cast %52 : vector<1x1x128xf32> to vector<1x128xf32>
    %54 = vector.broadcast %53 : vector<1x128xf32> to vector<256x128xf32>
    %55 = arith.addf %51, %54 : vector<256x128xf32>
    %cst_35 = arith.constant 0.000000e+00 : f32
    %56 = vector.broadcast %cst_35 : f32 to vector<256x128xf32>
    %57 = arith.subf %56, %55 : vector<256x128xf32>
    %58 = math.exp %57 : vector<256x128xf32>
    %cst_36 = arith.constant 1.000000e+00 : f32
    %59 = vector.broadcast %cst_36 : f32 to vector<256x128xf32>
    %60 = arith.addf %59, %58 : vector<256x128xf32>
    %61 = tpu.reciprocal %60 {approx = true} : vector<256x128xf32> -> vector<256x128xf32>
    %62 = arith.mulf %55, %61 : vector<256x128xf32>
    %63 = arith.truncf %62 : vector<256x128xf32> to vector<256x128xbf16>
    %c0_37 = arith.constant 0 : index
    %c0_38 = arith.constant 0 : index
    %64 = vector.load %arg7[%c0_37, %c0_38] : memref<128x128xbf16, #tpu.memory_space<vmem>>, vector<128x128xbf16>
    %cst_39 = arith.constant dense<0.000000e+00> : vector<256x128xf32>
    %65 = tpu.matmul %63, %64, %cst_39 {dimension_numbers = #tpu.dot_dimension_numbers<[1], [0], [0], [1], [0, 0, 1, 1], [], []>} : vector<256x128xbf16>, vector<128x128xbf16>, vector<256x128xf32> -> vector<256x128xf32>
    %c0_40 = arith.constant 0 : index
    %c0_41 = arith.constant 0 : index
    %66 = vector.load %arg8[%c0_40, %c0_41] : memref<1x128xf32, #tpu.memory_space<vmem>>, vector<1x128xf32>
    %67 = vector.broadcast %66 : vector<1x128xf32> to vector<256x128xf32>
    %68 = arith.addf %65, %67 : vector<256x128xf32>
    %69 = vector.shape_cast %68 : vector<256x128xf32> to vector<32x8x128xf32>
    %cst_42 = arith.constant dense<0.000000e+00> : vector<32x128xf32>
    %70 = vector.multi_reduction <add>, %69, %cst_42 [1] : vector<32x8x128xf32> to vector<32x128xf32>
    %71 = arith.truncf %70 : vector<32x128xf32> to vector<32x128xbf16>
    %c0_43 = arith.constant 0 : index
    %c0_44 = arith.constant 0 : index
    %72 = vector.load %arg9[%c0_43, %c0_44] : memref<128x128xbf16, #tpu.memory_space<vmem>>, vector<128x128xbf16>
    %cst_45 = arith.constant dense<0.000000e+00> : vector<32x128xf32>
    %73 = tpu.matmul %71, %72, %cst_45 {dimension_numbers = #tpu.dot_dimension_numbers<[1], [0], [0], [1], [0, 0, 1, 1], [], []>} : vector<32x128xbf16>, vector<128x128xbf16>, vector<32x128xf32> -> vector<32x128xf32>
    %c0_46 = arith.constant 0 : index
    %c0_47 = arith.constant 0 : index
    %74 = vector.load %arg10[%c0_46, %c0_47] : memref<1x128xf32, #tpu.memory_space<vmem>>, vector<1x128xf32>
    %75 = vector.broadcast %74 : vector<1x128xf32> to vector<32x128xf32>
    %76 = arith.addf %73, %75 : vector<32x128xf32>
    %c0_48 = arith.constant 0 : index
    %c0_49 = arith.constant 0 : index
    %77 = vector.load %arg11[%c0_48, %c0_49] : memref<32x128xf32, #tpu.memory_space<vmem>>, vector<32x128xf32>
    tpu.vector_store %arg11[%c0_48, %c0_49], %76 {strides = array<i32>} : memref<32x128xf32, #tpu.memory_space<vmem>>, vector<32x128xf32>,
    return
  }
  func.func @transform_0(%arg0: i32) -> (i32, i32) {
    %c0_i32 = arith.constant 0 : i32
    %c0_i32_0 = arith.constant 0 : i32
    return %arg0, %c0_i32 : i32, i32
  }
  func.func @transform_1(%arg0: i32) -> (i32, i32) {
    %c0_i32 = arith.constant 0 : i32
    return %arg0, %arg0 : i32, i32
  }
  func.func @transform_2(%arg0: i32) -> (i32, i32) {
    %c0_i32 = arith.constant 0 : i32
    %c0_i32_0 = arith.constant 0 : i32
    %c0_i32_1 = arith.constant 0 : i32
    return %c0_i32, %c0_i32_0 : i32, i32
  }
  func.func @transform_3(%arg0: i32) -> (i32, i32) {
    %c0_i32 = arith.constant 0 : i32
    %c0_i32_0 = arith.constant 0 : i32
    %c0_i32_1 = arith.constant 0 : i32
    return %c0_i32, %c0_i32_0 : i32, i32
  }
  func.func @transform_4(%arg0: i32) -> (i32, i32, i32) {
    %c0_i32 = arith.constant 0 : i32
    %c0_i32_0 = arith.constant 0 : i32
    %c0_i32_1 = arith.constant 0 : i32
    %c0_i32_2 = arith.constant 0 : i32
    return %c0_i32, %c0_i32_0, %c0_i32_1 : i32, i32, i32
  }
  func.func @transform_5(%arg0: i32) -> (i32, i32, i32) {
    %c0_i32 = arith.constant 0 : i32
    %c0_i32_0 = arith.constant 0 : i32
    %c0_i32_1 = arith.constant 0 : i32
    %c0_i32_2 = arith.constant 0 : i32
    return %c0_i32, %c0_i32_0, %c0_i32_1 : i32, i32, i32
  }
  func.func @transform_6(%arg0: i32) -> (i32, i32) {
    %c0_i32 = arith.constant 0 : i32
    %c0_i32_0 = arith.constant 0 : i32
    %c0_i32_1 = arith.constant 0 : i32
    return %c0_i32, %c0_i32_0 : i32, i32
  }
  func.func @transform_7(%arg0: i32) -> (i32, i32) {
    %c0_i32 = arith.constant 0 : i32
    %c0_i32_0 = arith.constant 0 : i32
    %c0_i32_1 = arith.constant 0 : i32
    return %c0_i32, %c0_i32_0 : i32, i32
  }
  func.func @transform_8(%arg0: i32) -> (i32, i32) {
    %c0_i32 = arith.constant 0 : i32
    %c0_i32_0 = arith.constant 0 : i32
    %c0_i32_1 = arith.constant 0 : i32
    return %c0_i32, %c0_i32_0 : i32, i32
  }
  func.func @transform_9(%arg0: i32) -> (i32, i32) {
    %c0_i32 = arith.constant 0 : i32
    %c0_i32_0 = arith.constant 0 : i32
    %c0_i32_1 = arith.constant 0 : i32
    return %c0_i32, %c0_i32_0 : i32, i32
  }
  func.func @transform_10(%arg0: i32) -> (i32, i32) {
    %c0_i32 = arith.constant 0 : i32
    %c0_i32_0 = arith.constant 0 : i32
    return %arg0, %c0_i32 : i32, i32
  }
}

</mosaic_0001>

<llo_original>
// kernel: dgl_representation_forward.1
$region0: #{dgl_representation_forward.1}
  #allocation0 [shape = 'u32[]', space=smem, size = 0x4, offset = 0x4, fixed_abs, tag = 'smem constant byte address 0x4 - core index']
  #allocation1 [shape = 'u32[144,128]{1,0:T(1,128)}', space=vmem, size = 0x12000, scoped, tag = 'internal scratch']
  %s0 = inlined_call_operand.vmem [shape: f32[256,16], index: 0, kind: input, shape index: {}]
  %s1 = inlined_call_operand.hbm [shape: f32[256,256], index: 1, kind: input, shape index: {}]
  %s2 = inlined_call_operand.vmem [shape: bf16[16,128], index: 2, kind: input, shape index: {}]
  %s3 = inlined_call_operand.vmem [shape: f32[1,128], index: 3, kind: input, shape index: {}]
  %s4 = inlined_call_operand.vmem [shape: bf16[3,128,128], index: 4, kind: input, shape index: {}]
  %s5 = inlined_call_operand.vmem [shape: f32[3,1,128], index: 5, kind: input, shape index: {}]
  %s6 = inlined_call_operand.vmem [shape: bf16[128,128], index: 6, kind: input, shape index: {}]
  %s7 = inlined_call_operand.vmem [shape: f32[1,128], index: 7, kind: input, shape index: {}]
  %s8 = inlined_call_operand.hbm [shape: bf16[128,128], index: 8, kind: input, shape index: {}]
  %s9 = inlined_call_operand.vmem [shape: f32[1,128], index: 9, kind: input, shape index: {}]
  %s10 = inlined_call_operand.vmem [shape: f32[32,128], index: 10, kind: output, shape index: {}]
  %s11 = sld [smem:[#allocation0]]
  $region58: #{dgl_representation_forward.1} parent=0
    _
  %s13 = ssub.s32 1, %s11
  %s14 = scalar_select 0, %s13, %s11
  $region1: #{dgl_representation_forward.1} parent=0
    #allocation2 [shape = 'u8[262144]{0}', space=vmem, size = 0x40000, scoped, tag = 'input window, operand 1, single buffered']
    #allocation3 [shape = 's32[1]{0}', space=sflag, size = 0x4, scoped, tag = 'scoped memory for dgl_representation_forward.1']
    #allocation4 [shape = 'u8[32768]{0}', space=vmem, size = 0x8000, scoped, tag = 'input window, operand 8, single buffered']
    #allocation5 [shape = 's32[1]{0}', space=sflag, size = 0x4, scoped, tag = 'scoped memory for dgl_representation_forward.1']
    %15 = vsyncpa [#allocation3], 0
    %16 = vsyncpa [#allocation5], 0
    // Predicated region
    $region2: #{dgl_representation_forward.1} parent=1 // pred_check
      _
    $region3: #{dgl_representation_forward.1} parent=1 // pred_check_branch
      %18 = sbr.rel (0) target = $region5
    $region4: #{dgl_representation_forward.1} parent=1 // pred_region
      _
    $region5: #{dgl_representation_forward.1} parent=1 // pred_fallthru
      _
    // Predicated region
    $region6: #{dgl_representation_forward.1} parent=1 // pred_check
      _
    $region7: #{dgl_representation_forward.1} parent=1 // pred_check_branch
      %20 = sbr.rel (0) target = $region9
    $region8: #{dgl_representation_forward.1} parent=1 // pred_region
      %s22 = ssub.s32 8192, 8192
      %23 = vsyncadd [#allocation3], %s22
      %s24 = sshll.u32 [#allocation2], 4
      %s25 = int_to_ptr.vmem [resolvable:$true] %s24
      %30 = dma.hbm_to_vmem [thread:$0]  %s1, 8192, %s25, [#allocation3], 256, 256, 16
    $region9: #{dgl_representation_forward.1} parent=1 // pred_fallthru
      _
    // Predicated region
    $region10: #{dgl_representation_forward.1} parent=1 // pred_check
      _
    $region11: #{dgl_representation_forward.1} parent=1 // pred_check_branch
      %32 = sbr.rel (0) target = $region13
    $region12: #{dgl_representation_forward.1} parent=1 // pred_region
      _
    $region13: #{dgl_representation_forward.1} parent=1 // pred_fallthru
      _
    // Predicated region
    $region14: #{dgl_representation_forward.1} parent=1 // pred_check
      _
    $region15: #{dgl_representation_forward.1} parent=1 // pred_check_branch
      %34 = sbr.rel (0) target = $region17
    $region16: #{dgl_representation_forward.1} parent=1 // pred_region
      _
    $region17: #{dgl_representation_forward.1} parent=1 // pred_fallthru
      _
    // Predicated region
    $region18: #{dgl_representation_forward.1} parent=1 // pred_check
      _
    $region19: #{dgl_representation_forward.1} parent=1 // pred_check_branch
      %36 = sbr.rel (0) target = $region21
    $region20: #{dgl_representation_forward.1} parent=1 // pred_region
      _
    $region21: #{dgl_representation_forward.1} parent=1 // pred_fallthru
      _
    // Predicated region
    $region22: #{dgl_representation_forward.1} parent=1 // pred_check
      _
    $region23: #{dgl_representation_forward.1} parent=1 // pred_check_branch
      %38 = sbr.rel (0) target = $region25
    $region24: #{dgl_representation_forward.1} parent=1 // pred_region
      _
    $region25: #{dgl_representation_forward.1} parent=1 // pred_fallthru
      _
    // Predicated region
    $region26: #{dgl_representation_forward.1} parent=1 // pred_check
      _
    $region27: #{dgl_representation_forward.1} parent=1 // pred_check_branch
      %40 = sbr.rel (0) target = $region29
    $region28: #{dgl_representation_forward.1} parent=1 // pred_region
      _
    $region29: #{dgl_representation_forward.1} parent=1 // pred_fallthru
      _
    // Predicated region
    $region30: #{dgl_representation_forward.1} parent=1 // pred_check
      _
    $region31: #{dgl_representation_forward.1} parent=1 // pred_check_branch
      %42 = sbr.rel (0) target = $region33
    $region32: #{dgl_representation_forward.1} parent=1 // pred_region
      _
    $region33: #{dgl_representation_forward.1} parent=1 // pred_fallthru
      _
    // Predicated region
    $region34: #{dgl_representation_forward.1} parent=1 // pred_check
      _
    $region35: #{dgl_representation_forward.1} parent=1 // pred_check_branch
      %44 = sbr.rel (0) target = $region37
    $region36: #{dgl_representation_forward.1} parent=1 // pred_region
      %s46 = ssub.s32 1024, 1024
      %47 = vsyncadd [#allocation5], %s46
      %s48 = sshll.u32 [#allocation4], 4
      %s49 = int_to_ptr.vmem [resolvable:$true] %s48
      %54 = dma.hbm_to_vmem [thread:$0]  %s8, 1024, %s49, [#allocation5], 64, 64, 4
    $region37: #{dgl_representation_forward.1} parent=1 // pred_fallthru
      _
    // Predicated region
    $region38: #{dgl_representation_forward.1} parent=1 // pred_check
      _
    $region39: #{dgl_representation_forward.1} parent=1 // pred_check_branch
      %56 = sbr.rel (0) target = $region41
    $region40: #{dgl_representation_forward.1} parent=1 // pred_region
      _
    $region41: #{dgl_representation_forward.1} parent=1 // pred_fallthru
      _
    // Predicated region
    $region42: #{dgl_representation_forward.1} parent=1 // pred_check
      _
    $region43: #{dgl_representation_forward.1} parent=1 // pred_check_branch
      %58 = sbr.rel (0) target = $region45
    $region44: #{dgl_representation_forward.1} parent=1 // pred_region
      %59 = dma.done [#allocation3], 8192
    $region45: #{dgl_representation_forward.1} parent=1 // pred_fallthru
      _
    // Predicated region
    $region46: #{dgl_representation_forward.1} parent=1 // pred_check
      _
    $region47: #{dgl_representation_forward.1} parent=1 // pred_check_branch
      %61 = sbr.rel (0) target = $region49
    $region48: #{dgl_representation_forward.1} parent=1 // pred_region
      %62 = dma.done [#allocation5], 1024
    $region49: #{dgl_representation_forward.1} parent=1 // pred_fallthru
      _
    %v64 = vld [vmem:[#allocation2] sm:$0xff]
    %v65 = vld [vmem:[#allocation2 + $0x8] sm:$0xff]
    %v66 = vld [vmem:[#allocation2 + $0x10] sm:$0xff]
    %v67 = vld [vmem:[#allocation2 + $0x18] sm:$0xff]
    %v68 = vld [vmem:[#allocation2 + $0x20] sm:$0xff]
    %v69 = vld [vmem:[#allocation2 + $0x28] sm:$0xff]
    %v70 = vld [vmem:[#allocation2 + $0x30] sm:$0xff]
    %v71 = vld [vmem:[#allocation2 + $0x38] sm:$0xff]
    %v72 = vld [vmem:[#allocation2 + $0x40] sm:$0xff]
    %v73 = vld [vmem:[#allocation2 + $0x48] sm:$0xff]
    %v74 = vld [vmem:[#allocation2 + $0x50] sm:$0xff]
    %v75 = vld [vmem:[#allocation2 + $0x58] sm:$0xff]
    %v76 = vld [vmem:[#allocation2 + $0x60] sm:$0xff]
    %v77 = vld [vmem:[#allocation2 + $0x68] sm:$0xff]
    %v78 = vld [vmem:[#allocation2 + $0x70] sm:$0xff]
    %v79 = vld [vmem:[#allocation2 + $0x78] sm:$0xff]
    %v80 = vld [vmem:[#allocation2 + $0x80] sm:$0xff]
    %v81 = vld [vmem:[#allocation2 + $0x88] sm:$0xff]
    %v82 = vld [vmem:[#allocation2 + $0x90] sm:$0xff]
    %v83 = vld [vmem:[#allocation2 + $0x98] sm:$0xff]
    %v84 = vld [vmem:[#allocation2 + $0xa0] sm:$0xff]
    %v85 = vld [vmem:[#allocation2 + $0xa8] sm:$0xff]
    %v86 = vld [vmem:[#allocation2 + $0xb0] sm:$0xff]
    %v87 = vld [vmem:[#allocation2 + $0xb8] sm:$0xff]
    %v88 = vld [vmem:[#allocation2 + $0xc0] sm:$0xff]
    %v89 = vld [vmem:[#allocation2 + $0xc8] sm:$0xff]
    %v90 = vld [vmem:[#allocation2 + $0xd0] sm:$0xff]
    %v91 = vld [vmem:[#allocation2 + $0xd8] sm:$0xff]
    %v92 = vld [vmem:[#allocation2 + $0xe0] sm:$0xff]
    %v93 = vld [vmem:[#allocation2 + $0xe8] sm:$0xff]
    %v94 = vld [vmem:[#allocation2 + $0xf0] sm:$0xff]
    %v95 = vld [vmem:[#allocation2 + $0xf8] sm:$0xff]
    %v96 = vld [vmem:[#allocation2 + $0x100] sm:$0xff]
    %v97 = vld [vmem:[#allocation2 + $0x108] sm:$0xff]
    %v98 = vld [vmem:[#allocation2 + $0x110] sm:$0xff]
    %v99 = vld [vmem:[#allocation2 + $0x118] sm:$0xff]
    %v100 = vld [vmem:[#allocation2 + $0x120] sm:$0xff]
    %v101 = vld [vmem:[#allocation2 + $0x128] sm:$0xff]
    %v102 = vld [vmem:[#allocation2 + $0x130] sm:$0xff]
    %v103 = vld [vmem:[#allocation2 + $0x138] sm:$0xff]
    %v104 = vld [vmem:[#allocation2 + $0x140] sm:$0xff]
    %v105 = vld [vmem:[#allocation2 + $0x148] sm:$0xff]
    %v106 = vld [vmem:[#allocation2 + $0x150] sm:$0xff]
    %v107 = vld [vmem:[#allocation2 + $0x158] sm:$0xff]
    %v108 = vld [vmem:[#allocation2 + $0x160] sm:$0xff]
    %v109 = vld [vmem:[#allocation2 + $0x168] sm:$0xff]
    %v110 = vld [vmem:[#allocation2 + $0x170] sm:$0xff]
    %v111 = vld [vmem:[#allocation2 + $0x178] sm:$0xff]
    %v112 = vld [vmem:[#allocation2 + $0x180] sm:$0xff]
    %v113 = vld [vmem:[#allocation2 + $0x188] sm:$0xff]
    %v114 = vld [vmem:[#allocation2 + $0x190] sm:$0xff]
    %v115 = vld [vmem:[#allocation2 + $0x198] sm:$0xff]
    %v116 = vld [vmem:[#allocation2 + $0x1a0] sm:$0xff]
    %v117 = vld [vmem:[#allocation2 + $0x1a8] sm:$0xff]
    %v118 = vld [vmem:[#allocation2 + $0x1b0] sm:$0xff]
    %v119 = vld [vmem:[#allocation2 + $0x1b8] sm:$0xff]
    %v120 = vld [vmem:[#allocation2 + $0x1c0] sm:$0xff]
    %v121 = vld [vmem:[#allocation2 + $0x1c8] sm:$0xff]
    %v122 = vld [vmem:[#allocation2 + $0x1d0] sm:$0xff]
    %v123 = vld [vmem:[#allocation2 + $0x1d8] sm:$0xff]
    %v124 = vld [vmem:[#allocation2 + $0x1e0] sm:$0xff]
    %v125 = vld [vmem:[#allocation2 + $0x1e8] sm:$0xff]
    %v126 = vld [vmem:[#allocation2 + $0x1f0] sm:$0xff]
    %v127 = vld [vmem:[#allocation2 + $0x1f8] sm:$0xff]
    %v128 = vld [vmem:[%s0] sm:$0xff]
    %v129 = vld [vmem:[%s0 + $0x8] sm:$0xff]
    %v130 = vld [vmem:[%s0 + $0x10] sm:$0xff]
    %v131 = vld [vmem:[%s0 + $0x18] sm:$0xff]
    %v132 = vld [vmem:[%s0 + $0x20] sm:$0xff]
    %v133 = vld [vmem:[%s0 + $0x28] sm:$0xff]
    %v134 = vld [vmem:[%s0 + $0x30] sm:$0xff]
    %v135 = vld [vmem:[%s0 + $0x38] sm:$0xff]
    %v136 = vld [vmem:[%s0 + $0x40] sm:$0xff]
    %v137 = vld [vmem:[%s0 + $0x48] sm:$0xff]
    %v138 = vld [vmem:[%s0 + $0x50] sm:$0xff]
    %v139 = vld [vmem:[%s0 + $0x58] sm:$0xff]
    %v140 = vld [vmem:[%s0 + $0x60] sm:$0xff]
    %v141 = vld [vmem:[%s0 + $0x68] sm:$0xff]
    %v142 = vld [vmem:[%s0 + $0x70] sm:$0xff]
    %v143 = vld [vmem:[%s0 + $0x78] sm:$0xff]
    %v144 = vld [vmem:[%s0 + $0x80] sm:$0xff]
    %v145 = vld [vmem:[%s0 + $0x88] sm:$0xff]
    %v146 = vld [vmem:[%s0 + $0x90] sm:$0xff]
    %v147 = vld [vmem:[%s0 + $0x98] sm:$0xff]
    %v148 = vld [vmem:[%s0 + $0xa0] sm:$0xff]
    %v149 = vld [vmem:[%s0 + $0xa8] sm:$0xff]
    %v150 = vld [vmem:[%s0 + $0xb0] sm:$0xff]
    %v151 = vld [vmem:[%s0 + $0xb8] sm:$0xff]
    %v152 = vld [vmem:[%s0 + $0xc0] sm:$0xff]
    %v153 = vld [vmem:[%s0 + $0xc8] sm:$0xff]
    %v154 = vld [vmem:[%s0 + $0xd0] sm:$0xff]
    %v155 = vld [vmem:[%s0 + $0xd8] sm:$0xff]
    %v156 = vld [vmem:[%s0 + $0xe0] sm:$0xff]
    %v157 = vld [vmem:[%s0 + $0xe8] sm:$0xff]
    %v158 = vld [vmem:[%s0 + $0xf0] sm:$0xff]
    %v159 = vld [vmem:[%s0 + $0xf8] sm:$0xff]
    %v160 = vpack.c.bf16 %v129, %v128
    %v161 = vpack.c.bf16 %v131, %v130
    %v162 = vpack.c.bf16 %v133, %v132
    %v163 = vpack.c.bf16 %v135, %v134
    %v164 = vpack.c.bf16 %v137, %v136
    %v165 = vpack.c.bf16 %v139, %v138
    %v166 = vpack.c.bf16 %v141, %v140
    %v167 = vpack.c.bf16 %v143, %v142
    %v168 = vpack.c.bf16 %v145, %v144
    %v169 = vpack.c.bf16 %v147, %v146
    %v170 = vpack.c.bf16 %v149, %v148
    %v171 = vpack.c.bf16 %v151, %v150
    %v172 = vpack.c.bf16 %v153, %v152
    %v173 = vpack.c.bf16 %v155, %v154
    %v174 = vpack.c.bf16 %v157, %v156
    %v175 = vpack.c.bf16 %v159, %v158
    %v176 = vld [vmem:[%s2] sm:$0xf]
    %v177 = vld [vmem:[%s2 + $0x4] sm:$0xf]
    %v178 = vld [vmem:[%s3] sm:$0x1]
    %v180 = vlaneseq
    %v181 = vshrl.u32 %v180, 7
    %v182 = vsub.s32 0, %v181
    %v183 = vrot.slane %v178, %v182
    %v187 = vunpack.c.l.b16 %v176
    %v188 = vunpack.c.l.b16 %v177
    %v189 = vpack.c.b16 %v188, %v187
    %vm191 = vcmask 130048
    %v193 = vsel %vm191, %v160, 0
    %v196 = vsel %vm191, %v161, 0
    %v199 = vsel %vm191, %v162, 0
    %v202 = vsel %vm191, %v163, 0
    %v205 = vsel %vm191, %v164, 0
    %v208 = vsel %vm191, %v165, 0
    %v211 = vsel %vm191, %v166, 0
    %v214 = vsel %vm191, %v167, 0
    %v217 = vsel %vm191, %v168, 0
    %v220 = vsel %vm191, %v169, 0
    %v223 = vsel %vm191, %v170, 0
    %v226 = vsel %vm191, %v171, 0
    %v229 = vsel %vm191, %v172, 0
    %v232 = vsel %vm191, %v173, 0
    %v235 = vsel %vm191, %v174, 0
    %v238 = vsel %vm191, %v175, 0
    %240 = vmatprep.subr.bf16.mxu0 0
    %241 = vmatpush1.bf16.msra.mxu0 0
    %242 = vmatprep.subr.bf16.mxu0 0
    %243 = vmatpush1.bf16.msra.mxu0 0
    %244 = vmatprep.subr.bf16.mxu0 0
    %245 = vmatpush1.bf16.msra.mxu0 0
    %246 = vmatprep.subr.bf16.mxu0 0
    %247 = vmatpush1.bf16.msra.mxu0 0
    %248 = vmatprep.subr.bf16.mxu0 0
    %249 = vmatpush1.bf16.msra.mxu0 0
    %250 = vmatprep.subr.bf16.mxu0 0
    %251 = vmatpush1.bf16.msra.mxu0 0
    %252 = vmatprep.subr.bf16.mxu0 0
    %253 = vmatpush1.bf16.msra.mxu0 0
    %254 = vmatprep.subr.bf16.mxu0 0
    %255 = vmatpush1.bf16.msra.mxu0 %v189
    %256 = vmatprep.subr.bf16.mxu0 0
    %257 = vmatpush2.bf16.msra.mxu0 0
    %258 = vmatprep.subr.bf16.mxu0 0
    %259 = vmatpush2.bf16.msra.mxu0 0
    %260 = vmatprep.subr.bf16.mxu0 0
    %261 = vmatpush2.bf16.msra.mxu0 0
    %262 = vmatprep.subr.bf16.mxu0 0
    %263 = vmatpush2.bf16.msra.mxu0 0
    %264 = vmatprep.subr.bf16.mxu0 0
    %265 = vmatpush2.bf16.msra.mxu0 0
    %266 = vmatprep.subr.bf16.mxu0 0
    %267 = vmatpush2.bf16.msra.mxu0 0
    %268 = vmatprep.subr.bf16.mxu0 0
    %269 = vmatpush2.bf16.msra.mxu0 0
    %270 = vmatprep.subr.bf16.mxu0 0
    %271 = vmatpush2.bf16.msra.mxu0 0
    %272 = vmatprep.mubr.bf16.mxu0 0
    %273 = vmatmul.mubr.bf16.gmra.mxu0 %v193
    %v274 = vpop.f32.mrf.mxu0
    %v275 = vadd.f32 %v183, %v274
    %v276 = vpop.f32.mrf.mxu0
    %v277 = vpop.f32.mrf.mxu0
    %v278 = vadd.f32 %v183, %v277
    %v279 = vpop.f32.mrf.mxu0
    %280 = vmatprep.mubr.bf16.mxu0 0
    %281 = vmatmul.mubr.bf16.gmra.mxu0 %v196
    %v282 = vpop.f32.mrf.mxu0
    %v283 = vadd.f32 %v183, %v282
    %v284 = vpop.f32.mrf.mxu0
    %v285 = vpop.f32.mrf.mxu0
    %v286 = vadd.f32 %v183, %v285
    %v287 = vpop.f32.mrf.mxu0
    %288 = vmatprep.mubr.bf16.mxu0 0
    %289 = vmatmul.mubr.bf16.gmra.mxu0 %v199
    %v290 = vpop.f32.mrf.mxu0
    %v291 = vadd.f32 %v183, %v290
    %v292 = vpop.f32.mrf.mxu0
    %v293 = vpop.f32.mrf.mxu0
    %v294 = vadd.f32 %v183, %v293
    %v295 = vpop.f32.mrf.mxu0
    %296 = vmatprep.mubr.bf16.mxu0 0
    %297 = vmatmul.mubr.bf16.gmra.mxu0 %v202
    %v298 = vpop.f32.mrf.mxu0
    %v299 = vadd.f32 %v183, %v298
    %v300 = vpop.f32.mrf.mxu0
    %v301 = vpop.f32.mrf.mxu0
    %v302 = vadd.f32 %v183, %v301
    %v303 = vpop.f32.mrf.mxu0
    %304 = vmatprep.mubr.bf16.mxu0 0
    %305 = vmatmul.mubr.bf16.gmra.mxu0 %v205
    %v306 = vpop.f32.mrf.mxu0
    %v307 = vadd.f32 %v183, %v306
    %v308 = vpop.f32.mrf.mxu0
    %v309 = vpop.f32.mrf.mxu0
    %v310 = vadd.f32 %v183, %v309
    %v311 = vpop.f32.mrf.mxu0
    %312 = vmatprep.mubr.bf16.mxu0 0
    %313 = vmatmul.mubr.bf16.gmra.mxu0 %v208
    %v314 = vpop.f32.mrf.mxu0
    %v315 = vadd.f32 %v183, %v314
    %v316 = vpop.f32.mrf.mxu0
    %v317 = vpop.f32.mrf.mxu0
    %v318 = vadd.f32 %v183, %v317
    %v319 = vpop.f32.mrf.mxu0
    %320 = vmatprep.mubr.bf16.mxu0 0
    %321 = vmatmul.mubr.bf16.gmra.mxu0 %v211
    %v322 = vpop.f32.mrf.mxu0
    %v323 = vadd.f32 %v183, %v322
    %v324 = vpop.f32.mrf.mxu0
    %v325 = vpop.f32.mrf.mxu0
    %v326 = vadd.f32 %v183, %v325
    %v327 = vpop.f32.mrf.mxu0
    %328 = vmatprep.mubr.bf16.mxu0 0
    %329 = vmatmul.mubr.bf16.gmra.mxu0 %v214
    %v330 = vpop.f32.mrf.mxu0
    %v331 = vadd.f32 %v183, %v330
    %v332 = vpop.f32.mrf.mxu0
    %v333 = vpop.f32.mrf.mxu0
    %v334 = vadd.f32 %v183, %v333
    %v335 = vpop.f32.mrf.mxu0
    %336 = vmatprep.mubr.bf16.mxu0 0
    %337 = vmatmul.mubr.bf16.gmra.mxu0 %v217
    %v338 = vpop.f32.mrf.mxu0
    %v339 = vadd.f32 %v183, %v338
    %v340 = vpop.f32.mrf.mxu0
    %v341 = vpop.f32.mrf.mxu0
    %v342 = vadd.f32 %v183, %v341
    %v343 = vpop.f32.mrf.mxu0
    %344 = vmatprep.mubr.bf16.mxu0 0
    %345 = vmatmul.mubr.bf16.gmra.mxu0 %v220
    %v346 = vpop.f32.mrf.mxu0
    %v347 = vadd.f32 %v183, %v346
    %v348 = vpop.f32.mrf.mxu0
    %v349 = vpop.f32.mrf.mxu0
    %v350 = vadd.f32 %v183, %v349
    %v351 = vpop.f32.mrf.mxu0
    %352 = vmatprep.mubr.bf16.mxu0 0
    %353 = vmatmul.mubr.bf16.gmra.mxu0 %v223
    %v354 = vpop.f32.mrf.mxu0
    %v355 = vadd.f32 %v183, %v354
    %v356 = vpop.f32.mrf.mxu0
    %v357 = vpop.f32.mrf.mxu0
    %v358 = vadd.f32 %v183, %v357
    %v359 = vpop.f32.mrf.mxu0
    %360 = vmatprep.mubr.bf16.mxu0 0
    %361 = vmatmul.mubr.bf16.gmra.mxu0 %v226
    %v362 = vpop.f32.mrf.mxu0
    %v363 = vadd.f32 %v183, %v362
    %v364 = vpop.f32.mrf.mxu0
    %v365 = vpop.f32.mrf.mxu0
    %v366 = vadd.f32 %v183, %v365
    %v367 = vpop.f32.mrf.mxu0
    %368 = vmatprep.mubr.bf16.mxu0 0
    %369 = vmatmul.mubr.bf16.gmra.mxu0 %v229
    %v370 = vpop.f32.mrf.mxu0
    %v371 = vadd.f32 %v183, %v370
    %v372 = vpop.f32.mrf.mxu0
    %v373 = vpop.f32.mrf.mxu0
    %v374 = vadd.f32 %v183, %v373
    %v375 = vpop.f32.mrf.mxu0
    %376 = vmatprep.mubr.bf16.mxu0 0
    %377 = vmatmul.mubr.bf16.gmra.mxu0 %v232
    %v378 = vpop.f32.mrf.mxu0
    %v379 = vadd.f32 %v183, %v378
    %v380 = vpop.f32.mrf.mxu0
    %v381 = vpop.f32.mrf.mxu0
    %v382 = vadd.f32 %v183, %v381
    %v383 = vpop.f32.mrf.mxu0
    %384 = vmatprep.mubr.bf16.mxu0 0
    %385 = vmatmul.mubr.bf16.gmra.mxu0 %v235
    %v386 = vpop.f32.mrf.mxu0
    %v387 = vadd.f32 %v183, %v386
    %v388 = vpop.f32.mrf.mxu0
    %v389 = vpop.f32.mrf.mxu0
    %v390 = vadd.f32 %v183, %v389
    %v391 = vpop.f32.mrf.mxu0
    %392 = vmatprep.mubr.bf16.mxu0 0
    %393 = vmatmul.mubr.bf16.gmra.mxu0 %v238
    %v394 = vpop.f32.mrf.mxu0
    %v395 = vadd.f32 %v183, %v394
    %v396 = vpop.f32.mrf.mxu0
    %v397 = vpop.f32.mrf.mxu0
    %v398 = vadd.f32 %v183, %v397
    %v399 = vpop.f32.mrf.mxu0
    %400 = vdwg.mxu0
    %v401 = vsub.f32 0.0, %v275
    %v402 = vsub.f32 0.0, %v278
    %v403 = vsub.f32 0.0, %v283
    %v404 = vsub.f32 0.0, %v286
    %v405 = vsub.f32 0.0, %v291
    %v406 = vsub.f32 0.0, %v294
    %v407 = vsub.f32 0.0, %v299
    %v408 = vsub.f32 0.0, %v302
    %v409 = vsub.f32 0.0, %v307
    %v410 = vsub.f32 0.0, %v310
    %v411 = vsub.f32 0.0, %v315
    %v412 = vsub.f32 0.0, %v318
    %v413 = vsub.f32 0.0, %v323
    %v414 = vsub.f32 0.0, %v326
    %v415 = vsub.f32 0.0, %v331
    %v416 = vsub.f32 0.0, %v334
    %v417 = vsub.f32 0.0, %v339
    %v418 = vsub.f32 0.0, %v342
    %v419 = vsub.f32 0.0, %v347
    %v420 = vsub.f32 0.0, %v350
    %v421 = vsub.f32 0.0, %v355
    %v422 = vsub.f32 0.0, %v358
    %v423 = vsub.f32 0.0, %v363
    %v424 = vsub.f32 0.0, %v366
    %v425 = vsub.f32 0.0, %v371
    %v426 = vsub.f32 0.0, %v374
    %v427 = vsub.f32 0.0, %v379
    %v428 = vsub.f32 0.0, %v382
    %v429 = vsub.f32 0.0, %v387
    %v430 = vsub.f32 0.0, %v390
    %v431 = vsub.f32 0.0, %v395
    %v432 = vsub.f32 0.0, %v398
    %v433 = vmul.f32 %v401, 1.442695
    %v434 = vpow.pop %v433
    %v435 = vmul.f32 %v402, 1.442695
    %v436 = vpow.pop %v435
    %v437 = vmul.f32 %v403, 1.442695
    %v438 = vpow.pop %v437
    %v439 = vmul.f32 %v404, 1.442695
    %v440 = vpow.pop %v439
    %v441 = vmul.f32 %v405, 1.442695
    %v442 = vpow.pop %v441
    %v443 = vmul.f32 %v406, 1.442695
    %v444 = vpow.pop %v443
    %v445 = vmul.f32 %v407, 1.442695
    %v446 = vpow.pop %v445
    %v447 = vmul.f32 %v408, 1.442695
    %v448 = vpow.pop %v447
    %v449 = vmul.f32 %v409, 1.442695
    %v450 = vpow.pop %v449
    %v451 = vmul.f32 %v410, 1.442695
    %v452 = vpow.pop %v451
    %v453 = vmul.f32 %v411, 1.442695
    %v454 = vpow.pop %v453
    %v455 = vmul.f32 %v412, 1.442695
    %v456 = vpow.pop %v455
    %v457 = vmul.f32 %v413, 1.442695
    %v458 = vpow.pop %v457
    %v459 = vmul.f32 %v414, 1.442695
    %v460 = vpow.pop %v459
    %v461 = vmul.f32 %v415, 1.442695
    %v462 = vpow.pop %v461
    %v463 = vmul.f32 %v416, 1.442695
    %v464 = vpow.pop %v463
    %v465 = vmul.f32 %v417, 1.442695
    %v466 = vpow.pop %v465
    %v467 = vmul.f32 %v418, 1.442695
    %v468 = vpow.pop %v467
    %v469 = vmul.f32 %v419, 1.442695
    %v470 = vpow.pop %v469
    %v471 = vmul.f32 %v420, 1.442695
    %v472 = vpow.pop %v471
    %v473 = vmul.f32 %v421, 1.442695
    %v474 = vpow.pop %v473
    %v475 = vmul.f32 %v422, 1.442695
    %v476 = vpow.pop %v475
    %v477 = vmul.f32 %v423, 1.442695
    %v478 = vpow.pop %v477
    %v479 = vmul.f32 %v424, 1.442695
    %v480 = vpow.pop %v479
    %v481 = vmul.f32 %v425, 1.442695
    %v482 = vpow.pop %v481
    %v483 = vmul.f32 %v426, 1.442695
    %v484 = vpow.pop %v483
    %v485 = vmul.f32 %v427, 1.442695
    %v486 = vpow.pop %v485
    %v487 = vmul.f32 %v428, 1.442695
    %v488 = vpow.pop %v487
    %v489 = vmul.f32 %v429, 1.442695
    %v490 = vpow.pop %v489
    %v491 = vmul.f32 %v430, 1.442695
    %v492 = vpow.pop %v491
    %v493 = vmul.f32 %v431, 1.442695
    %v494 = vpow.pop %v493
    %v495 = vmul.f32 %v432, 1.442695
    %v496 = vpow.pop %v495
    %v497 = vadd.f32 %v434, 1.0
    %v498 = vadd.f32 %v436, 1.0
    %v499 = vadd.f32 %v438, 1.0
    %v500 = vadd.f32 %v440, 1.0
    %v501 = vadd.f32 %v442, 1.0
    %v502 = vadd.f32 %v444, 1.0
    %v503 = vadd.f32 %v446, 1.0
    %v504 = vadd.f32 %v448, 1.0
    %v505 = vadd.f32 %v450, 1.0
    %v506 = vadd.f32 %v452, 1.0
    %v507 = vadd.f32 %v454, 1.0
    %v508 = vadd.f32 %v456, 1.0
    %v509 = vadd.f32 %v458, 1.0
    %v510 = vadd.f32 %v460, 1.0
    %v511 = vadd.f32 %v462, 1.0
    %v512 = vadd.f32 %v464, 1.0
    %v513 = vadd.f32 %v466, 1.0
    %v514 = vadd.f32 %v468, 1.0
    %v515 = vadd.f32 %v470, 1.0
    %v516 = vadd.f32 %v472, 1.0
    %v517 = vadd.f32 %v474, 1.0
    %v518 = vadd.f32 %v476, 1.0
    %v519 = vadd.f32 %v478, 1.0
    %v520 = vadd.f32 %v480, 1.0
    %v521 = vadd.f32 %v482, 1.0
    %v522 = vadd.f32 %v484, 1.0
    %v523 = vadd.f32 %v486, 1.0
    %v524 = vadd.f32 %v488, 1.0
    %v525 = vadd.f32 %v490, 1.0
    %v526 = vadd.f32 %v492, 1.0
    %v527 = vadd.f32 %v494, 1.0
    %v528 = vadd.f32 %v496, 1.0
    %v529 = vrcp.pop %v497
    %v530 = vrcp.pop %v498
    %v531 = vrcp.pop %v499
    %v532 = vrcp.pop %v500
    %v533 = vrcp.pop %v501
    %v534 = vrcp.pop %v502
    %v535 = vrcp.pop %v503
    %v536 = vrcp.pop %v504
    %v537 = vrcp.pop %v505
    %v538 = vrcp.pop %v506
    %v539 = vrcp.pop %v507
    %v540 = vrcp.pop %v508
    %v541 = vrcp.pop %v509
    %v542 = vrcp.pop %v510
    %v543 = vrcp.pop %v511
    %v544 = vrcp.pop %v512
    %v545 = vrcp.pop %v513
    %v546 = vrcp.pop %v514
    %v547 = vrcp.pop %v515
    %v548 = vrcp.pop %v516
    %v549 = vrcp.pop %v517
    %v550 = vrcp.pop %v518
    %v551 = vrcp.pop %v519
    %v552 = vrcp.pop %v520
    %v553 = vrcp.pop %v521
    %v554 = vrcp.pop %v522
    %v555 = vrcp.pop %v523
    %v556 = vrcp.pop %v524
    %v557 = vrcp.pop %v525
    %v558 = vrcp.pop %v526
    %v559 = vrcp.pop %v527
    %v560 = vrcp.pop %v528
    %v561 = vmul.f32 %v275, %v529
    %v562 = vmul.f32 %v278, %v530
    %v563 = vmul.f32 %v283, %v531
    %v564 = vmul.f32 %v286, %v532
    %v565 = vmul.f32 %v291, %v533
    %v566 = vmul.f32 %v294, %v534
    %v567 = vmul.f32 %v299, %v535
    %v568 = vmul.f32 %v302, %v536
    %v569 = vmul.f32 %v307, %v537
    %v570 = vmul.f32 %v310, %v538
    %v571 = vmul.f32 %v315, %v539
    %v572 = vmul.f32 %v318, %v540
    %v573 = vmul.f32 %v323, %v541
    %v574 = vmul.f32 %v326, %v542
    %v575 = vmul.f32 %v331, %v543
    %v576 = vmul.f32 %v334, %v544
    %v577 = vmul.f32 %v339, %v545
    %v578 = vmul.f32 %v342, %v546
    %v579 = vmul.f32 %v347, %v547
    %v580 = vmul.f32 %v350, %v548
    %v581 = vmul.f32 %v355, %v549
    %v582 = vmul.f32 %v358, %v550
    %v583 = vmul.f32 %v363, %v551
    %v584 = vmul.f32 %v366, %v552
    %v585 = vmul.f32 %v371, %v553
    %v586 = vmul.f32 %v374, %v554
    %v587 = vmul.f32 %v379, %v555
    %v588 = vmul.f32 %v382, %v556
    %v589 = vmul.f32 %v387, %v557
    %v590 = vmul.f32 %v390, %v558
    %v591 = vmul.f32 %v395, %v559
    %v592 = vmul.f32 %v398, %v560
    %593 = vmatprep.subr.mxu0 0.0
    %594 = vmatpush1.msra.mxu0 %v576
    %595 = vmatprep.subr.mxu0 0.0
    %596 = vmatpush1.msra.mxu0 %v575
    %597 = vmatprep.subr.mxu0 0.0
    %598 = vmatpush1.msra.mxu0 %v574
    %599 = vmatprep.subr.mxu0 0.0
    %600 = vmatpush1.msra.mxu0 %v573
    %601 = vmatprep.subr.mxu0 0.0
    %602 = vmatpush1.msra.mxu0 %v572
    %603 = vmatprep.subr.mxu0 0.0
    %604 = vmatpush1.msra.mxu0 %v571
    %605 = vmatprep.subr.mxu0 0.0
    %606 = vmatpush1.msra.mxu0 %v570
    %607 = vmatprep.subr.mxu0 0.0
    %608 = vmatpush1.msra.mxu0 %v569
    %609 = vmatprep.subr.mxu0 0.0
    %610 = vmatpush1.msra.mxu0 %v568
    %611 = vmatprep.subr.mxu0 0.0
    %612 = vmatpush1.msra.mxu0 %v567
    %613 = vmatprep.subr.mxu0 0.0
    %614 = vmatpush1.msra.mxu0 %v566
    %615 = vmatprep.subr.mxu0 0.0
    %616 = vmatpush1.msra.mxu0 %v565
    %617 = vmatprep.subr.mxu0 0.0
    %618 = vmatpush1.msra.mxu0 %v564
    %619 = vmatprep.subr.mxu0 0.0
    %620 = vmatpush1.msra.mxu0 %v563
    %621 = vmatprep.subr.mxu0 0.0
    %622 = vmatpush1.msra.mxu0 %v562
    %623 = vmatprep.subr.mxu0 0.0
    %624 = vmatpush1.msra.mxu0 %v561
    %625 = vmatprep.subr.mxu0 0.0
    %626 = vmatpush2.msra.mxu0 %v592
    %627 = vmatprep.subr.mxu0 0.0
    %628 = vmatpush2.msra.mxu0 %v591
    %629 = vmatprep.subr.mxu0 0.0
    %630 = vmatpush2.msra.mxu0 %v590
    %631 = vmatprep.subr.mxu0 0.0
    %632 = vmatpush2.msra.mxu0 %v589
    %633 = vmatprep.subr.mxu0 0.0
    %634 = vmatpush2.msra.mxu0 %v588
    %635 = vmatprep.subr.mxu0 0.0
    %636 = vmatpush2.msra.mxu0 %v587
    %637 = vmatprep.subr.mxu0 0.0
    %638 = vmatpush2.msra.mxu0 %v586
    %639 = vmatprep.subr.mxu0 0.0
    %640 = vmatpush2.msra.mxu0 %v585
    %641 = vmatprep.subr.mxu0 0.0
    %642 = vmatpush2.msra.mxu0 %v584
    %643 = vmatprep.subr.mxu0 0.0
    %644 = vmatpush2.msra.mxu0 %v583
    %645 = vmatprep.subr.mxu0 0.0
    %646 = vmatpush2.msra.mxu0 %v582
    %647 = vmatprep.subr.mxu0 0.0
    %648 = vmatpush2.msra.mxu0 %v581
    %649 = vmatprep.subr.mxu0 0.0
    %650 = vmatpush2.msra.mxu0 %v580
    %651 = vmatprep.subr.mxu0 0.0
    %652 = vmatpush2.msra.mxu0 %v579
    %653 = vmatprep.subr.mxu0 0.0
    %654 = vmatpush2.msra.mxu0 %v578
    %655 = vmatprep.subr.mxu0 0.0
    %656 = vmatpush2.msra.mxu0 %v577
    %657 = vmatprep.mubr.f32.mxu0 %v65
    %658 = vmatmul.mubr.f32.gmra.mxu0 %v64
    %v659 = vpop.f32.mrf.mxu0
    %v660 = vadd.f32 0.0, %v659
    %v661 = vpop.f32.mrf.mxu0
    %662 = vmatprep.mubr.f32.mxu0 %v67
    %663 = vmatmul.mubr.f32.gmra.mxu0 %v66
    %v664 = vpop.f32.mrf.mxu0
    %v665 = vadd.f32 0.0, %v664
    %v666 = vpop.f32.mrf.mxu0
    %667 = vmatprep.mubr.f32.mxu0 %v69
    %668 = vmatmul.mubr.f32.gmra.mxu0 %v68
    %v669 = vpop.f32.mrf.mxu0
    %v670 = vadd.f32 0.0, %v669
    %v671 = vpop.f32.mrf.mxu0
    %672 = vmatprep.mubr.f32.mxu0 %v71
    %673 = vmatmul.mubr.f32.gmra.mxu0 %v70
    %v674 = vpop.f32.mrf.mxu0
    %v675 = vadd.f32 0.0, %v674
    %v676 = vpop.f32.mrf.mxu0
    %677 = vmatprep.mubr.f32.mxu0 %v73
    %678 = vmatmul.mubr.f32.gmra.mxu0 %v72
    %v679 = vpop.f32.mrf.mxu0
    %v680 = vadd.f32 0.0, %v679
    %v681 = vpop.f32.mrf.mxu0
    %682 = vmatprep.mubr.f32.mxu0 %v75
    %683 = vmatmul.mubr.f32.gmra.mxu0 %v74
    %v684 = vpop.f32.mrf.mxu0
    %v685 = vadd.f32 0.0, %v684
    %v686 = vpop.f32.mrf.mxu0
    %687 = vmatprep.mubr.f32.mxu0 %v77
    %688 = vmatmul.mubr.f32.gmra.mxu0 %v76
    %v689 = vpop.f32.mrf.mxu0
    %v690 = vadd.f32 0.0, %v689
    %v691 = vpop.f32.mrf.mxu0
    %692 = vmatprep.mubr.f32.mxu0 %v79
    %693 = vmatmul.mubr.f32.gmra.mxu0 %v78
    %v694 = vpop.f32.mrf.mxu0
    %v695 = vadd.f32 0.0, %v694
    %v696 = vpop.f32.mrf.mxu0
    %697 = vmatprep.mubr.f32.mxu0 %v81
    %698 = vmatmul.mubr.f32.gmra.mxu0 %v80
    %v699 = vpop.f32.mrf.mxu0
    %v700 = vadd.f32 0.0, %v699
    %v701 = vpop.f32.mrf.mxu0
    %702 = vmatprep.mubr.f32.mxu0 %v83
    %703 = vmatmul.mubr.f32.gmra.mxu0 %v82
    %v704 = vpop.f32.mrf.mxu0
    %v705 = vadd.f32 0.0, %v704
    %v706 = vpop.f32.mrf.mxu0
    %707 = vmatprep.mubr.f32.mxu0 %v85
    %708 = vmatmul.mubr.f32.gmra.mxu0 %v84
    %v709 = vpop.f32.mrf.mxu0
    %v710 = vadd.f32 0.0, %v709
    %v711 = vpop.f32.mrf.mxu0
    %712 = vmatprep.mubr.f32.mxu0 %v87
    %713 = vmatmul.mubr.f32.gmra.mxu0 %v86
    %v714 = vpop.f32.mrf.mxu0
    %v715 = vadd.f32 0.0, %v714
    %v716 = vpop.f32.mrf.mxu0
    %717 = vmatprep.mubr.f32.mxu0 %v89
    %718 = vmatmul.mubr.f32.gmra.mxu0 %v88
    %v719 = vpop.f32.mrf.mxu0
    %v720 = vadd.f32 0.0, %v719
    %v721 = vpop.f32.mrf.mxu0
    %722 = vmatprep.mubr.f32.mxu0 %v91
    %723 = vmatmul.mubr.f32.gmra.mxu0 %v90
    %v724 = vpop.f32.mrf.mxu0
    %v725 = vadd.f32 0.0, %v724
    %v726 = vpop.f32.mrf.mxu0
    %727 = vmatprep.mubr.f32.mxu0 %v93
    %728 = vmatmul.mubr.f32.gmra.mxu0 %v92
    %v729 = vpop.f32.mrf.mxu0
    %v730 = vadd.f32 0.0, %v729
    %v731 = vpop.f32.mrf.mxu0
    %732 = vmatprep.mubr.f32.mxu0 %v95
    %733 = vmatmul.mubr.f32.gmra.mxu0 %v94
    %v734 = vpop.f32.mrf.mxu0
    %v735 = vadd.f32 0.0, %v734
    %v736 = vpop.f32.mrf.mxu0
    %737 = vmatprep.mubr.f32.mxu0 %v97
    %738 = vmatmul.mubr.f32.gmra.mxu0 %v96
    %v739 = vpop.f32.mrf.mxu0
    %v740 = vadd.f32 0.0, %v739
    %v741 = vpop.f32.mrf.mxu0
    %742 = vmatprep.mubr.f32.mxu0 %v99
    %743 = vmatmul.mubr.f32.gmra.mxu0 %v98
    %v744 = vpop.f32.mrf.mxu0
    %v745 = vadd.f32 0.0, %v744
    %v746 = vpop.f32.mrf.mxu0
    %747 = vmatprep.mubr.f32.mxu0 %v101
    %748 = vmatmul.mubr.f32.gmra.mxu0 %v100
    %v749 = vpop.f32.mrf.mxu0
    %v750 = vadd.f32 0.0, %v749
    %v751 = vpop.f32.mrf.mxu0
    %752 = vmatprep.mubr.f32.mxu0 %v103
    %753 = vmatmul.mubr.f32.gmra.mxu0 %v102
    %v754 = vpop.f32.mrf.mxu0
    %v755 = vadd.f32 0.0, %v754
    %v756 = vpop.f32.mrf.mxu0
    %757 = vmatprep.mubr.f32.mxu0 %v105
    %758 = vmatmul.mubr.f32.gmra.mxu0 %v104
    %v759 = vpop.f32.mrf.mxu0
    %v760 = vadd.f32 0.0, %v759
    %v761 = vpop.f32.mrf.mxu0
    %762 = vmatprep.mubr.f32.mxu0 %v107
    %763 = vmatmul.mubr.f32.gmra.mxu0 %v106
    %v764 = vpop.f32.mrf.mxu0
    %v765 = vadd.f32 0.0, %v764
    %v766 = vpop.f32.mrf.mxu0
    %767 = vmatprep.mubr.f32.mxu0 %v109
    %768 = vmatmul.mubr.f32.gmra.mxu0 %v108
    %v769 = vpop.f32.mrf.mxu0
    %v770 = vadd.f32 0.0, %v769
    %v771 = vpop.f32.mrf.mxu0
    %772 = vmatprep.mubr.f32.mxu0 %v111
    %773 = vmatmul.mubr.f32.gmra.mxu0 %v110
    %v774 = vpop.f32.mrf.mxu0
    %v775 = vadd.f32 0.0, %v774
    %v776 = vpop.f32.mrf.mxu0
    %777 = vmatprep.mubr.f32.mxu0 %v113
    %778 = vmatmul.mubr.f32.gmra.mxu0 %v112
    %v779 = vpop.f32.mrf.mxu0
    %v780 = vadd.f32 0.0, %v779
    %v781 = vpop.f32.mrf.mxu0
    %782 = vmatprep.mubr.f32.mxu0 %v115
    %783 = vmatmul.mubr.f32.gmra.mxu0 %v114
    %v784 = vpop.f32.mrf.mxu0
    %v785 = vadd.f32 0.0, %v784
    %v786 = vpop.f32.mrf.mxu0
    %787 = vmatprep.mubr.f32.mxu0 %v117
    %788 = vmatmul.mubr.f32.gmra.mxu0 %v116
    %v789 = vpop.f32.mrf.mxu0
    %v790 = vadd.f32 0.0, %v789
    %v791 = vpop.f32.mrf.mxu0
    %792 = vmatprep.mubr.f32.mxu0 %v119
    %793 = vmatmul.mubr.f32.gmra.mxu0 %v118
    %v794 = vpop.f32.mrf.mxu0
    %v795 = vadd.f32 0.0, %v794
    %v796 = vpop.f32.mrf.mxu0
    %797 = vmatprep.mubr.f32.mxu0 %v121
    %798 = vmatmul.mubr.f32.gmra.mxu0 %v120
    %v799 = vpop.f32.mrf.mxu0
    %v800 = vadd.f32 0.0, %v799
    %v801 = vpop.f32.mrf.mxu0
    %802 = vmatprep.mubr.f32.mxu0 %v123
    %803 = vmatmul.mubr.f32.gmra.mxu0 %v122
    %v804 = vpop.f32.mrf.mxu0
    %v805 = vadd.f32 0.0, %v804
    %v806 = vpop.f32.mrf.mxu0
    %807 = vmatprep.mubr.f32.mxu0 %v125
    %808 = vmatmul.mubr.f32.gmra.mxu0 %v124
    %v809 = vpop.f32.mrf.mxu0
    %v810 = vadd.f32 0.0, %v809
    %v811 = vpop.f32.mrf.mxu0
    %812 = vmatprep.mubr.f32.mxu0 %v127
    %813 = vmatmul.mubr.f32.gmra.mxu0 %v126
    %v814 = vpop.f32.mrf.mxu0
    %v815 = vadd.f32 0.0, %v814
    %v816 = vpop.f32.mrf.mxu0
    %817 = vdwg.mxu0
    %v818 = vpack.c.bf16 %v665, %v660
    %v819 = vpack.c.bf16 %v675, %v670
    %v820 = vpack.c.bf16 %v685, %v680
    %v821 = vpack.c.bf16 %v695, %v690
    %v822 = vpack.c.bf16 %v705, %v700
    %v823 = vpack.c.bf16 %v715, %v710
    %v824 = vpack.c.bf16 %v725, %v720
    %v825 = vpack.c.bf16 %v735, %v730
    %v826 = vpack.c.bf16 %v745, %v740
    %v827 = vpack.c.bf16 %v755, %v750
    %v828 = vpack.c.bf16 %v765, %v760
    %v829 = vpack.c.bf16 %v775, %v770
    %v830 = vpack.c.bf16 %v785, %v780
    %v831 = vpack.c.bf16 %v795, %v790
    %v832 = vpack.c.bf16 %v805, %v800
    %v833 = vpack.c.bf16 %v815, %v810
    %v834 = vld [vmem:[%s4] sm:$0xf]
    %v835 = vld [vmem:[%s4 + $0x4] sm:$0xf]
    %v836 = vld [vmem:[%s4 + $0x8] sm:$0xf]
    %v837 = vld [vmem:[%s4 + $0xc] sm:$0xf]
    %v838 = vld [vmem:[%s4 + $0x10] sm:$0xf]
    %v839 = vld [vmem:[%s4 + $0x14] sm:$0xf]
    %v840 = vld [vmem:[%s4 + $0x18] sm:$0xf]
    %v841 = vld [vmem:[%s4 + $0x1c] sm:$0xf]
    %v842 = vld [vmem:[%s4 + $0x20] sm:$0xf]
    %v843 = vld [vmem:[%s4 + $0x24] sm:$0xf]
    %v844 = vld [vmem:[%s4 + $0x28] sm:$0xf]
    %v845 = vld [vmem:[%s4 + $0x2c] sm:$0xf]
    %v846 = vld [vmem:[%s4 + $0x30] sm:$0xf]
    %v847 = vld [vmem:[%s4 + $0x34] sm:$0xf]
    %v848 = vld [vmem:[%s4 + $0x38] sm:$0xf]
    %v849 = vld [vmem:[%s4 + $0x3c] sm:$0xf]
    %v850 = vld [vmem:[%s5] sm:$0x1]
    %v852 = vlaneseq
    %v853 = vshrl.u32 %v852, 7
    %v854 = vsub.s32 0, %v853
    %v855 = vrot.slane %v850, %v854
    %v873 = vunpack.c.l.b16 %v834
    %v874 = vunpack.c.l.b16 %v835
    %v875 = vunpack.c.l.b16 %v836
    %v876 = vunpack.c.l.b16 %v837
    %v877 = vunpack.c.l.b16 %v838
    %v878 = vunpack.c.l.b16 %v839
    %v879 = vunpack.c.l.b16 %v840
    %v880 = vunpack.c.l.b16 %v841
    %v881 = vunpack.c.l.b16 %v842
    %v882 = vunpack.c.l.b16 %v843
    %v883 = vunpack.c.l.b16 %v844
    %v884 = vunpack.c.l.b16 %v845
    %v885 = vunpack.c.l.b16 %v846
    %v886 = vunpack.c.l.b16 %v847
    %v887 = vunpack.c.l.b16 %v848
    %v888 = vunpack.c.l.b16 %v849
    %v889 = vpack.c.b16 %v874, %v873
    %v890 = vpack.c.b16 %v876, %v875
    %v891 = vpack.c.b16 %v878, %v877
    %v892 = vpack.c.b16 %v880, %v879
    %v893 = vpack.c.b16 %v882, %v881
    %v894 = vpack.c.b16 %v884, %v883
    %v895 = vpack.c.b16 %v886, %v885
    %v896 = vpack.c.b16 %v888, %v887
    %905 = vmatprep.subr.bf16.mxu0 0
    %906 = vmatpush1.bf16.msra.mxu0 %v896
    %907 = vmatprep.subr.bf16.mxu0 0
    %908 = vmatpush1.bf16.msra.mxu0 %v895
    %909 = vmatprep.subr.bf16.mxu0 0
    %910 = vmatpush1.bf16.msra.mxu0 %v894
    %911 = vmatprep.subr.bf16.mxu0 0
    %912 = vmatpush1.bf16.msra.mxu0 %v893
    %913 = vmatprep.subr.bf16.mxu0 0
    %914 = vmatpush1.bf16.msra.mxu0 %v892
    %915 = vmatprep.subr.bf16.mxu0 0
    %916 = vmatpush1.bf16.msra.mxu0 %v891
    %917 = vmatprep.subr.bf16.mxu0 0
    %918 = vmatpush1.bf16.msra.mxu0 %v890
    %919 = vmatprep.subr.bf16.mxu0 0
    %920 = vmatpush1.bf16.msra.mxu0 %v889
    %921 = vmatprep.subr.bf16.mxu0 0
    %922 = vmatpush2.bf16.msra.mxu0 0
    %923 = vmatprep.subr.bf16.mxu0 0
    %924 = vmatpush2.bf16.msra.mxu0 0
    %925 = vmatprep.subr.bf16.mxu0 0
    %926 = vmatpush2.bf16.msra.mxu0 0
    %927 = vmatprep.subr.bf16.mxu0 0
    %928 = vmatpush2.bf16.msra.mxu0 0
    %929 = vmatprep.subr.bf16.mxu0 0
    %930 = vmatpush2.bf16.msra.mxu0 0
    %931 = vmatprep.subr.bf16.mxu0 0
    %932 = vmatpush2.bf16.msra.mxu0 0
    %933 = vmatprep.subr.bf16.mxu0 0
    %934 = vmatpush2.bf16.msra.mxu0 0
    %935 = vmatprep.subr.bf16.mxu0 0
    %936 = vmatpush2.bf16.msra.mxu0 0
    %937 = vmatprep.mubr.bf16.mxu0 0
    %938 = vmatmul.mubr.bf16.gmra.mxu0 %v818
    %v939 = vpop.f32.mrf.mxu0
    %v940 = vadd.f32 %v855, %v939
    %v941 = vpop.f32.mrf.mxu0
    %v942 = vpop.f32.mrf.mxu0
    %v943 = vadd.f32 %v855, %v942
    %v944 = vpop.f32.mrf.mxu0
    %945 = vmatprep.mubr.bf16.mxu0 0
    %946 = vmatmul.mubr.bf16.gmra.mxu0 %v819
    %v947 = vpop.f32.mrf.mxu0
    %v948 = vadd.f32 %v855, %v947
    %v949 = vpop.f32.mrf.mxu0
    %v950 = vpop.f32.mrf.mxu0
    %v951 = vadd.f32 %v855, %v950
    %v952 = vpop.f32.mrf.mxu0
    %953 = vmatprep.mubr.bf16.mxu0 0
    %954 = vmatmul.mubr.bf16.gmra.mxu0 %v820
    %v955 = vpop.f32.mrf.mxu0
    %v956 = vadd.f32 %v855, %v955
    %v957 = vpop.f32.mrf.mxu0
    %v958 = vpop.f32.mrf.mxu0
    %v959 = vadd.f32 %v855, %v958
    %v960 = vpop.f32.mrf.mxu0
    %961 = vmatprep.mubr.bf16.mxu0 0
    %962 = vmatmul.mubr.bf16.gmra.mxu0 %v821
    %v963 = vpop.f32.mrf.mxu0
    %v964 = vadd.f32 %v855, %v963
    %v965 = vpop.f32.mrf.mxu0
    %v966 = vpop.f32.mrf.mxu0
    %v967 = vadd.f32 %v855, %v966
    %v968 = vpop.f32.mrf.mxu0
    %969 = vmatprep.mubr.bf16.mxu0 0
    %970 = vmatmul.mubr.bf16.gmra.mxu0 %v822
    %v971 = vpop.f32.mrf.mxu0
    %v972 = vadd.f32 %v855, %v971
    %v973 = vpop.f32.mrf.mxu0
    %v974 = vpop.f32.mrf.mxu0
    %v975 = vadd.f32 %v855, %v974
    %v976 = vpop.f32.mrf.mxu0
    %977 = vmatprep.mubr.bf16.mxu0 0
    %978 = vmatmul.mubr.bf16.gmra.mxu0 %v823
    %v979 = vpop.f32.mrf.mxu0
    %v980 = vadd.f32 %v855, %v979
    %v981 = vpop.f32.mrf.mxu0
    %v982 = vpop.f32.mrf.mxu0
    %v983 = vadd.f32 %v855, %v982
    %v984 = vpop.f32.mrf.mxu0
    %985 = vmatprep.mubr.bf16.mxu0 0
    %986 = vmatmul.mubr.bf16.gmra.mxu0 %v824
    %v987 = vpop.f32.mrf.mxu0
    %v988 = vadd.f32 %v855, %v987
    %v989 = vpop.f32.mrf.mxu0
    %v990 = vpop.f32.mrf.mxu0
    %v991 = vadd.f32 %v855, %v990
    %v992 = vpop.f32.mrf.mxu0
    %993 = vmatprep.mubr.bf16.mxu0 0
    %994 = vmatmul.mubr.bf16.gmra.mxu0 %v825
    %v995 = vpop.f32.mrf.mxu0
    %v996 = vadd.f32 %v855, %v995
    %v997 = vpop.f32.mrf.mxu0
    %v998 = vpop.f32.mrf.mxu0
    %v999 = vadd.f32 %v855, %v998
    %v1000 = vpop.f32.mrf.mxu0
    %1001 = vmatprep.mubr.bf16.mxu0 0
    %1002 = vmatmul.mubr.bf16.gmra.mxu0 %v826
    %v1003 = vpop.f32.mrf.mxu0
    %v1004 = vadd.f32 %v855, %v1003
    %v1005 = vpop.f32.mrf.mxu0
    %v1006 = vpop.f32.mrf.mxu0
    %v1007 = vadd.f32 %v855, %v1006
    %v1008 = vpop.f32.mrf.mxu0
    %1009 = vmatprep.mubr.bf16.mxu0 0
    %1010 = vmatmul.mubr.bf16.gmra.mxu0 %v827
    %v1011 = vpop.f32.mrf.mxu0
    %v1012 = vadd.f32 %v855, %v1011
    %v1013 = vpop.f32.mrf.mxu0
    %v1014 = vpop.f32.mrf.mxu0
    %v1015 = vadd.f32 %v855, %v1014
    %v1016 = vpop.f32.mrf.mxu0
    %1017 = vmatprep.mubr.bf16.mxu0 0
    %1018 = vmatmul.mubr.bf16.gmra.mxu0 %v828
    %v1019 = vpop.f32.mrf.mxu0
    %v1020 = vadd.f32 %v855, %v1019
    %v1021 = vpop.f32.mrf.mxu0
    %v1022 = vpop.f32.mrf.mxu0
    %v1023 = vadd.f32 %v855, %v1022
    %v1024 = vpop.f32.mrf.mxu0
    %1025 = vmatprep.mubr.bf16.mxu0 0
    %1026 = vmatmul.mubr.bf16.gmra.mxu0 %v829
    %v1027 = vpop.f32.mrf.mxu0
    %v1028 = vadd.f32 %v855, %v1027
    %v1029 = vpop.f32.mrf.mxu0
    %v1030 = vpop.f32.mrf.mxu0
    %v1031 = vadd.f32 %v855, %v1030
    %v1032 = vpop.f32.mrf.mxu0
    %1033 = vmatprep.mubr.bf16.mxu0 0
    %1034 = vmatmul.mubr.bf16.gmra.mxu0 %v830
    %v1035 = vpop.f32.mrf.mxu0
    %v1036 = vadd.f32 %v855, %v1035
    %v1037 = vpop.f32.mrf.mxu0
    %v1038 = vpop.f32.mrf.mxu0
    %v1039 = vadd.f32 %v855, %v1038
    %v1040 = vpop.f32.mrf.mxu0
    %1041 = vmatprep.mubr.bf16.mxu0 0
    %1042 = vmatmul.mubr.bf16.gmra.mxu0 %v831
    %v1043 = vpop.f32.mrf.mxu0
    %v1044 = vadd.f32 %v855, %v1043
    %v1045 = vpop.f32.mrf.mxu0
    %v1046 = vpop.f32.mrf.mxu0
    %v1047 = vadd.f32 %v855, %v1046
    %v1048 = vpop.f32.mrf.mxu0
    %1049 = vmatprep.mubr.bf16.mxu0 0
    %1050 = vmatmul.mubr.bf16.gmra.mxu0 %v832
    %v1051 = vpop.f32.mrf.mxu0
    %v1052 = vadd.f32 %v855, %v1051
    %v1053 = vpop.f32.mrf.mxu0
    %v1054 = vpop.f32.mrf.mxu0
    %v1055 = vadd.f32 %v855, %v1054
    %v1056 = vpop.f32.mrf.mxu0
    %1057 = vmatprep.mubr.bf16.mxu0 0
    %1058 = vmatmul.mubr.bf16.gmra.mxu0 %v833
    %v1059 = vpop.f32.mrf.mxu0
    %v1060 = vadd.f32 %v855, %v1059
    %v1061 = vpop.f32.mrf.mxu0
    %v1062 = vpop.f32.mrf.mxu0
    %v1063 = vadd.f32 %v855, %v1062
    %v1064 = vpop.f32.mrf.mxu0
    %1065 = vdwg.mxu0
    %v1066 = vsub.f32 0.0, %v940
    %v1067 = vsub.f32 0.0, %v943
    %v1068 = vsub.f32 0.0, %v948
    %v1069 = vsub.f32 0.0, %v951
    %v1070 = vsub.f32 0.0, %v956
    %v1071 = vsub.f32 0.0, %v959
    %v1072 = vsub.f32 0.0, %v964
    %v1073 = vsub.f32 0.0, %v967
    %v1074 = vsub.f32 0.0, %v972
    %v1075 = vsub.f32 0.0, %v975
    %v1076 = vsub.f32 0.0, %v980
    %v1077 = vsub.f32 0.0, %v983
    %v1078 = vsub.f32 0.0, %v988
    %v1079 = vsub.f32 0.0, %v991
    %v1080 = vsub.f32 0.0, %v996
    %v1081 = vsub.f32 0.0, %v999
    %v1082 = vsub.f32 0.0, %v1004
    %v1083 = vsub.f32 0.0, %v1007
    %v1084 = vsub.f32 0.0, %v1012
    %v1085 = vsub.f32 0.0, %v1015
    %v1086 = vsub.f32 0.0, %v1020
    %v1087 = vsub.f32 0.0, %v1023
    %v1088 = vsub.f32 0.0, %v1028
    %v1089 = vsub.f32 0.0, %v1031
    %v1090 = vsub.f32 0.0, %v1036
    %v1091 = vsub.f32 0.0, %v1039
    %v1092 = vsub.f32 0.0, %v1044
    %v1093 = vsub.f32 0.0, %v1047
    %v1094 = vsub.f32 0.0, %v1052
    %v1095 = vsub.f32 0.0, %v1055
    %v1096 = vsub.f32 0.0, %v1060
    %v1097 = vsub.f32 0.0, %v1063
    %v1098 = vmul.f32 %v1066, 1.442695
    %v1099 = vpow.pop %v1098
    %v1100 = vmul.f32 %v1067, 1.442695
    %v1101 = vpow.pop %v1100
    %v1102 = vmul.f32 %v1068, 1.442695
    %v1103 = vpow.pop %v1102
    %v1104 = vmul.f32 %v1069, 1.442695
    %v1105 = vpow.pop %v1104
    %v1106 = vmul.f32 %v1070, 1.442695
    %v1107 = vpow.pop %v1106
    %v1108 = vmul.f32 %v1071, 1.442695
    %v1109 = vpow.pop %v1108
    %v1110 = vmul.f32 %v1072, 1.442695
    %v1111 = vpow.pop %v1110
    %v1112 = vmul.f32 %v1073, 1.442695
    %v1113 = vpow.pop %v1112
    %v1114 = vmul.f32 %v1074, 1.442695
    %v1115 = vpow.pop %v1114
    %v1116 = vmul.f32 %v1075, 1.442695
    %v1117 = vpow.pop %v1116
    %v1118 = vmul.f32 %v1076, 1.442695
    %v1119 = vpow.pop %v1118
    %v1120 = vmul.f32 %v1077, 1.442695
    %v1121 = vpow.pop %v1120
    %v1122 = vmul.f32 %v1078, 1.442695
    %v1123 = vpow.pop %v1122
    %v1124 = vmul.f32 %v1079, 1.442695
    %v1125 = vpow.pop %v1124
    %v1126 = vmul.f32 %v1080, 1.442695
    %v1127 = vpow.pop %v1126
    %v1128 = vmul.f32 %v1081, 1.442695
    %v1129 = vpow.pop %v1128
    %v1130 = vmul.f32 %v1082, 1.442695
    %v1131 = vpow.pop %v1130
    %v1132 = vmul.f32 %v1083, 1.442695
    %v1133 = vpow.pop %v1132
    %v1134 = vmul.f32 %v1084, 1.442695
    %v1135 = vpow.pop %v1134
    %v1136 = vmul.f32 %v1085, 1.442695
    %v1137 = vpow.pop %v1136
    %v1138 = vmul.f32 %v1086, 1.442695
    %v1139 = vpow.pop %v1138
    %v1140 = vmul.f32 %v1087, 1.442695
    %v1141 = vpow.pop %v1140
    %v1142 = vmul.f32 %v1088, 1.442695
    %v1143 = vpow.pop %v1142
    %v1144 = vmul.f32 %v1089, 1.442695
    %v1145 = vpow.pop %v1144
    %v1146 = vmul.f32 %v1090, 1.442695
    %v1147 = vpow.pop %v1146
    %v1148 = vmul.f32 %v1091, 1.442695
    %v1149 = vpow.pop %v1148
    %v1150 = vmul.f32 %v1092, 1.442695
    %v1151 = vpow.pop %v1150
    %v1152 = vmul.f32 %v1093, 1.442695
    %v1153 = vpow.pop %v1152
    %v1154 = vmul.f32 %v1094, 1.442695
    %v1155 = vpow.pop %v1154
    %v1156 = vmul.f32 %v1095, 1.442695
    %v1157 = vpow.pop %v1156
    %v1158 = vmul.f32 %v1096, 1.442695
    %v1159 = vpow.pop %v1158
    %v1160 = vmul.f32 %v1097, 1.442695
    %v1161 = vpow.pop %v1160
    %v1162 = vadd.f32 %v1099, 1.0
    %v1163 = vadd.f32 %v1101, 1.0
    %v1164 = vadd.f32 %v1103, 1.0
    %v1165 = vadd.f32 %v1105, 1.0
    %v1166 = vadd.f32 %v1107, 1.0
    %v1167 = vadd.f32 %v1109, 1.0
    %v1168 = vadd.f32 %v1111, 1.0
    %v1169 = vadd.f32 %v1113, 1.0
    %v1170 = vadd.f32 %v1115, 1.0
    %v1171 = vadd.f32 %v1117, 1.0
    %v1172 = vadd.f32 %v1119, 1.0
    %v1173 = vadd.f32 %v1121, 1.0
    %v1174 = vadd.f32 %v1123, 1.0
    %v1175 = vadd.f32 %v1125, 1.0
    %v1176 = vadd.f32 %v1127, 1.0
    %v1177 = vadd.f32 %v1129, 1.0
    %v1178 = vadd.f32 %v1131, 1.0
    %v1179 = vadd.f32 %v1133, 1.0
    %v1180 = vadd.f32 %v1135, 1.0
    %v1181 = vadd.f32 %v1137, 1.0
    %v1182 = vadd.f32 %v1139, 1.0
    %v1183 = vadd.f32 %v1141, 1.0
    %v1184 = vadd.f32 %v1143, 1.0
    %v1185 = vadd.f32 %v1145, 1.0
    %v1186 = vadd.f32 %v1147, 1.0
    %v1187 = vadd.f32 %v1149, 1.0
    %v1188 = vadd.f32 %v1151, 1.0
    %v1189 = vadd.f32 %v1153, 1.0
    %v1190 = vadd.f32 %v1155, 1.0
    %v1191 = vadd.f32 %v1157, 1.0
    %v1192 = vadd.f32 %v1159, 1.0
    %v1193 = vadd.f32 %v1161, 1.0
    %v1194 = vrcp.pop %v1162
    %v1195 = vrcp.pop %v1163
    %v1196 = vrcp.pop %v1164
    %v1197 = vrcp.pop %v1165
    %v1198 = vrcp.pop %v1166
    %v1199 = vrcp.pop %v1167
    %v1200 = vrcp.pop %v1168
    %v1201 = vrcp.pop %v1169
    %v1202 = vrcp.pop %v1170
    %v1203 = vrcp.pop %v1171
    %v1204 = vrcp.pop %v1172
    %v1205 = vrcp.pop %v1173
    %v1206 = vrcp.pop %v1174
    %v1207 = vrcp.pop %v1175
    %v1208 = vrcp.pop %v1176
    %v1209 = vrcp.pop %v1177
    %v1210 = vrcp.pop %v1178
    %v1211 = vrcp.pop %v1179
    %v1212 = vrcp.pop %v1180
    %v1213 = vrcp.pop %v1181
    %v1214 = vrcp.pop %v1182
    %v1215 = vrcp.pop %v1183
    %v1216 = vrcp.pop %v1184
    %v1217 = vrcp.pop %v1185
    %v1218 = vrcp.pop %v1186
    %v1219 = vrcp.pop %v1187
    %v1220 = vrcp.pop %v1188
    %v1221 = vrcp.pop %v1189
    %v1222 = vrcp.pop %v1190
    %v1223 = vrcp.pop %v1191
    %v1224 = vrcp.pop %v1192
    %v1225 = vrcp.pop %v1193
    %v1226 = vmul.f32 %v940, %v1194
    %v1227 = vmul.f32 %v943, %v1195
    %v1228 = vmul.f32 %v948, %v1196
    %v1229 = vmul.f32 %v951, %v1197
    %v1230 = vmul.f32 %v956, %v1198
    %v1231 = vmul.f32 %v959, %v1199
    %v1232 = vmul.f32 %v964, %v1200
    %v1233 = vmul.f32 %v967, %v1201
    %v1234 = vmul.f32 %v972, %v1202
    %v1235 = vmul.f32 %v975, %v1203
    %v1236 = vmul.f32 %v980, %v1204
    %v1237 = vmul.f32 %v983, %v1205
    %v1238 = vmul.f32 %v988, %v1206
    %v1239 = vmul.f32 %v991, %v1207
    %v1240 = vmul.f32 %v996, %v1208
    %v1241 = vmul.f32 %v999, %v1209
    %v1242 = vmul.f32 %v1004, %v1210
    %v1243 = vmul.f32 %v1007, %v1211
    %v1244 = vmul.f32 %v1012, %v1212
    %v1245 = vmul.f32 %v1015, %v1213
    %v1246 = vmul.f32 %v1020, %v1214
    %v1247 = vmul.f32 %v1023, %v1215
    %v1248 = vmul.f32 %v1028, %v1216
    %v1249 = vmul.f32 %v1031, %v1217
    %v1250 = vmul.f32 %v1036, %v1218
    %v1251 = vmul.f32 %v1039, %v1219
    %v1252 = vmul.f32 %v1044, %v1220
    %v1253 = vmul.f32 %v1047, %v1221
    %v1254 = vmul.f32 %v1052, %v1222
    %v1255 = vmul.f32 %v1055, %v1223
    %v1256 = vmul.f32 %v1060, %v1224
    %v1257 = vmul.f32 %v1063, %v1225
    %1258 = vmatprep.subr.mxu0 0.0
    %1259 = vmatpush1.msra.mxu0 %v1241
    %1260 = vmatprep.subr.mxu0 0.0
    %1261 = vmatpush1.msra.mxu0 %v1240
    %1262 = vmatprep.subr.mxu0 0.0
    %1263 = vmatpush1.msra.mxu0 %v1239
    %1264 = vmatprep.subr.mxu0 0.0
    %1265 = vmatpush1.msra.mxu0 %v1238
    %1266 = vmatprep.subr.mxu0 0.0
    %1267 = vmatpush1.msra.mxu0 %v1237
    %1268 = vmatprep.subr.mxu0 0.0
    %1269 = vmatpush1.msra.mxu0 %v1236
    %1270 = vmatprep.subr.mxu0 0.0
    %1271 = vmatpush1.msra.mxu0 %v1235
    %1272 = vmatprep.subr.mxu0 0.0
    %1273 = vmatpush1.msra.mxu0 %v1234
    %1274 = vmatprep.subr.mxu0 0.0
    %1275 = vmatpush1.msra.mxu0 %v1233
    %1276 = vmatprep.subr.mxu0 0.0
    %1277 = vmatpush1.msra.mxu0 %v1232
    %1278 = vmatprep.subr.mxu0 0.0
    %1279 = vmatpush1.msra.mxu0 %v1231
    %1280 = vmatprep.subr.mxu0 0.0
    %1281 = vmatpush1.msra.mxu0 %v1230
    %1282 = vmatprep.subr.mxu0 0.0
    %1283 = vmatpush1.msra.mxu0 %v1229
    %1284 = vmatprep.subr.mxu0 0.0
    %1285 = vmatpush1.msra.mxu0 %v1228
    %1286 = vmatprep.subr.mxu0 0.0
    %1287 = vmatpush1.msra.mxu0 %v1227
    %1288 = vmatprep.subr.mxu0 0.0
    %1289 = vmatpush1.msra.mxu0 %v1226
    %1290 = vmatprep.subr.mxu0 0.0
    %1291 = vmatpush2.msra.mxu0 %v1257
    %1292 = vmatprep.subr.mxu0 0.0
    %1293 = vmatpush2.msra.mxu0 %v1256
    %1294 = vmatprep.subr.mxu0 0.0
    %1295 = vmatpush2.msra.mxu0 %v1255
    %1296 = vmatprep.subr.mxu0 0.0
    %1297 = vmatpush2.msra.mxu0 %v1254
    %1298 = vmatprep.subr.mxu0 0.0
    %1299 = vmatpush2.msra.mxu0 %v1253
    %1300 = vmatprep.subr.mxu0 0.0
    %1301 = vmatpush2.msra.mxu0 %v1252
    %1302 = vmatprep.subr.mxu0 0.0
    %1303 = vmatpush2.msra.mxu0 %v1251
    %1304 = vmatprep.subr.mxu0 0.0
    %1305 = vmatpush2.msra.mxu0 %v1250
    %1306 = vmatprep.subr.mxu0 0.0
    %1307 = vmatpush2.msra.mxu0 %v1249
    %1308 = vmatprep.subr.mxu0 0.0
    %1309 = vmatpush2.msra.mxu0 %v1248
    %1310 = vmatprep.subr.mxu0 0.0
    %1311 = vmatpush2.msra.mxu0 %v1247
    %1312 = vmatprep.subr.mxu0 0.0
    %1313 = vmatpush2.msra.mxu0 %v1246
    %1314 = vmatprep.subr.mxu0 0.0
    %1315 = vmatpush2.msra.mxu0 %v1245
    %1316 = vmatprep.subr.mxu0 0.0
    %1317 = vmatpush2.msra.mxu0 %v1244
    %1318 = vmatprep.subr.mxu0 0.0
    %1319 = vmatpush2.msra.mxu0 %v1243
    %1320 = vmatprep.subr.mxu0 0.0
    %1321 = vmatpush2.msra.mxu0 %v1242
    %1322 = vmatprep.mubr.f32.mxu0 %v65
    %1323 = vmatmul.mubr.f32.gmra.mxu0 %v64
    %v1324 = vpop.f32.mrf.mxu0
    %v1325 = vadd.f32 0.0, %v1324
    %v1326 = vpop.f32.mrf.mxu0
    %1327 = vmatprep.mubr.f32.mxu0 %v67
    %1328 = vmatmul.mubr.f32.gmra.mxu0 %v66
    %v1329 = vpop.f32.mrf.mxu0
    %v1330 = vadd.f32 0.0, %v1329
    %v1331 = vpop.f32.mrf.mxu0
    %1332 = vmatprep.mubr.f32.mxu0 %v69
    %1333 = vmatmul.mubr.f32.gmra.mxu0 %v68
    %v1334 = vpop.f32.mrf.mxu0
    %v1335 = vadd.f32 0.0, %v1334
    %v1336 = vpop.f32.mrf.mxu0
    %1337 = vmatprep.mubr.f32.mxu0 %v71
    %1338 = vmatmul.mubr.f32.gmra.mxu0 %v70
    %v1339 = vpop.f32.mrf.mxu0
    %v1340 = vadd.f32 0.0, %v1339
    %v1341 = vpop.f32.mrf.mxu0
    %1342 = vmatprep.mubr.f32.mxu0 %v73
    %1343 = vmatmul.mubr.f32.gmra.mxu0 %v72
    %v1344 = vpop.f32.mrf.mxu0
    %v1345 = vadd.f32 0.0, %v1344
    %v1346 = vpop.f32.mrf.mxu0
    %1347 = vmatprep.mubr.f32.mxu0 %v75
    %1348 = vmatmul.mubr.f32.gmra.mxu0 %v74
    %v1349 = vpop.f32.mrf.mxu0
    %v1350 = vadd.f32 0.0, %v1349
    %v1351 = vpop.f32.mrf.mxu0
    %1352 = vmatprep.mubr.f32.mxu0 %v77
    %1353 = vmatmul.mubr.f32.gmra.mxu0 %v76
    %v1354 = vpop.f32.mrf.mxu0
    %v1355 = vadd.f32 0.0, %v1354
    %v1356 = vpop.f32.mrf.mxu0
    %1357 = vmatprep.mubr.f32.mxu0 %v79
    %1358 = vmatmul.mubr.f32.gmra.mxu0 %v78
    %v1359 = vpop.f32.mrf.mxu0
    %v1360 = vadd.f32 0.0, %v1359
    %v1361 = vpop.f32.mrf.mxu0
    %1362 = vmatprep.mubr.f32.mxu0 %v81
    %1363 = vmatmul.mubr.f32.gmra.mxu0 %v80
    %v1364 = vpop.f32.mrf.mxu0
    %v1365 = vadd.f32 0.0, %v1364
    %v1366 = vpop.f32.mrf.mxu0
    %1367 = vmatprep.mubr.f32.mxu0 %v83
    %1368 = vmatmul.mubr.f32.gmra.mxu0 %v82
    %v1369 = vpop.f32.mrf.mxu0
    %v1370 = vadd.f32 0.0, %v1369
    %v1371 = vpop.f32.mrf.mxu0
    %1372 = vmatprep.mubr.f32.mxu0 %v85
    %1373 = vmatmul.mubr.f32.gmra.mxu0 %v84
    %v1374 = vpop.f32.mrf.mxu0
    %v1375 = vadd.f32 0.0, %v1374
    %v1376 = vpop.f32.mrf.mxu0
    %1377 = vmatprep.mubr.f32.mxu0 %v87
    %1378 = vmatmul.mubr.f32.gmra.mxu0 %v86
    %v1379 = vpop.f32.mrf.mxu0
    %v1380 = vadd.f32 0.0, %v1379
    %v1381 = vpop.f32.mrf.mxu0
    %1382 = vmatprep.mubr.f32.mxu0 %v89
    %1383 = vmatmul.mubr.f32.gmra.mxu0 %v88
    %v1384 = vpop.f32.mrf.mxu0
    %v1385 = vadd.f32 0.0, %v1384
    %v1386 = vpop.f32.mrf.mxu0
    %1387 = vmatprep.mubr.f32.mxu0 %v91
    %1388 = vmatmul.mubr.f32.gmra.mxu0 %v90
    %v1389 = vpop.f32.mrf.mxu0
    %v1390 = vadd.f32 0.0, %v1389
    %v1391 = vpop.f32.mrf.mxu0
    %1392 = vmatprep.mubr.f32.mxu0 %v93
    %1393 = vmatmul.mubr.f32.gmra.mxu0 %v92
    %v1394 = vpop.f32.mrf.mxu0
    %v1395 = vadd.f32 0.0, %v1394
    %v1396 = vpop.f32.mrf.mxu0
    %1397 = vmatprep.mubr.f32.mxu0 %v95
    %1398 = vmatmul.mubr.f32.gmra.mxu0 %v94
    %v1399 = vpop.f32.mrf.mxu0
    %v1400 = vadd.f32 0.0, %v1399
    %v1401 = vpop.f32.mrf.mxu0
    %1402 = vmatprep.mubr.f32.mxu0 %v97
    %1403 = vmatmul.mubr.f32.gmra.mxu0 %v96
    %v1404 = vpop.f32.mrf.mxu0
    %v1405 = vadd.f32 0.0, %v1404
    %v1406 = vpop.f32.mrf.mxu0
    %1407 = vmatprep.mubr.f32.mxu0 %v99
    %1408 = vmatmul.mubr.f32.gmra.mxu0 %v98
    %v1409 = vpop.f32.mrf.mxu0
    %v1410 = vadd.f32 0.0, %v1409
    %v1411 = vpop.f32.mrf.mxu0
    %1412 = vmatprep.mubr.f32.mxu0 %v101
    %1413 = vmatmul.mubr.f32.gmra.mxu0 %v100
    %v1414 = vpop.f32.mrf.mxu0
    %v1415 = vadd.f32 0.0, %v1414
    %v1416 = vpop.f32.mrf.mxu0
    %1417 = vmatprep.mubr.f32.mxu0 %v103
    %1418 = vmatmul.mubr.f32.gmra.mxu0 %v102
    %v1419 = vpop.f32.mrf.mxu0
    %v1420 = vadd.f32 0.0, %v1419
    %v1421 = vpop.f32.mrf.mxu0
    %1422 = vmatprep.mubr.f32.mxu0 %v105
    %1423 = vmatmul.mubr.f32.gmra.mxu0 %v104
    %v1424 = vpop.f32.mrf.mxu0
    %v1425 = vadd.f32 0.0, %v1424
    %v1426 = vpop.f32.mrf.mxu0
    %1427 = vmatprep.mubr.f32.mxu0 %v107
    %1428 = vmatmul.mubr.f32.gmra.mxu0 %v106
    %v1429 = vpop.f32.mrf.mxu0
    %v1430 = vadd.f32 0.0, %v1429
    %v1431 = vpop.f32.mrf.mxu0
    %1432 = vmatprep.mubr.f32.mxu0 %v109
    %1433 = vmatmul.mubr.f32.gmra.mxu0 %v108
    %v1434 = vpop.f32.mrf.mxu0
    %v1435 = vadd.f32 0.0, %v1434
    %v1436 = vpop.f32.mrf.mxu0
    %1437 = vmatprep.mubr.f32.mxu0 %v111
    %1438 = vmatmul.mubr.f32.gmra.mxu0 %v110
    %v1439 = vpop.f32.mrf.mxu0
    %v1440 = vadd.f32 0.0, %v1439
    %v1441 = vpop.f32.mrf.mxu0
    %1442 = vmatprep.mubr.f32.mxu0 %v113
    %1443 = vmatmul.mubr.f32.gmra.mxu0 %v112
    %v1444 = vpop.f32.mrf.mxu0
    %v1445 = vadd.f32 0.0, %v1444
    %v1446 = vpop.f32.mrf.mxu0
    %1447 = vmatprep.mubr.f32.mxu0 %v115
    %1448 = vmatmul.mubr.f32.gmra.mxu0 %v114
    %v1449 = vpop.f32.mrf.mxu0
    %v1450 = vadd.f32 0.0, %v1449
    %v1451 = vpop.f32.mrf.mxu0
    %1452 = vmatprep.mubr.f32.mxu0 %v117
    %1453 = vmatmul.mubr.f32.gmra.mxu0 %v116
    %v1454 = vpop.f32.mrf.mxu0
    %v1455 = vadd.f32 0.0, %v1454
    %v1456 = vpop.f32.mrf.mxu0
    %1457 = vmatprep.mubr.f32.mxu0 %v119
    %1458 = vmatmul.mubr.f32.gmra.mxu0 %v118
    %v1459 = vpop.f32.mrf.mxu0
    %v1460 = vadd.f32 0.0, %v1459
    %v1461 = vpop.f32.mrf.mxu0
    %1462 = vmatprep.mubr.f32.mxu0 %v121
    %1463 = vmatmul.mubr.f32.gmra.mxu0 %v120
    %v1464 = vpop.f32.mrf.mxu0
    %v1465 = vadd.f32 0.0, %v1464
    %v1466 = vpop.f32.mrf.mxu0
    %1467 = vmatprep.mubr.f32.mxu0 %v123
    %1468 = vmatmul.mubr.f32.gmra.mxu0 %v122
    %v1469 = vpop.f32.mrf.mxu0
    %v1470 = vadd.f32 0.0, %v1469
    %v1471 = vpop.f32.mrf.mxu0
    %1472 = vmatprep.mubr.f32.mxu0 %v125
    %1473 = vmatmul.mubr.f32.gmra.mxu0 %v124
    %v1474 = vpop.f32.mrf.mxu0
    %v1475 = vadd.f32 0.0, %v1474
    %v1476 = vpop.f32.mrf.mxu0
    %1477 = vmatprep.mubr.f32.mxu0 %v127
    %1478 = vmatmul.mubr.f32.gmra.mxu0 %v126
    %v1479 = vpop.f32.mrf.mxu0
    %v1480 = vadd.f32 0.0, %v1479
    %v1481 = vpop.f32.mrf.mxu0
    %1482 = vdwg.mxu0
    %v1483 = vpack.c.bf16 %v1330, %v1325
    %v1484 = vpack.c.bf16 %v1340, %v1335
    %v1485 = vpack.c.bf16 %v1350, %v1345
    %v1486 = vpack.c.bf16 %v1360, %v1355
    %v1487 = vpack.c.bf16 %v1370, %v1365
    %v1488 = vpack.c.bf16 %v1380, %v1375
    %v1489 = vpack.c.bf16 %v1390, %v1385
    %v1490 = vpack.c.bf16 %v1400, %v1395
    %v1491 = vpack.c.bf16 %v1410, %v1405
    %v1492 = vpack.c.bf16 %v1420, %v1415
    %v1493 = vpack.c.bf16 %v1430, %v1425
    %v1494 = vpack.c.bf16 %v1440, %v1435
    %v1495 = vpack.c.bf16 %v1450, %v1445
    %v1496 = vpack.c.bf16 %v1460, %v1455
    %v1497 = vpack.c.bf16 %v1470, %v1465
    %v1498 = vpack.c.bf16 %v1480, %v1475
    %s1499 = scalar_lea.vmem %s4, 64
    %v1500 = vld [vmem:[%s1499] sm:$0xf]
    %v1501 = vld [vmem:[%s1499 + $0x4] sm:$0xf]
    %v1502 = vld [vmem:[%s1499 + $0x8] sm:$0xf]
    %v1503 = vld [vmem:[%s1499 + $0xc] sm:$0xf]
    %v1504 = vld [vmem:[%s1499 + $0x10] sm:$0xf]
    %v1505 = vld [vmem:[%s1499 + $0x14] sm:$0xf]
    %v1506 = vld [vmem:[%s1499 + $0x18] sm:$0xf]
    %v1507 = vld [vmem:[%s1499 + $0x1c] sm:$0xf]
    %v1508 = vld [vmem:[%s1499 + $0x20] sm:$0xf]
    %v1509 = vld [vmem:[%s1499 + $0x24] sm:$0xf]
    %v1510 = vld [vmem:[%s1499 + $0x28] sm:$0xf]
    %v1511 = vld [vmem:[%s1499 + $0x2c] sm:$0xf]
    %v1512 = vld [vmem:[%s1499 + $0x30] sm:$0xf]
    %v1513 = vld [vmem:[%s1499 + $0x34] sm:$0xf]
    %v1514 = vld [vmem:[%s1499 + $0x38] sm:$0xf]
    %v1515 = vld [vmem:[%s1499 + $0x3c] sm:$0xf]
    %s1516 = scalar_lea.vmem %s5, 1
    %v1517 = vld [vmem:[%s1516] sm:$0x1]
    %v1519 = vlaneseq
    %v1520 = vshrl.u32 %v1519, 7
    %v1521 = vsub.s32 0, %v1520
    %v1522 = vrot.slane %v1517, %v1521
    %v1540 = vunpack.c.l.b16 %v1500
    %v1541 = vunpack.c.l.b16 %v1501
    %v1542 = vunpack.c.l.b16 %v1502
    %v1543 = vunpack.c.l.b16 %v1503
    %v1544 = vunpack.c.l.b16 %v1504
    %v1545 = vunpack.c.l.b16 %v1505
    %v1546 = vunpack.c.l.b16 %v1506
    %v1547 = vunpack.c.l.b16 %v1507
    %v1548 = vunpack.c.l.b16 %v1508
    %v1549 = vunpack.c.l.b16 %v1509
    %v1550 = vunpack.c.l.b16 %v1510
    %v1551 = vunpack.c.l.b16 %v1511
    %v1552 = vunpack.c.l.b16 %v1512
    %v1553 = vunpack.c.l.b16 %v1513
    %v1554 = vunpack.c.l.b16 %v1514
    %v1555 = vunpack.c.l.b16 %v1515
    %v1556 = vpack.c.b16 %v1541, %v1540
    %v1557 = vpack.c.b16 %v1543, %v1542
    %v1558 = vpack.c.b16 %v1545, %v1544
    %v1559 = vpack.c.b16 %v1547, %v1546
    %v1560 = vpack.c.b16 %v1549, %v1548
    %v1561 = vpack.c.b16 %v1551, %v1550
    %v1562 = vpack.c.b16 %v1553, %v1552
    %v1563 = vpack.c.b16 %v1555, %v1554
    %1572 = vmatprep.subr.bf16.mxu0 0
    %1573 = vmatpush1.bf16.msra.mxu0 %v1563
    %1574 = vmatprep.subr.bf16.mxu0 0
    %1575 = vmatpush1.bf16.msra.mxu0 %v1562
    %1576 = vmatprep.subr.bf16.mxu0 0
    %1577 = vmatpush1.bf16.msra.mxu0 %v1561
    %1578 = vmatprep.subr.bf16.mxu0 0
    %1579 = vmatpush1.bf16.msra.mxu0 %v1560
    %1580 = vmatprep.subr.bf16.mxu0 0
    %1581 = vmatpush1.bf16.msra.mxu0 %v1559
    %1582 = vmatprep.subr.bf16.mxu0 0
    %1583 = vmatpush1.bf16.msra.mxu0 %v1558
    %1584 = vmatprep.subr.bf16.mxu0 0
    %1585 = vmatpush1.bf16.msra.mxu0 %v1557
    %1586 = vmatprep.subr.bf16.mxu0 0
    %1587 = vmatpush1.bf16.msra.mxu0 %v1556
    %1588 = vmatprep.subr.bf16.mxu0 0
    %1589 = vmatpush2.bf16.msra.mxu0 0
    %1590 = vmatprep.subr.bf16.mxu0 0
    %1591 = vmatpush2.bf16.msra.mxu0 0
    %1592 = vmatprep.subr.bf16.mxu0 0
    %1593 = vmatpush2.bf16.msra.mxu0 0
    %1594 = vmatprep.subr.bf16.mxu0 0
    %1595 = vmatpush2.bf16.msra.mxu0 0
    %1596 = vmatprep.subr.bf16.mxu0 0
    %1597 = vmatpush2.bf16.msra.mxu0 0
    %1598 = vmatprep.subr.bf16.mxu0 0
    %1599 = vmatpush2.bf16.msra.mxu0 0
    %1600 = vmatprep.subr.bf16.mxu0 0
    %1601 = vmatpush2.bf16.msra.mxu0 0
    %1602 = vmatprep.subr.bf16.mxu0 0
    %1603 = vmatpush2.bf16.msra.mxu0 0
    %1604 = vmatprep.mubr.bf16.mxu0 0
    %1605 = vmatmul.mubr.bf16.gmra.mxu0 %v1483
    %v1606 = vpop.f32.mrf.mxu0
    %v1607 = vadd.f32 %v1522, %v1606
    %v1608 = vpop.f32.mrf.mxu0
    %v1609 = vpop.f32.mrf.mxu0
    %v1610 = vadd.f32 %v1522, %v1609
    %v1611 = vpop.f32.mrf.mxu0
    %1612 = vmatprep.mubr.bf16.mxu0 0
    %1613 = vmatmul.mubr.bf16.gmra.mxu0 %v1484
    %v1614 = vpop.f32.mrf.mxu0
    %v1615 = vadd.f32 %v1522, %v1614
    %v1616 = vpop.f32.mrf.mxu0
    %v1617 = vpop.f32.mrf.mxu0
    %v1618 = vadd.f32 %v1522, %v1617
    %v1619 = vpop.f32.mrf.mxu0
    %1620 = vmatprep.mubr.bf16.mxu0 0
    %1621 = vmatmul.mubr.bf16.gmra.mxu0 %v1485
    %v1622 = vpop.f32.mrf.mxu0
    %v1623 = vadd.f32 %v1522, %v1622
    %v1624 = vpop.f32.mrf.mxu0
    %v1625 = vpop.f32.mrf.mxu0
    %v1626 = vadd.f32 %v1522, %v1625
    %v1627 = vpop.f32.mrf.mxu0
    %1628 = vmatprep.mubr.bf16.mxu0 0
    %1629 = vmatmul.mubr.bf16.gmra.mxu0 %v1486
    %v1630 = vpop.f32.mrf.mxu0
    %v1631 = vadd.f32 %v1522, %v1630
    %v1632 = vpop.f32.mrf.mxu0
    %v1633 = vpop.f32.mrf.mxu0
    %v1634 = vadd.f32 %v1522, %v1633
    %v1635 = vpop.f32.mrf.mxu0
    %1636 = vmatprep.mubr.bf16.mxu0 0
    %1637 = vmatmul.mubr.bf16.gmra.mxu0 %v1487
    %v1638 = vpop.f32.mrf.mxu0
    %v1639 = vadd.f32 %v1522, %v1638
    %v1640 = vpop.f32.mrf.mxu0
    %v1641 = vpop.f32.mrf.mxu0
    %v1642 = vadd.f32 %v1522, %v1641
    %v1643 = vpop.f32.mrf.mxu0
    %1644 = vmatprep.mubr.bf16.mxu0 0
    %1645 = vmatmul.mubr.bf16.gmra.mxu0 %v1488
    %v1646 = vpop.f32.mrf.mxu0
    %v1647 = vadd.f32 %v1522, %v1646
    %v1648 = vpop.f32.mrf.mxu0
    %v1649 = vpop.f32.mrf.mxu0
    %v1650 = vadd.f32 %v1522, %v1649
    %v1651 = vpop.f32.mrf.mxu0
    %1652 = vmatprep.mubr.bf16.mxu0 0
    %1653 = vmatmul.mubr.bf16.gmra.mxu0 %v1489
    %v1654 = vpop.f32.mrf.mxu0
    %v1655 = vadd.f32 %v1522, %v1654
    %v1656 = vpop.f32.mrf.mxu0
    %v1657 = vpop.f32.mrf.mxu0
    %v1658 = vadd.f32 %v1522, %v1657
    %v1659 = vpop.f32.mrf.mxu0
    %1660 = vmatprep.mubr.bf16.mxu0 0
    %1661 = vmatmul.mubr.bf16.gmra.mxu0 %v1490
    %v1662 = vpop.f32.mrf.mxu0
    %v1663 = vadd.f32 %v1522, %v1662
    %v1664 = vpop.f32.mrf.mxu0
    %v1665 = vpop.f32.mrf.mxu0
    %v1666 = vadd.f32 %v1522, %v1665
    %v1667 = vpop.f32.mrf.mxu0
    %1668 = vmatprep.mubr.bf16.mxu0 0
    %1669 = vmatmul.mubr.bf16.gmra.mxu0 %v1491
    %v1670 = vpop.f32.mrf.mxu0
    %v1671 = vadd.f32 %v1522, %v1670
    %v1672 = vpop.f32.mrf.mxu0
    %v1673 = vpop.f32.mrf.mxu0
    %v1674 = vadd.f32 %v1522, %v1673
    %v1675 = vpop.f32.mrf.mxu0
    %1676 = vmatprep.mubr.bf16.mxu0 0
    %1677 = vmatmul.mubr.bf16.gmra.mxu0 %v1492
    %v1678 = vpop.f32.mrf.mxu0
    %v1679 = vadd.f32 %v1522, %v1678
    %v1680 = vpop.f32.mrf.mxu0
    %v1681 = vpop.f32.mrf.mxu0
    %v1682 = vadd.f32 %v1522, %v1681
    %v1683 = vpop.f32.mrf.mxu0
    %1684 = vmatprep.mubr.bf16.mxu0 0
    %1685 = vmatmul.mubr.bf16.gmra.mxu0 %v1493
    %v1686 = vpop.f32.mrf.mxu0
    %v1687 = vadd.f32 %v1522, %v1686
    %v1688 = vpop.f32.mrf.mxu0
    %v1689 = vpop.f32.mrf.mxu0
    %v1690 = vadd.f32 %v1522, %v1689
    %v1691 = vpop.f32.mrf.mxu0
    %1692 = vmatprep.mubr.bf16.mxu0 0
    %1693 = vmatmul.mubr.bf16.gmra.mxu0 %v1494
    %v1694 = vpop.f32.mrf.mxu0
    %v1695 = vadd.f32 %v1522, %v1694
    %v1696 = vpop.f32.mrf.mxu0
    %v1697 = vpop.f32.mrf.mxu0
    %v1698 = vadd.f32 %v1522, %v1697
    %v1699 = vpop.f32.mrf.mxu0
    %1700 = vmatprep.mubr.bf16.mxu0 0
    %1701 = vmatmul.mubr.bf16.gmra.mxu0 %v1495
    %v1702 = vpop.f32.mrf.mxu0
    %v1703 = vadd.f32 %v1522, %v1702
    %v1704 = vpop.f32.mrf.mxu0
    %v1705 = vpop.f32.mrf.mxu0
    %v1706 = vadd.f32 %v1522, %v1705
    %v1707 = vpop.f32.mrf.mxu0
    %1708 = vmatprep.mubr.bf16.mxu0 0
    %1709 = vmatmul.mubr.bf16.gmra.mxu0 %v1496
    %v1710 = vpop.f32.mrf.mxu0
    %v1711 = vadd.f32 %v1522, %v1710
    %v1712 = vpop.f32.mrf.mxu0
    %v1713 = vpop.f32.mrf.mxu0
    %v1714 = vadd.f32 %v1522, %v1713
    %v1715 = vpop.f32.mrf.mxu0
    %1716 = vmatprep.mubr.bf16.mxu0 0
    %1717 = vmatmul.mubr.bf16.gmra.mxu0 %v1497
    %v1718 = vpop.f32.mrf.mxu0
    %v1719 = vadd.f32 %v1522, %v1718
    %v1720 = vpop.f32.mrf.mxu0
    %v1721 = vpop.f32.mrf.mxu0
    %v1722 = vadd.f32 %v1522, %v1721
    %v1723 = vpop.f32.mrf.mxu0
    %1724 = vmatprep.mubr.bf16.mxu0 0
    %1725 = vmatmul.mubr.bf16.gmra.mxu0 %v1498
    %v1726 = vpop.f32.mrf.mxu0
    %v1727 = vadd.f32 %v1522, %v1726
    %v1728 = vpop.f32.mrf.mxu0
    %v1729 = vpop.f32.mrf.mxu0
    %v1730 = vadd.f32 %v1522, %v1729
    %v1731 = vpop.f32.mrf.mxu0
    %1732 = vdwg.mxu0
    %v1733 = vsub.f32 0.0, %v1607
    %v1734 = vsub.f32 0.0, %v1610
    %v1735 = vsub.f32 0.0, %v1615
    %v1736 = vsub.f32 0.0, %v1618
    %v1737 = vsub.f32 0.0, %v1623
    %v1738 = vsub.f32 0.0, %v1626
    %v1739 = vsub.f32 0.0, %v1631
    %v1740 = vsub.f32 0.0, %v1634
    %v1741 = vsub.f32 0.0, %v1639
    %v1742 = vsub.f32 0.0, %v1642
    %v1743 = vsub.f32 0.0, %v1647
    %v1744 = vsub.f32 0.0, %v1650
    %v1745 = vsub.f32 0.0, %v1655
    %v1746 = vsub.f32 0.0, %v1658
    %v1747 = vsub.f32 0.0, %v1663
    %v1748 = vsub.f32 0.0, %v1666
    %v1749 = vsub.f32 0.0, %v1671
    %v1750 = vsub.f32 0.0, %v1674
    %v1751 = vsub.f32 0.0, %v1679
    %v1752 = vsub.f32 0.0, %v1682
    %v1753 = vsub.f32 0.0, %v1687
    %v1754 = vsub.f32 0.0, %v1690
    %v1755 = vsub.f32 0.0, %v1695
    %v1756 = vsub.f32 0.0, %v1698
    %v1757 = vsub.f32 0.0, %v1703
    %v1758 = vsub.f32 0.0, %v1706
    %v1759 = vsub.f32 0.0, %v1711
    %v1760 = vsub.f32 0.0, %v1714
    %v1761 = vsub.f32 0.0, %v1719
    %v1762 = vsub.f32 0.0, %v1722
    %v1763 = vsub.f32 0.0, %v1727
    %v1764 = vsub.f32 0.0, %v1730
    %v1765 = vmul.f32 %v1733, 1.442695
    %v1766 = vpow.pop %v1765
    %v1767 = vmul.f32 %v1734, 1.442695
    %v1768 = vpow.pop %v1767
    %v1769 = vmul.f32 %v1735, 1.442695
    %v1770 = vpow.pop %v1769
    %v1771 = vmul.f32 %v1736, 1.442695
    %v1772 = vpow.pop %v1771
    %v1773 = vmul.f32 %v1737, 1.442695
    %v1774 = vpow.pop %v1773
    %v1775 = vmul.f32 %v1738, 1.442695
    %v1776 = vpow.pop %v1775
    %v1777 = vmul.f32 %v1739, 1.442695
    %v1778 = vpow.pop %v1777
    %v1779 = vmul.f32 %v1740, 1.442695
    %v1780 = vpow.pop %v1779
    %v1781 = vmul.f32 %v1741, 1.442695
    %v1782 = vpow.pop %v1781
    %v1783 = vmul.f32 %v1742, 1.442695
    %v1784 = vpow.pop %v1783
    %v1785 = vmul.f32 %v1743, 1.442695
    %v1786 = vpow.pop %v1785
    %v1787 = vmul.f32 %v1744, 1.442695
    %v1788 = vpow.pop %v1787
    %v1789 = vmul.f32 %v1745, 1.442695
    %v1790 = vpow.pop %v1789
    %v1791 = vmul.f32 %v1746, 1.442695
    %v1792 = vpow.pop %v1791
    %v1793 = vmul.f32 %v1747, 1.442695
    %v1794 = vpow.pop %v1793
    %v1795 = vmul.f32 %v1748, 1.442695
    %v1796 = vpow.pop %v1795
    %v1797 = vmul.f32 %v1749, 1.442695
    %v1798 = vpow.pop %v1797
    %v1799 = vmul.f32 %v1750, 1.442695
    %v1800 = vpow.pop %v1799
    %v1801 = vmul.f32 %v1751, 1.442695
    %v1802 = vpow.pop %v1801
    %v1803 = vmul.f32 %v1752, 1.442695
    %v1804 = vpow.pop %v1803
    %v1805 = vmul.f32 %v1753, 1.442695
    %v1806 = vpow.pop %v1805
    %v1807 = vmul.f32 %v1754, 1.442695
    %v1808 = vpow.pop %v1807
    %v1809 = vmul.f32 %v1755, 1.442695
    %v1810 = vpow.pop %v1809
    %v1811 = vmul.f32 %v1756, 1.442695
    %v1812 = vpow.pop %v1811
    %v1813 = vmul.f32 %v1757, 1.442695
    %v1814 = vpow.pop %v1813
    %v1815 = vmul.f32 %v1758, 1.442695
    %v1816 = vpow.pop %v1815
    %v1817 = vmul.f32 %v1759, 1.442695
    %v1818 = vpow.pop %v1817
    %v1819 = vmul.f32 %v1760, 1.442695
    %v1820 = vpow.pop %v1819
    %v1821 = vmul.f32 %v1761, 1.442695
    %v1822 = vpow.pop %v1821
    %v1823 = vmul.f32 %v1762, 1.442695
    %v1824 = vpow.pop %v1823
    %v1825 = vmul.f32 %v1763, 1.442695
    %v1826 = vpow.pop %v1825
    %v1827 = vmul.f32 %v1764, 1.442695
    %v1828 = vpow.pop %v1827
    %v1829 = vadd.f32 %v1766, 1.0
    %v1830 = vadd.f32 %v1768, 1.0
    %v1831 = vadd.f32 %v1770, 1.0
    %v1832 = vadd.f32 %v1772, 1.0
    %v1833 = vadd.f32 %v1774, 1.0
    %v1834 = vadd.f32 %v1776, 1.0
    %v1835 = vadd.f32 %v1778, 1.0
    %v1836 = vadd.f32 %v1780, 1.0
    %v1837 = vadd.f32 %v1782, 1.0
    %v1838 = vadd.f32 %v1784, 1.0
    %v1839 = vadd.f32 %v1786, 1.0
    %v1840 = vadd.f32 %v1788, 1.0
    %v1841 = vadd.f32 %v1790, 1.0
    %v1842 = vadd.f32 %v1792, 1.0
    %v1843 = vadd.f32 %v1794, 1.0
    %v1844 = vadd.f32 %v1796, 1.0
    %v1845 = vadd.f32 %v1798, 1.0
    %v1846 = vadd.f32 %v1800, 1.0
    %v1847 = vadd.f32 %v1802, 1.0
    %v1848 = vadd.f32 %v1804, 1.0
    %v1849 = vadd.f32 %v1806, 1.0
    %v1850 = vadd.f32 %v1808, 1.0
    %v1851 = vadd.f32 %v1810, 1.0
    %v1852 = vadd.f32 %v1812, 1.0
    %v1853 = vadd.f32 %v1814, 1.0
    %v1854 = vadd.f32 %v1816, 1.0
    %v1855 = vadd.f32 %v1818, 1.0
    %v1856 = vadd.f32 %v1820, 1.0
    %v1857 = vadd.f32 %v1822, 1.0
    %v1858 = vadd.f32 %v1824, 1.0
    %v1859 = vadd.f32 %v1826, 1.0
    %v1860 = vadd.f32 %v1828, 1.0
    %v1861 = vrcp.pop %v1829
    %v1862 = vrcp.pop %v1830
    %v1863 = vrcp.pop %v1831
    %v1864 = vrcp.pop %v1832
    %v1865 = vrcp.pop %v1833
    %v1866 = vrcp.pop %v1834
    %v1867 = vrcp.pop %v1835
    %v1868 = vrcp.pop %v1836
    %v1869 = vrcp.pop %v1837
    %v1870 = vrcp.pop %v1838
    %v1871 = vrcp.pop %v1839
    %v1872 = vrcp.pop %v1840
    %v1873 = vrcp.pop %v1841
    %v1874 = vrcp.pop %v1842
    %v1875 = vrcp.pop %v1843
    %v1876 = vrcp.pop %v1844
    %v1877 = vrcp.pop %v1845
    %v1878 = vrcp.pop %v1846
    %v1879 = vrcp.pop %v1847
    %v1880 = vrcp.pop %v1848
    %v1881 = vrcp.pop %v1849
    %v1882 = vrcp.pop %v1850
    %v1883 = vrcp.pop %v1851
    %v1884 = vrcp.pop %v1852
    %v1885 = vrcp.pop %v1853
    %v1886 = vrcp.pop %v1854
    %v1887 = vrcp.pop %v1855
    %v1888 = vrcp.pop %v1856
    %v1889 = vrcp.pop %v1857
    %v1890 = vrcp.pop %v1858
    %v1891 = vrcp.pop %v1859
    %v1892 = vrcp.pop %v1860
    %v1893 = vmul.f32 %v1607, %v1861
    %v1894 = vmul.f32 %v1610, %v1862
    %v1895 = vmul.f32 %v1615, %v1863
    %v1896 = vmul.f32 %v1618, %v1864
    %v1897 = vmul.f32 %v1623, %v1865
    %v1898 = vmul.f32 %v1626, %v1866
    %v1899 = vmul.f32 %v1631, %v1867
    %v1900 = vmul.f32 %v1634, %v1868
    %v1901 = vmul.f32 %v1639, %v1869
    %v1902 = vmul.f32 %v1642, %v1870
    %v1903 = vmul.f32 %v1647, %v1871
    %v1904 = vmul.f32 %v1650, %v1872
    %v1905 = vmul.f32 %v1655, %v1873
    %v1906 = vmul.f32 %v1658, %v1874
    %v1907 = vmul.f32 %v1663, %v1875
    %v1908 = vmul.f32 %v1666, %v1876
    %v1909 = vmul.f32 %v1671, %v1877
    %v1910 = vmul.f32 %v1674, %v1878
    %v1911 = vmul.f32 %v1679, %v1879
    %v1912 = vmul.f32 %v1682, %v1880
    %v1913 = vmul.f32 %v1687, %v1881
    %v1914 = vmul.f32 %v1690, %v1882
    %v1915 = vmul.f32 %v1695, %v1883
    %v1916 = vmul.f32 %v1698, %v1884
    %v1917 = vmul.f32 %v1703, %v1885
    %v1918 = vmul.f32 %v1706, %v1886
    %v1919 = vmul.f32 %v1711, %v1887
    %v1920 = vmul.f32 %v1714, %v1888
    %v1921 = vmul.f32 %v1719, %v1889
    %v1922 = vmul.f32 %v1722, %v1890
    %v1923 = vmul.f32 %v1727, %v1891
    %v1924 = vmul.f32 %v1730, %v1892
    %1925 = vmatprep.subr.mxu0 0.0
    %1926 = vmatpush1.msra.mxu0 %v1908
    %1927 = vmatprep.subr.mxu0 0.0
    %1928 = vmatpush1.msra.mxu0 %v1907
    %1929 = vmatprep.subr.mxu0 0.0
    %1930 = vmatpush1.msra.mxu0 %v1906
    %1931 = vmatprep.subr.mxu0 0.0
    %1932 = vmatpush1.msra.mxu0 %v1905
    %1933 = vmatprep.subr.mxu0 0.0
    %1934 = vmatpush1.msra.mxu0 %v1904
    %1935 = vmatprep.subr.mxu0 0.0
    %1936 = vmatpush1.msra.mxu0 %v1903
    %1937 = vmatprep.subr.mxu0 0.0
    %1938 = vmatpush1.msra.mxu0 %v1902
    %1939 = vmatprep.subr.mxu0 0.0
    %1940 = vmatpush1.msra.mxu0 %v1901
    %1941 = vmatprep.subr.mxu0 0.0
    %1942 = vmatpush1.msra.mxu0 %v1900
    %1943 = vmatprep.subr.mxu0 0.0
    %1944 = vmatpush1.msra.mxu0 %v1899
    %1945 = vmatprep.subr.mxu0 0.0
    %1946 = vmatpush1.msra.mxu0 %v1898
    %1947 = vmatprep.subr.mxu0 0.0
    %1948 = vmatpush1.msra.mxu0 %v1897
    %1949 = vmatprep.subr.mxu0 0.0
    %1950 = vmatpush1.msra.mxu0 %v1896
    %1951 = vmatprep.subr.mxu0 0.0
    %1952 = vmatpush1.msra.mxu0 %v1895
    %1953 = vmatprep.subr.mxu0 0.0
    %1954 = vmatpush1.msra.mxu0 %v1894
    %1955 = vmatprep.subr.mxu0 0.0
    %1956 = vmatpush1.msra.mxu0 %v1893
    %1957 = vmatprep.subr.mxu0 0.0
    %1958 = vmatpush2.msra.mxu0 %v1924
    %1959 = vmatprep.subr.mxu0 0.0
    %1960 = vmatpush2.msra.mxu0 %v1923
    %1961 = vmatprep.subr.mxu0 0.0
    %1962 = vmatpush2.msra.mxu0 %v1922
    %1963 = vmatprep.subr.mxu0 0.0
    %1964 = vmatpush2.msra.mxu0 %v1921
    %1965 = vmatprep.subr.mxu0 0.0
    %1966 = vmatpush2.msra.mxu0 %v1920
    %1967 = vmatprep.subr.mxu0 0.0
    %1968 = vmatpush2.msra.mxu0 %v1919
    %1969 = vmatprep.subr.mxu0 0.0
    %1970 = vmatpush2.msra.mxu0 %v1918
    %1971 = vmatprep.subr.mxu0 0.0
    %1972 = vmatpush2.msra.mxu0 %v1917
    %1973 = vmatprep.subr.mxu0 0.0
    %1974 = vmatpush2.msra.mxu0 %v1916
    %1975 = vmatprep.subr.mxu0 0.0
    %1976 = vmatpush2.msra.mxu0 %v1915
    %1977 = vmatprep.subr.mxu0 0.0
    %1978 = vmatpush2.msra.mxu0 %v1914
    %1979 = vmatprep.subr.mxu0 0.0
    %1980 = vmatpush2.msra.mxu0 %v1913
    %1981 = vmatprep.subr.mxu0 0.0
    %1982 = vmatpush2.msra.mxu0 %v1912
    %1983 = vmatprep.subr.mxu0 0.0
    %1984 = vmatpush2.msra.mxu0 %v1911
    %1985 = vmatprep.subr.mxu0 0.0
    %1986 = vmatpush2.msra.mxu0 %v1910
    %1987 = vmatprep.subr.mxu0 0.0
    %1988 = vmatpush2.msra.mxu0 %v1909
    %1989 = vmatprep.mubr.f32.mxu0 %v65
    %1990 = vmatmul.mubr.f32.gmra.mxu0 %v64
    %v1991 = vpop.f32.mrf.mxu0
    %v1992 = vadd.f32 0.0, %v1991
    %v1993 = vpop.f32.mrf.mxu0
    %1994 = vmatprep.mubr.f32.mxu0 %v67
    %1995 = vmatmul.mubr.f32.gmra.mxu0 %v66
    %v1996 = vpop.f32.mrf.mxu0
    %v1997 = vadd.f32 0.0, %v1996
    %v1998 = vpop.f32.mrf.mxu0
    %1999 = vmatprep.mubr.f32.mxu0 %v69
    %2000 = vmatmul.mubr.f32.gmra.mxu0 %v68
    %v2001 = vpop.f32.mrf.mxu0
    %v2002 = vadd.f32 0.0, %v2001
    %v2003 = vpop.f32.mrf.mxu0
    %2004 = vmatprep.mubr.f32.mxu0 %v71
    %2005 = vmatmul.mubr.f32.gmra.mxu0 %v70
    %v2006 = vpop.f32.mrf.mxu0
    %v2007 = vadd.f32 0.0, %v2006
    %v2008 = vpop.f32.mrf.mxu0
    %2009 = vmatprep.mubr.f32.mxu0 %v73
    %2010 = vmatmul.mubr.f32.gmra.mxu0 %v72
    %v2011 = vpop.f32.mrf.mxu0
    %v2012 = vadd.f32 0.0, %v2011
    %v2013 = vpop.f32.mrf.mxu0
    %2014 = vmatprep.mubr.f32.mxu0 %v75
    %2015 = vmatmul.mubr.f32.gmra.mxu0 %v74
    %v2016 = vpop.f32.mrf.mxu0
    %v2017 = vadd.f32 0.0, %v2016
    %v2018 = vpop.f32.mrf.mxu0
    %2019 = vmatprep.mubr.f32.mxu0 %v77
    %2020 = vmatmul.mubr.f32.gmra.mxu0 %v76
    %v2021 = vpop.f32.mrf.mxu0
    %v2022 = vadd.f32 0.0, %v2021
    %v2023 = vpop.f32.mrf.mxu0
    %2024 = vmatprep.mubr.f32.mxu0 %v79
    %2025 = vmatmul.mubr.f32.gmra.mxu0 %v78
    %v2026 = vpop.f32.mrf.mxu0
    %v2027 = vadd.f32 0.0, %v2026
    %v2028 = vpop.f32.mrf.mxu0
    %2029 = vmatprep.mubr.f32.mxu0 %v81
    %2030 = vmatmul.mubr.f32.gmra.mxu0 %v80
    %v2031 = vpop.f32.mrf.mxu0
    %v2032 = vadd.f32 0.0, %v2031
    %v2033 = vpop.f32.mrf.mxu0
    %2034 = vmatprep.mubr.f32.mxu0 %v83
    %2035 = vmatmul.mubr.f32.gmra.mxu0 %v82
    %v2036 = vpop.f32.mrf.mxu0
    %v2037 = vadd.f32 0.0, %v2036
    %v2038 = vpop.f32.mrf.mxu0
    %2039 = vmatprep.mubr.f32.mxu0 %v85
    %2040 = vmatmul.mubr.f32.gmra.mxu0 %v84
    %v2041 = vpop.f32.mrf.mxu0
    %v2042 = vadd.f32 0.0, %v2041
    %v2043 = vpop.f32.mrf.mxu0
    %2044 = vmatprep.mubr.f32.mxu0 %v87
    %2045 = vmatmul.mubr.f32.gmra.mxu0 %v86
    %v2046 = vpop.f32.mrf.mxu0
    %v2047 = vadd.f32 0.0, %v2046
    %v2048 = vpop.f32.mrf.mxu0
    %2049 = vmatprep.mubr.f32.mxu0 %v89
    %2050 = vmatmul.mubr.f32.gmra.mxu0 %v88
    %v2051 = vpop.f32.mrf.mxu0
    %v2052 = vadd.f32 0.0, %v2051
    %v2053 = vpop.f32.mrf.mxu0
    %2054 = vmatprep.mubr.f32.mxu0 %v91
    %2055 = vmatmul.mubr.f32.gmra.mxu0 %v90
    %v2056 = vpop.f32.mrf.mxu0
    %v2057 = vadd.f32 0.0, %v2056
    %v2058 = vpop.f32.mrf.mxu0
    %2059 = vmatprep.mubr.f32.mxu0 %v93
    %2060 = vmatmul.mubr.f32.gmra.mxu0 %v92
    %v2061 = vpop.f32.mrf.mxu0
    %v2062 = vadd.f32 0.0, %v2061
    %v2063 = vpop.f32.mrf.mxu0
    %2064 = vmatprep.mubr.f32.mxu0 %v95
    %2065 = vmatmul.mubr.f32.gmra.mxu0 %v94
    %v2066 = vpop.f32.mrf.mxu0
    %v2067 = vadd.f32 0.0, %v2066
    %v2068 = vpop.f32.mrf.mxu0
    %2069 = vmatprep.mubr.f32.mxu0 %v97
    %2070 = vmatmul.mubr.f32.gmra.mxu0 %v96
    %v2071 = vpop.f32.mrf.mxu0
    %v2072 = vadd.f32 0.0, %v2071
    %v2073 = vpop.f32.mrf.mxu0
    %2074 = vmatprep.mubr.f32.mxu0 %v99
    %2075 = vmatmul.mubr.f32.gmra.mxu0 %v98
    %v2076 = vpop.f32.mrf.mxu0
    %v2077 = vadd.f32 0.0, %v2076
    %v2078 = vpop.f32.mrf.mxu0
    %2079 = vmatprep.mubr.f32.mxu0 %v101
    %2080 = vmatmul.mubr.f32.gmra.mxu0 %v100
    %v2081 = vpop.f32.mrf.mxu0
    %v2082 = vadd.f32 0.0, %v2081
    %v2083 = vpop.f32.mrf.mxu0
    %2084 = vmatprep.mubr.f32.mxu0 %v103
    %2085 = vmatmul.mubr.f32.gmra.mxu0 %v102
    %v2086 = vpop.f32.mrf.mxu0
    %v2087 = vadd.f32 0.0, %v2086
    %v2088 = vpop.f32.mrf.mxu0
    %2089 = vmatprep.mubr.f32.mxu0 %v105
    %2090 = vmatmul.mubr.f32.gmra.mxu0 %v104
    %v2091 = vpop.f32.mrf.mxu0
    %v2092 = vadd.f32 0.0, %v2091
    %v2093 = vpop.f32.mrf.mxu0
    %2094 = vmatprep.mubr.f32.mxu0 %v107
    %2095 = vmatmul.mubr.f32.gmra.mxu0 %v106
    %v2096 = vpop.f32.mrf.mxu0
    %v2097 = vadd.f32 0.0, %v2096
    %v2098 = vpop.f32.mrf.mxu0
    %2099 = vmatprep.mubr.f32.mxu0 %v109
    %2100 = vmatmul.mubr.f32.gmra.mxu0 %v108
    %v2101 = vpop.f32.mrf.mxu0
    %v2102 = vadd.f32 0.0, %v2101
    %v2103 = vpop.f32.mrf.mxu0
    %2104 = vmatprep.mubr.f32.mxu0 %v111
    %2105 = vmatmul.mubr.f32.gmra.mxu0 %v110
    %v2106 = vpop.f32.mrf.mxu0
    %v2107 = vadd.f32 0.0, %v2106
    %v2108 = vpop.f32.mrf.mxu0
    %2109 = vmatprep.mubr.f32.mxu0 %v113
    %2110 = vmatmul.mubr.f32.gmra.mxu0 %v112
    %v2111 = vpop.f32.mrf.mxu0
    %v2112 = vadd.f32 0.0, %v2111
    %v2113 = vpop.f32.mrf.mxu0
    %2114 = vmatprep.mubr.f32.mxu0 %v115
    %2115 = vmatmul.mubr.f32.gmra.mxu0 %v114
    %v2116 = vpop.f32.mrf.mxu0
    %v2117 = vadd.f32 0.0, %v2116
    %v2118 = vpop.f32.mrf.mxu0
    %2119 = vmatprep.mubr.f32.mxu0 %v117
    %2120 = vmatmul.mubr.f32.gmra.mxu0 %v116
    %v2121 = vpop.f32.mrf.mxu0
    %v2122 = vadd.f32 0.0, %v2121
    %v2123 = vpop.f32.mrf.mxu0
    %2124 = vmatprep.mubr.f32.mxu0 %v119
    %2125 = vmatmul.mubr.f32.gmra.mxu0 %v118
    %v2126 = vpop.f32.mrf.mxu0
    %v2127 = vadd.f32 0.0, %v2126
    %v2128 = vpop.f32.mrf.mxu0
    %2129 = vmatprep.mubr.f32.mxu0 %v121
    %2130 = vmatmul.mubr.f32.gmra.mxu0 %v120
    %v2131 = vpop.f32.mrf.mxu0
    %v2132 = vadd.f32 0.0, %v2131
    %v2133 = vpop.f32.mrf.mxu0
    %2134 = vmatprep.mubr.f32.mxu0 %v123
    %2135 = vmatmul.mubr.f32.gmra.mxu0 %v122
    %v2136 = vpop.f32.mrf.mxu0
    %v2137 = vadd.f32 0.0, %v2136
    %v2138 = vpop.f32.mrf.mxu0
    %2139 = vmatprep.mubr.f32.mxu0 %v125
    %2140 = vmatmul.mubr.f32.gmra.mxu0 %v124
    %v2141 = vpop.f32.mrf.mxu0
    %v2142 = vadd.f32 0.0, %v2141
    %v2143 = vpop.f32.mrf.mxu0
    %2144 = vmatprep.mubr.f32.mxu0 %v127
    %2145 = vmatmul.mubr.f32.gmra.mxu0 %v126
    %v2146 = vpop.f32.mrf.mxu0
    %v2147 = vadd.f32 0.0, %v2146
    %v2148 = vpop.f32.mrf.mxu0
    %2149 = vdwg.mxu0
    %v2150 = vpack.c.bf16 %v1997, %v1992
    %v2151 = vpack.c.bf16 %v2007, %v2002
    %v2152 = vpack.c.bf16 %v2017, %v2012
    %v2153 = vpack.c.bf16 %v2027, %v2022
    %v2154 = vpack.c.bf16 %v2037, %v2032
    %v2155 = vpack.c.bf16 %v2047, %v2042
    %v2156 = vpack.c.bf16 %v2057, %v2052
    %v2157 = vpack.c.bf16 %v2067, %v2062
    %v2158 = vpack.c.bf16 %v2077, %v2072
    %v2159 = vpack.c.bf16 %v2087, %v2082
    %v2160 = vpack.c.bf16 %v2097, %v2092
    %v2161 = vpack.c.bf16 %v2107, %v2102
    %v2162 = vpack.c.bf16 %v2117, %v2112
    %v2163 = vpack.c.bf16 %v2127, %v2122
    %v2164 = vpack.c.bf16 %v2137, %v2132
    %v2165 = vpack.c.bf16 %v2147, %v2142
    %s2166 = scalar_lea.vmem %s4, 128
    %v2167 = vld [vmem:[%s2166] sm:$0xf]
    %v2168 = vld [vmem:[%s2166 + $0x4] sm:$0xf]
    %v2169 = vld [vmem:[%s2166 + $0x8] sm:$0xf]
    %v2170 = vld [vmem:[%s2166 + $0xc] sm:$0xf]
    %v2171 = vld [vmem:[%s2166 + $0x10] sm:$0xf]
    %v2172 = vld [vmem:[%s2166 + $0x14] sm:$0xf]
    %v2173 = vld [vmem:[%s2166 + $0x18] sm:$0xf]
    %v2174 = vld [vmem:[%s2166 + $0x1c] sm:$0xf]
    %v2175 = vld [vmem:[%s2166 + $0x20] sm:$0xf]
    %v2176 = vld [vmem:[%s2166 + $0x24] sm:$0xf]
    %v2177 = vld [vmem:[%s2166 + $0x28] sm:$0xf]
    %v2178 = vld [vmem:[%s2166 + $0x2c] sm:$0xf]
    %v2179 = vld [vmem:[%s2166 + $0x30] sm:$0xf]
    %v2180 = vld [vmem:[%s2166 + $0x34] sm:$0xf]
    %v2181 = vld [vmem:[%s2166 + $0x38] sm:$0xf]
    %v2182 = vld [vmem:[%s2166 + $0x3c] sm:$0xf]
    %s2183 = scalar_lea.vmem %s5, 2
    %v2184 = vld [vmem:[%s2183] sm:$0x1]
    %v2186 = vlaneseq
    %v2187 = vshrl.u32 %v2186, 7
    %v2188 = vsub.s32 0, %v2187
    %v2189 = vrot.slane %v2184, %v2188
    %v2207 = vunpack.c.l.b16 %v2167
    %v2208 = vunpack.c.l.b16 %v2168
    %v2209 = vunpack.c.l.b16 %v2169
    %v2210 = vunpack.c.l.b16 %v2170
    %v2211 = vunpack.c.l.b16 %v2171
    %v2212 = vunpack.c.l.b16 %v2172
    %v2213 = vunpack.c.l.b16 %v2173
    %v2214 = vunpack.c.l.b16 %v2174
    %v2215 = vunpack.c.l.b16 %v2175
    %v2216 = vunpack.c.l.b16 %v2176
    %v2217 = vunpack.c.l.b16 %v2177
    %v2218 = vunpack.c.l.b16 %v2178
    %v2219 = vunpack.c.l.b16 %v2179
    %v2220 = vunpack.c.l.b16 %v2180
    %v2221 = vunpack.c.l.b16 %v2181
    %v2222 = vunpack.c.l.b16 %v2182
    %v2223 = vpack.c.b16 %v2208, %v2207
    %v2224 = vpack.c.b16 %v2210, %v2209
    %v2225 = vpack.c.b16 %v2212, %v2211
    %v2226 = vpack.c.b16 %v2214, %v2213
    %v2227 = vpack.c.b16 %v2216, %v2215
    %v2228 = vpack.c.b16 %v2218, %v2217
    %v2229 = vpack.c.b16 %v2220, %v2219
    %v2230 = vpack.c.b16 %v2222, %v2221
    %2239 = vmatprep.subr.bf16.mxu0 0
    %2240 = vmatpush1.bf16.msra.mxu0 %v2230
    %2241 = vmatprep.subr.bf16.mxu0 0
    %2242 = vmatpush1.bf16.msra.mxu0 %v2229
    %2243 = vmatprep.subr.bf16.mxu0 0
    %2244 = vmatpush1.bf16.msra.mxu0 %v2228
    %2245 = vmatprep.subr.bf16.mxu0 0
    %2246 = vmatpush1.bf16.msra.mxu0 %v2227
    %2247 = vmatprep.subr.bf16.mxu0 0
    %2248 = vmatpush1.bf16.msra.mxu0 %v2226
    %2249 = vmatprep.subr.bf16.mxu0 0
    %2250 = vmatpush1.bf16.msra.mxu0 %v2225
    %2251 = vmatprep.subr.bf16.mxu0 0
    %2252 = vmatpush1.bf16.msra.mxu0 %v2224
    %2253 = vmatprep.subr.bf16.mxu0 0
    %2254 = vmatpush1.bf16.msra.mxu0 %v2223
    %2255 = vmatprep.subr.bf16.mxu0 0
    %2256 = vmatpush2.bf16.msra.mxu0 0
    %2257 = vmatprep.subr.bf16.mxu0 0
    %2258 = vmatpush2.bf16.msra.mxu0 0
    %2259 = vmatprep.subr.bf16.mxu0 0
    %2260 = vmatpush2.bf16.msra.mxu0 0
    %2261 = vmatprep.subr.bf16.mxu0 0
    %2262 = vmatpush2.bf16.msra.mxu0 0
    %2263 = vmatprep.subr.bf16.mxu0 0
    %2264 = vmatpush2.bf16.msra.mxu0 0
    %2265 = vmatprep.subr.bf16.mxu0 0
    %2266 = vmatpush2.bf16.msra.mxu0 0
    %2267 = vmatprep.subr.bf16.mxu0 0
    %2268 = vmatpush2.bf16.msra.mxu0 0
    %2269 = vmatprep.subr.bf16.mxu0 0
    %2270 = vmatpush2.bf16.msra.mxu0 0
    %2271 = vmatprep.mubr.bf16.mxu0 0
    %2272 = vmatmul.mubr.bf16.gmra.mxu0 %v2150
    %v2273 = vpop.f32.mrf.mxu0
    %v2274 = vadd.f32 %v2189, %v2273
    %v2275 = vpop.f32.mrf.mxu0
    %v2276 = vpop.f32.mrf.mxu0
    %v2277 = vadd.f32 %v2189, %v2276
    %v2278 = vpop.f32.mrf.mxu0
    %2279 = vmatprep.mubr.bf16.mxu0 0
    %2280 = vmatmul.mubr.bf16.gmra.mxu0 %v2151
    %v2281 = vpop.f32.mrf.mxu0
    %v2282 = vadd.f32 %v2189, %v2281
    %v2283 = vpop.f32.mrf.mxu0
    %v2284 = vpop.f32.mrf.mxu0
    %v2285 = vadd.f32 %v2189, %v2284
    %v2286 = vpop.f32.mrf.mxu0
    %2287 = vmatprep.mubr.bf16.mxu0 0
    %2288 = vmatmul.mubr.bf16.gmra.mxu0 %v2152
    %v2289 = vpop.f32.mrf.mxu0
    %v2290 = vadd.f32 %v2189, %v2289
    %v2291 = vpop.f32.mrf.mxu0
    %v2292 = vpop.f32.mrf.mxu0
    %v2293 = vadd.f32 %v2189, %v2292
    %v2294 = vpop.f32.mrf.mxu0
    %2295 = vmatprep.mubr.bf16.mxu0 0
    %2296 = vmatmul.mubr.bf16.gmra.mxu0 %v2153
    %v2297 = vpop.f32.mrf.mxu0
    %v2298 = vadd.f32 %v2189, %v2297
    %v2299 = vpop.f32.mrf.mxu0
    %v2300 = vpop.f32.mrf.mxu0
    %v2301 = vadd.f32 %v2189, %v2300
    %v2302 = vpop.f32.mrf.mxu0
    %2303 = vmatprep.mubr.bf16.mxu0 0
    %2304 = vmatmul.mubr.bf16.gmra.mxu0 %v2154
    %v2305 = vpop.f32.mrf.mxu0
    %v2306 = vadd.f32 %v2189, %v2305
    %v2307 = vpop.f32.mrf.mxu0
    %v2308 = vpop.f32.mrf.mxu0
    %v2309 = vadd.f32 %v2189, %v2308
    %v2310 = vpop.f32.mrf.mxu0
    %2311 = vmatprep.mubr.bf16.mxu0 0
    %2312 = vmatmul.mubr.bf16.gmra.mxu0 %v2155
    %v2313 = vpop.f32.mrf.mxu0
    %v2314 = vadd.f32 %v2189, %v2313
    %v2315 = vpop.f32.mrf.mxu0
    %v2316 = vpop.f32.mrf.mxu0
    %v2317 = vadd.f32 %v2189, %v2316
    %v2318 = vpop.f32.mrf.mxu0
    %2319 = vmatprep.mubr.bf16.mxu0 0
    %2320 = vmatmul.mubr.bf16.gmra.mxu0 %v2156
    %v2321 = vpop.f32.mrf.mxu0
    %v2322 = vadd.f32 %v2189, %v2321
    %v2323 = vpop.f32.mrf.mxu0
    %v2324 = vpop.f32.mrf.mxu0
    %v2325 = vadd.f32 %v2189, %v2324
    %v2326 = vpop.f32.mrf.mxu0
    %2327 = vmatprep.mubr.bf16.mxu0 0
    %2328 = vmatmul.mubr.bf16.gmra.mxu0 %v2157
    %v2329 = vpop.f32.mrf.mxu0
    %v2330 = vadd.f32 %v2189, %v2329
    %v2331 = vpop.f32.mrf.mxu0
    %v2332 = vpop.f32.mrf.mxu0
    %v2333 = vadd.f32 %v2189, %v2332
    %v2334 = vpop.f32.mrf.mxu0
    %2335 = vmatprep.mubr.bf16.mxu0 0
    %2336 = vmatmul.mubr.bf16.gmra.mxu0 %v2158
    %v2337 = vpop.f32.mrf.mxu0
    %v2338 = vadd.f32 %v2189, %v2337
    %v2339 = vpop.f32.mrf.mxu0
    %v2340 = vpop.f32.mrf.mxu0
    %v2341 = vadd.f32 %v2189, %v2340
    %v2342 = vpop.f32.mrf.mxu0
    %2343 = vmatprep.mubr.bf16.mxu0 0
    %2344 = vmatmul.mubr.bf16.gmra.mxu0 %v2159
    %v2345 = vpop.f32.mrf.mxu0
    %v2346 = vadd.f32 %v2189, %v2345
    %v2347 = vpop.f32.mrf.mxu0
    %v2348 = vpop.f32.mrf.mxu0
    %v2349 = vadd.f32 %v2189, %v2348
    %v2350 = vpop.f32.mrf.mxu0
    %2351 = vmatprep.mubr.bf16.mxu0 0
    %2352 = vmatmul.mubr.bf16.gmra.mxu0 %v2160
    %v2353 = vpop.f32.mrf.mxu0
    %v2354 = vadd.f32 %v2189, %v2353
    %v2355 = vpop.f32.mrf.mxu0
    %v2356 = vpop.f32.mrf.mxu0
    %v2357 = vadd.f32 %v2189, %v2356
    %v2358 = vpop.f32.mrf.mxu0
    %2359 = vmatprep.mubr.bf16.mxu0 0
    %2360 = vmatmul.mubr.bf16.gmra.mxu0 %v2161
    %v2361 = vpop.f32.mrf.mxu0
    %v2362 = vadd.f32 %v2189, %v2361
    %v2363 = vpop.f32.mrf.mxu0
    %v2364 = vpop.f32.mrf.mxu0
    %v2365 = vadd.f32 %v2189, %v2364
    %v2366 = vpop.f32.mrf.mxu0
    %2367 = vmatprep.mubr.bf16.mxu0 0
    %2368 = vmatmul.mubr.bf16.gmra.mxu0 %v2162
    %v2369 = vpop.f32.mrf.mxu0
    %v2370 = vadd.f32 %v2189, %v2369
    %v2371 = vpop.f32.mrf.mxu0
    %v2372 = vpop.f32.mrf.mxu0
    %v2373 = vadd.f32 %v2189, %v2372
    %v2374 = vpop.f32.mrf.mxu0
    %2375 = vmatprep.mubr.bf16.mxu0 0
    %2376 = vmatmul.mubr.bf16.gmra.mxu0 %v2163
    %v2377 = vpop.f32.mrf.mxu0
    %v2378 = vadd.f32 %v2189, %v2377
    %v2379 = vpop.f32.mrf.mxu0
    %v2380 = vpop.f32.mrf.mxu0
    %v2381 = vadd.f32 %v2189, %v2380
    %v2382 = vpop.f32.mrf.mxu0
    %2383 = vmatprep.mubr.bf16.mxu0 0
    %2384 = vmatmul.mubr.bf16.gmra.mxu0 %v2164
    %v2385 = vpop.f32.mrf.mxu0
    %v2386 = vadd.f32 %v2189, %v2385
    %v2387 = vpop.f32.mrf.mxu0
    %v2388 = vpop.f32.mrf.mxu0
    %v2389 = vadd.f32 %v2189, %v2388
    %v2390 = vpop.f32.mrf.mxu0
    %2391 = vmatprep.mubr.bf16.mxu0 0
    %2392 = vmatmul.mubr.bf16.gmra.mxu0 %v2165
    %v2393 = vpop.f32.mrf.mxu0
    %v2394 = vadd.f32 %v2189, %v2393
    %v2395 = vpop.f32.mrf.mxu0
    %v2396 = vpop.f32.mrf.mxu0
    %v2397 = vadd.f32 %v2189, %v2396
    %v2398 = vpop.f32.mrf.mxu0
    %2399 = vdwg.mxu0
    %v2400 = vsub.f32 0.0, %v2274
    %v2401 = vsub.f32 0.0, %v2277
    %v2402 = vsub.f32 0.0, %v2282
    %v2403 = vsub.f32 0.0, %v2285
    %v2404 = vsub.f32 0.0, %v2290
    %v2405 = vsub.f32 0.0, %v2293
    %v2406 = vsub.f32 0.0, %v2298
    %v2407 = vsub.f32 0.0, %v2301
    %v2408 = vsub.f32 0.0, %v2306
    %v2409 = vsub.f32 0.0, %v2309
    %v2410 = vsub.f32 0.0, %v2314
    %v2411 = vsub.f32 0.0, %v2317
    %v2412 = vsub.f32 0.0, %v2322
    %v2413 = vsub.f32 0.0, %v2325
    %v2414 = vsub.f32 0.0, %v2330
    %v2415 = vsub.f32 0.0, %v2333
    %v2416 = vsub.f32 0.0, %v2338
    %v2417 = vsub.f32 0.0, %v2341
    %v2418 = vsub.f32 0.0, %v2346
    %v2419 = vsub.f32 0.0, %v2349
    %v2420 = vsub.f32 0.0, %v2354
    %v2421 = vsub.f32 0.0, %v2357
    %v2422 = vsub.f32 0.0, %v2362
    %v2423 = vsub.f32 0.0, %v2365
    %v2424 = vsub.f32 0.0, %v2370
    %v2425 = vsub.f32 0.0, %v2373
    %v2426 = vsub.f32 0.0, %v2378
    %v2427 = vsub.f32 0.0, %v2381
    %v2428 = vsub.f32 0.0, %v2386
    %v2429 = vsub.f32 0.0, %v2389
    %v2430 = vsub.f32 0.0, %v2394
    %v2431 = vsub.f32 0.0, %v2397
    %v2432 = vmul.f32 %v2400, 1.442695
    %v2433 = vpow.pop %v2432
    %v2434 = vmul.f32 %v2401, 1.442695
    %v2435 = vpow.pop %v2434
    %v2436 = vmul.f32 %v2402, 1.442695
    %v2437 = vpow.pop %v2436
    %v2438 = vmul.f32 %v2403, 1.442695
    %v2439 = vpow.pop %v2438
    %v2440 = vmul.f32 %v2404, 1.442695
    %v2441 = vpow.pop %v2440
    %v2442 = vmul.f32 %v2405, 1.442695
    %v2443 = vpow.pop %v2442
    %v2444 = vmul.f32 %v2406, 1.442695
    %v2445 = vpow.pop %v2444
    %v2446 = vmul.f32 %v2407, 1.442695
    %v2447 = vpow.pop %v2446
    %v2448 = vmul.f32 %v2408, 1.442695
    %v2449 = vpow.pop %v2448
    %v2450 = vmul.f32 %v2409, 1.442695
    %v2451 = vpow.pop %v2450
    %v2452 = vmul.f32 %v2410, 1.442695
    %v2453 = vpow.pop %v2452
    %v2454 = vmul.f32 %v2411, 1.442695
    %v2455 = vpow.pop %v2454
    %v2456 = vmul.f32 %v2412, 1.442695
    %v2457 = vpow.pop %v2456
    %v2458 = vmul.f32 %v2413, 1.442695
    %v2459 = vpow.pop %v2458
    %v2460 = vmul.f32 %v2414, 1.442695
    %v2461 = vpow.pop %v2460
    %v2462 = vmul.f32 %v2415, 1.442695
    %v2463 = vpow.pop %v2462
    %v2464 = vmul.f32 %v2416, 1.442695
    %v2465 = vpow.pop %v2464
    %v2466 = vmul.f32 %v2417, 1.442695
    %v2467 = vpow.pop %v2466
    %v2468 = vmul.f32 %v2418, 1.442695
    %v2469 = vpow.pop %v2468
    %v2470 = vmul.f32 %v2419, 1.442695
    %v2471 = vpow.pop %v2470
    %v2472 = vmul.f32 %v2420, 1.442695
    %v2473 = vpow.pop %v2472
    %v2474 = vmul.f32 %v2421, 1.442695
    %v2475 = vpow.pop %v2474
    %v2476 = vmul.f32 %v2422, 1.442695
    %v2477 = vpow.pop %v2476
    %v2478 = vmul.f32 %v2423, 1.442695
    %v2479 = vpow.pop %v2478
    %v2480 = vmul.f32 %v2424, 1.442695
    %v2481 = vpow.pop %v2480
    %v2482 = vmul.f32 %v2425, 1.442695
    %v2483 = vpow.pop %v2482
    %v2484 = vmul.f32 %v2426, 1.442695
    %v2485 = vpow.pop %v2484
    %v2486 = vmul.f32 %v2427, 1.442695
    %v2487 = vpow.pop %v2486
    %v2488 = vmul.f32 %v2428, 1.442695
    %v2489 = vpow.pop %v2488
    %v2490 = vmul.f32 %v2429, 1.442695
    %v2491 = vpow.pop %v2490
    %v2492 = vmul.f32 %v2430, 1.442695
    %v2493 = vpow.pop %v2492
    %v2494 = vmul.f32 %v2431, 1.442695
    %v2495 = vpow.pop %v2494
    %v2496 = vadd.f32 %v2433, 1.0
    %v2497 = vadd.f32 %v2435, 1.0
    %v2498 = vadd.f32 %v2437, 1.0
    %v2499 = vadd.f32 %v2439, 1.0
    %v2500 = vadd.f32 %v2441, 1.0
    %v2501 = vadd.f32 %v2443, 1.0
    %v2502 = vadd.f32 %v2445, 1.0
    %v2503 = vadd.f32 %v2447, 1.0
    %v2504 = vadd.f32 %v2449, 1.0
    %v2505 = vadd.f32 %v2451, 1.0
    %v2506 = vadd.f32 %v2453, 1.0
    %v2507 = vadd.f32 %v2455, 1.0
    %v2508 = vadd.f32 %v2457, 1.0
    %v2509 = vadd.f32 %v2459, 1.0
    %v2510 = vadd.f32 %v2461, 1.0
    %v2511 = vadd.f32 %v2463, 1.0
    %v2512 = vadd.f32 %v2465, 1.0
    %v2513 = vadd.f32 %v2467, 1.0
    %v2514 = vadd.f32 %v2469, 1.0
    %v2515 = vadd.f32 %v2471, 1.0
    %v2516 = vadd.f32 %v2473, 1.0
    %v2517 = vadd.f32 %v2475, 1.0
    %v2518 = vadd.f32 %v2477, 1.0
    %v2519 = vadd.f32 %v2479, 1.0
    %v2520 = vadd.f32 %v2481, 1.0
    %v2521 = vadd.f32 %v2483, 1.0
    %v2522 = vadd.f32 %v2485, 1.0
    %v2523 = vadd.f32 %v2487, 1.0
    %v2524 = vadd.f32 %v2489, 1.0
    %v2525 = vadd.f32 %v2491, 1.0
    %v2526 = vadd.f32 %v2493, 1.0
    %v2527 = vadd.f32 %v2495, 1.0
    %v2528 = vrcp.pop %v2496
    %v2529 = vrcp.pop %v2497
    %v2530 = vrcp.pop %v2498
    %v2531 = vrcp.pop %v2499
    %v2532 = vrcp.pop %v2500
    %v2533 = vrcp.pop %v2501
    %v2534 = vrcp.pop %v2502
    %v2535 = vrcp.pop %v2503
    %v2536 = vrcp.pop %v2504
    %v2537 = vrcp.pop %v2505
    %v2538 = vrcp.pop %v2506
    %v2539 = vrcp.pop %v2507
    %v2540 = vrcp.pop %v2508
    %v2541 = vrcp.pop %v2509
    %v2542 = vrcp.pop %v2510
    %v2543 = vrcp.pop %v2511
    %v2544 = vrcp.pop %v2512
    %v2545 = vrcp.pop %v2513
    %v2546 = vrcp.pop %v2514
    %v2547 = vrcp.pop %v2515
    %v2548 = vrcp.pop %v2516
    %v2549 = vrcp.pop %v2517
    %v2550 = vrcp.pop %v2518
    %v2551 = vrcp.pop %v2519
    %v2552 = vrcp.pop %v2520
    %v2553 = vrcp.pop %v2521
    %v2554 = vrcp.pop %v2522
    %v2555 = vrcp.pop %v2523
    %v2556 = vrcp.pop %v2524
    %v2557 = vrcp.pop %v2525
    %v2558 = vrcp.pop %v2526
    %v2559 = vrcp.pop %v2527
    %v2560 = vmul.f32 %v2274, %v2528
    %v2561 = vmul.f32 %v2277, %v2529
    %v2562 = vmul.f32 %v2282, %v2530
    %v2563 = vmul.f32 %v2285, %v2531
    %v2564 = vmul.f32 %v2290, %v2532
    %v2565 = vmul.f32 %v2293, %v2533
    %v2566 = vmul.f32 %v2298, %v2534
    %v2567 = vmul.f32 %v2301, %v2535
    %v2568 = vmul.f32 %v2306, %v2536
    %v2569 = vmul.f32 %v2309, %v2537
    %v2570 = vmul.f32 %v2314, %v2538
    %v2571 = vmul.f32 %v2317, %v2539
    %v2572 = vmul.f32 %v2322, %v2540
    %v2573 = vmul.f32 %v2325, %v2541
    %v2574 = vmul.f32 %v2330, %v2542
    %v2575 = vmul.f32 %v2333, %v2543
    %v2576 = vmul.f32 %v2338, %v2544
    %v2577 = vmul.f32 %v2341, %v2545
    %v2578 = vmul.f32 %v2346, %v2546
    %v2579 = vmul.f32 %v2349, %v2547
    %v2580 = vmul.f32 %v2354, %v2548
    %v2581 = vmul.f32 %v2357, %v2549
    %v2582 = vmul.f32 %v2362, %v2550
    %v2583 = vmul.f32 %v2365, %v2551
    %v2584 = vmul.f32 %v2370, %v2552
    %v2585 = vmul.f32 %v2373, %v2553
    %v2586 = vmul.f32 %v2378, %v2554
    %v2587 = vmul.f32 %v2381, %v2555
    %v2588 = vmul.f32 %v2386, %v2556
    %v2589 = vmul.f32 %v2389, %v2557
    %v2590 = vmul.f32 %v2394, %v2558
    %v2591 = vmul.f32 %v2397, %v2559
    %v2592 = vpack.c.bf16 %v2561, %v2560
    %v2593 = vpack.c.bf16 %v2563, %v2562
    %v2594 = vpack.c.bf16 %v2565, %v2564
    %v2595 = vpack.c.bf16 %v2567, %v2566
    %v2596 = vpack.c.bf16 %v2569, %v2568
    %v2597 = vpack.c.bf16 %v2571, %v2570
    %v2598 = vpack.c.bf16 %v2573, %v2572
    %v2599 = vpack.c.bf16 %v2575, %v2574
    %v2600 = vpack.c.bf16 %v2577, %v2576
    %v2601 = vpack.c.bf16 %v2579, %v2578
    %v2602 = vpack.c.bf16 %v2581, %v2580
    %v2603 = vpack.c.bf16 %v2583, %v2582
    %v2604 = vpack.c.bf16 %v2585, %v2584
    %v2605 = vpack.c.bf16 %v2587, %v2586
    %v2606 = vpack.c.bf16 %v2589, %v2588
    %v2607 = vpack.c.bf16 %v2591, %v2590
    %v2608 = vld [vmem:[%s6] sm:$0xf]
    %v2609 = vld [vmem:[%s6 + $0x4] sm:$0xf]
    %v2610 = vld [vmem:[%s6 + $0x8] sm:$0xf]
    %v2611 = vld [vmem:[%s6 + $0xc] sm:$0xf]
    %v2612 = vld [vmem:[%s6 + $0x10] sm:$0xf]
    %v2613 = vld [vmem:[%s6 + $0x14] sm:$0xf]
    %v2614 = vld [vmem:[%s6 + $0x18] sm:$0xf]
    %v2615 = vld [vmem:[%s6 + $0x1c] sm:$0xf]
    %v2616 = vld [vmem:[%s6 + $0x20] sm:$0xf]
    %v2617 = vld [vmem:[%s6 + $0x24] sm:$0xf]
    %v2618 = vld [vmem:[%s6 + $0x28] sm:$0xf]
    %v2619 = vld [vmem:[%s6 + $0x2c] sm:$0xf]
    %v2620 = vld [vmem:[%s6 + $0x30] sm:$0xf]
    %v2621 = vld [vmem:[%s6 + $0x34] sm:$0xf]
    %v2622 = vld [vmem:[%s6 + $0x38] sm:$0xf]
    %v2623 = vld [vmem:[%s6 + $0x3c] sm:$0xf]
    %v2624 = vld [vmem:[%s7] sm:$0x1]
    %v2626 = vlaneseq
    %v2627 = vshrl.u32 %v2626, 7
    %v2628 = vsub.s32 0, %v2627
    %v2629 = vrot.slane %v2624, %v2628
    %v2647 = vunpack.c.l.b16 %v2608
    %v2648 = vunpack.c.l.b16 %v2609
    %v2649 = vunpack.c.l.b16 %v2610
    %v2650 = vunpack.c.l.b16 %v2611
    %v2651 = vunpack.c.l.b16 %v2612
    %v2652 = vunpack.c.l.b16 %v2613
    %v2653 = vunpack.c.l.b16 %v2614
    %v2654 = vunpack.c.l.b16 %v2615
    %v2655 = vunpack.c.l.b16 %v2616
    %v2656 = vunpack.c.l.b16 %v2617
    %v2657 = vunpack.c.l.b16 %v2618
    %v2658 = vunpack.c.l.b16 %v2619
    %v2659 = vunpack.c.l.b16 %v2620
    %v2660 = vunpack.c.l.b16 %v2621
    %v2661 = vunpack.c.l.b16 %v2622
    %v2662 = vunpack.c.l.b16 %v2623
    %v2663 = vpack.c.b16 %v2648, %v2647
    %v2664 = vpack.c.b16 %v2650, %v2649
    %v2665 = vpack.c.b16 %v2652, %v2651
    %v2666 = vpack.c.b16 %v2654, %v2653
    %v2667 = vpack.c.b16 %v2656, %v2655
    %v2668 = vpack.c.b16 %v2658, %v2657
    %v2669 = vpack.c.b16 %v2660, %v2659
    %v2670 = vpack.c.b16 %v2662, %v2661
    %2679 = vmatprep.subr.bf16.mxu0 0
    %2680 = vmatpush1.bf16.msra.mxu0 %v2670
    %2681 = vmatprep.subr.bf16.mxu0 0
    %2682 = vmatpush1.bf16.msra.mxu0 %v2669
    %2683 = vmatprep.subr.bf16.mxu0 0
    %2684 = vmatpush1.bf16.msra.mxu0 %v2668
    %2685 = vmatprep.subr.bf16.mxu0 0
    %2686 = vmatpush1.bf16.msra.mxu0 %v2667
    %2687 = vmatprep.subr.bf16.mxu0 0
    %2688 = vmatpush1.bf16.msra.mxu0 %v2666
    %2689 = vmatprep.subr.bf16.mxu0 0
    %2690 = vmatpush1.bf16.msra.mxu0 %v2665
    %2691 = vmatprep.subr.bf16.mxu0 0
    %2692 = vmatpush1.bf16.msra.mxu0 %v2664
    %2693 = vmatprep.subr.bf16.mxu0 0
    %2694 = vmatpush1.bf16.msra.mxu0 %v2663
    %2695 = vmatprep.subr.bf16.mxu0 0
    %2696 = vmatpush2.bf16.msra.mxu0 0
    %2697 = vmatprep.subr.bf16.mxu0 0
    %2698 = vmatpush2.bf16.msra.mxu0 0
    %2699 = vmatprep.subr.bf16.mxu0 0
    %2700 = vmatpush2.bf16.msra.mxu0 0
    %2701 = vmatprep.subr.bf16.mxu0 0
    %2702 = vmatpush2.bf16.msra.mxu0 0
    %2703 = vmatprep.subr.bf16.mxu0 0
    %2704 = vmatpush2.bf16.msra.mxu0 0
    %2705 = vmatprep.subr.bf16.mxu0 0
    %2706 = vmatpush2.bf16.msra.mxu0 0
    %2707 = vmatprep.subr.bf16.mxu0 0
    %2708 = vmatpush2.bf16.msra.mxu0 0
    %2709 = vmatprep.subr.bf16.mxu0 0
    %2710 = vmatpush2.bf16.msra.mxu0 0
    %2711 = vmatprep.mubr.bf16.mxu0 0
    %2712 = vmatmul.mubr.bf16.gmra.mxu0 %v2592
    %v2713 = vpop.f32.mrf.mxu0
    %v2714 = vadd.f32 %v2629, %v2713
    %v2715 = vpop.f32.mrf.mxu0
    %v2716 = vpop.f32.mrf.mxu0
    %v2717 = vadd.f32 %v2629, %v2716
    %v2718 = vpop.f32.mrf.mxu0
    %2719 = vmatprep.mubr.bf16.mxu0 0
    %2720 = vmatmul.mubr.bf16.gmra.mxu0 %v2593
    %v2721 = vpop.f32.mrf.mxu0
    %v2722 = vadd.f32 %v2629, %v2721
    %v2723 = vpop.f32.mrf.mxu0
    %v2724 = vpop.f32.mrf.mxu0
    %v2725 = vadd.f32 %v2629, %v2724
    %v2726 = vpop.f32.mrf.mxu0
    %2727 = vmatprep.mubr.bf16.mxu0 0
    %2728 = vmatmul.mubr.bf16.gmra.mxu0 %v2594
    %v2729 = vpop.f32.mrf.mxu0
    %v2730 = vadd.f32 %v2629, %v2729
    %v2731 = vpop.f32.mrf.mxu0
    %v2732 = vpop.f32.mrf.mxu0
    %v2733 = vadd.f32 %v2629, %v2732
    %v2734 = vpop.f32.mrf.mxu0
    %2735 = vmatprep.mubr.bf16.mxu0 0
    %2736 = vmatmul.mubr.bf16.gmra.mxu0 %v2595
    %v2737 = vpop.f32.mrf.mxu0
    %v2738 = vadd.f32 %v2629, %v2737
    %v2739 = vpop.f32.mrf.mxu0
    %v2740 = vpop.f32.mrf.mxu0
    %v2741 = vadd.f32 %v2629, %v2740
    %v2742 = vpop.f32.mrf.mxu0
    %2743 = vmatprep.mubr.bf16.mxu0 0
    %2744 = vmatmul.mubr.bf16.gmra.mxu0 %v2596
    %v2745 = vpop.f32.mrf.mxu0
    %v2746 = vadd.f32 %v2629, %v2745
    %v2747 = vpop.f32.mrf.mxu0
    %v2748 = vpop.f32.mrf.mxu0
    %v2749 = vadd.f32 %v2629, %v2748
    %v2750 = vpop.f32.mrf.mxu0
    %2751 = vmatprep.mubr.bf16.mxu0 0
    %2752 = vmatmul.mubr.bf16.gmra.mxu0 %v2597
    %v2753 = vpop.f32.mrf.mxu0
    %v2754 = vadd.f32 %v2629, %v2753
    %v2755 = vpop.f32.mrf.mxu0
    %v2756 = vpop.f32.mrf.mxu0
    %v2757 = vadd.f32 %v2629, %v2756
    %v2758 = vpop.f32.mrf.mxu0
    %2759 = vmatprep.mubr.bf16.mxu0 0
    %2760 = vmatmul.mubr.bf16.gmra.mxu0 %v2598
    %v2761 = vpop.f32.mrf.mxu0
    %v2762 = vadd.f32 %v2629, %v2761
    %v2763 = vpop.f32.mrf.mxu0
    %v2764 = vpop.f32.mrf.mxu0
    %v2765 = vadd.f32 %v2629, %v2764
    %v2766 = vpop.f32.mrf.mxu0
    %2767 = vmatprep.mubr.bf16.mxu0 0
    %2768 = vmatmul.mubr.bf16.gmra.mxu0 %v2599
    %v2769 = vpop.f32.mrf.mxu0
    %v2770 = vadd.f32 %v2629, %v2769
    %v2771 = vpop.f32.mrf.mxu0
    %v2772 = vpop.f32.mrf.mxu0
    %v2773 = vadd.f32 %v2629, %v2772
    %v2774 = vpop.f32.mrf.mxu0
    %2775 = vmatprep.mubr.bf16.mxu0 0
    %2776 = vmatmul.mubr.bf16.gmra.mxu0 %v2600
    %v2777 = vpop.f32.mrf.mxu0
    %v2778 = vadd.f32 %v2629, %v2777
    %v2779 = vpop.f32.mrf.mxu0
    %v2780 = vpop.f32.mrf.mxu0
    %v2781 = vadd.f32 %v2629, %v2780
    %v2782 = vpop.f32.mrf.mxu0
    %2783 = vmatprep.mubr.bf16.mxu0 0
    %2784 = vmatmul.mubr.bf16.gmra.mxu0 %v2601
    %v2785 = vpop.f32.mrf.mxu0
    %v2786 = vadd.f32 %v2629, %v2785
    %v2787 = vpop.f32.mrf.mxu0
    %v2788 = vpop.f32.mrf.mxu0
    %v2789 = vadd.f32 %v2629, %v2788
    %v2790 = vpop.f32.mrf.mxu0
    %2791 = vmatprep.mubr.bf16.mxu0 0
    %2792 = vmatmul.mubr.bf16.gmra.mxu0 %v2602
    %v2793 = vpop.f32.mrf.mxu0
    %v2794 = vadd.f32 %v2629, %v2793
    %v2795 = vpop.f32.mrf.mxu0
    %v2796 = vpop.f32.mrf.mxu0
    %v2797 = vadd.f32 %v2629, %v2796
    %v2798 = vpop.f32.mrf.mxu0
    %2799 = vmatprep.mubr.bf16.mxu0 0
    %2800 = vmatmul.mubr.bf16.gmra.mxu0 %v2603
    %v2801 = vpop.f32.mrf.mxu0
    %v2802 = vadd.f32 %v2629, %v2801
    %v2803 = vpop.f32.mrf.mxu0
    %v2804 = vpop.f32.mrf.mxu0
    %v2805 = vadd.f32 %v2629, %v2804
    %v2806 = vpop.f32.mrf.mxu0
    %2807 = vmatprep.mubr.bf16.mxu0 0
    %2808 = vmatmul.mubr.bf16.gmra.mxu0 %v2604
    %v2809 = vpop.f32.mrf.mxu0
    %v2810 = vadd.f32 %v2629, %v2809
    %v2811 = vpop.f32.mrf.mxu0
    %v2812 = vpop.f32.mrf.mxu0
    %v2813 = vadd.f32 %v2629, %v2812
    %v2814 = vpop.f32.mrf.mxu0
    %2815 = vmatprep.mubr.bf16.mxu0 0
    %2816 = vmatmul.mubr.bf16.gmra.mxu0 %v2605
    %v2817 = vpop.f32.mrf.mxu0
    %v2818 = vadd.f32 %v2629, %v2817
    %v2819 = vpop.f32.mrf.mxu0
    %v2820 = vpop.f32.mrf.mxu0
    %v2821 = vadd.f32 %v2629, %v2820
    %v2822 = vpop.f32.mrf.mxu0
    %2823 = vmatprep.mubr.bf16.mxu0 0
    %2824 = vmatmul.mubr.bf16.gmra.mxu0 %v2606
    %v2825 = vpop.f32.mrf.mxu0
    %v2826 = vadd.f32 %v2629, %v2825
    %v2827 = vpop.f32.mrf.mxu0
    %v2828 = vpop.f32.mrf.mxu0
    %v2829 = vadd.f32 %v2629, %v2828
    %v2830 = vpop.f32.mrf.mxu0
    %2831 = vmatprep.mubr.bf16.mxu0 0
    %2832 = vmatmul.mubr.bf16.gmra.mxu0 %v2607
    %v2833 = vpop.f32.mrf.mxu0
    %v2834 = vadd.f32 %v2629, %v2833
    %v2835 = vpop.f32.mrf.mxu0
    %v2836 = vpop.f32.mrf.mxu0
    %v2837 = vadd.f32 %v2629, %v2836
    %v2838 = vpop.f32.mrf.mxu0
    %2839 = vdwg.mxu0
    %v2840 = vrot.slane %v2714, 4
    %v2841 = vadd.f32 %v2714, %v2840
    %v2842 = vrot.slane %v2841, 2
    %v2843 = vadd.f32 %v2841, %v2842
    %v2844 = vrot.slane %v2843, 1
    %v2845 = vadd.f32 %v2843, %v2844
    %v2846 = vrot.slane %v2717, 4
    %v2847 = vadd.f32 %v2717, %v2846
    %v2848 = vrot.slane %v2847, 2
    %v2849 = vadd.f32 %v2847, %v2848
    %v2850 = vrot.slane %v2849, 1
    %v2851 = vadd.f32 %v2849, %v2850
    %v2852 = vrot.slane %v2722, 4
    %v2853 = vadd.f32 %v2722, %v2852
    %v2854 = vrot.slane %v2853, 2
    %v2855 = vadd.f32 %v2853, %v2854
    %v2856 = vrot.slane %v2855, 1
    %v2857 = vadd.f32 %v2855, %v2856
    %v2858 = vrot.slane %v2725, 4
    %v2859 = vadd.f32 %v2725, %v2858
    %v2860 = vrot.slane %v2859, 2
    %v2861 = vadd.f32 %v2859, %v2860
    %v2862 = vrot.slane %v2861, 1
    %v2863 = vadd.f32 %v2861, %v2862
    %v2864 = vrot.slane %v2730, 4
    %v2865 = vadd.f32 %v2730, %v2864
    %v2866 = vrot.slane %v2865, 2
    %v2867 = vadd.f32 %v2865, %v2866
    %v2868 = vrot.slane %v2867, 1
    %v2869 = vadd.f32 %v2867, %v2868
    %v2870 = vrot.slane %v2733, 4
    %v2871 = vadd.f32 %v2733, %v2870
    %v2872 = vrot.slane %v2871, 2
    %v2873 = vadd.f32 %v2871, %v2872
    %v2874 = vrot.slane %v2873, 1
    %v2875 = vadd.f32 %v2873, %v2874
    %v2876 = vrot.slane %v2738, 4
    %v2877 = vadd.f32 %v2738, %v2876
    %v2878 = vrot.slane %v2877, 2
    %v2879 = vadd.f32 %v2877, %v2878
    %v2880 = vrot.slane %v2879, 1
    %v2881 = vadd.f32 %v2879, %v2880
    %v2882 = vrot.slane %v2741, 4
    %v2883 = vadd.f32 %v2741, %v2882
    %v2884 = vrot.slane %v2883, 2
    %v2885 = vadd.f32 %v2883, %v2884
    %v2886 = vrot.slane %v2885, 1
    %v2887 = vadd.f32 %v2885, %v2886
    %v2888 = vrot.slane %v2746, 4
    %v2889 = vadd.f32 %v2746, %v2888
    %v2890 = vrot.slane %v2889, 2
    %v2891 = vadd.f32 %v2889, %v2890
    %v2892 = vrot.slane %v2891, 1
    %v2893 = vadd.f32 %v2891, %v2892
    %v2894 = vrot.slane %v2749, 4
    %v2895 = vadd.f32 %v2749, %v2894
    %v2896 = vrot.slane %v2895, 2
    %v2897 = vadd.f32 %v2895, %v2896
    %v2898 = vrot.slane %v2897, 1
    %v2899 = vadd.f32 %v2897, %v2898
    %v2900 = vrot.slane %v2754, 4
    %v2901 = vadd.f32 %v2754, %v2900
    %v2902 = vrot.slane %v2901, 2
    %v2903 = vadd.f32 %v2901, %v2902
    %v2904 = vrot.slane %v2903, 1
    %v2905 = vadd.f32 %v2903, %v2904
    %v2906 = vrot.slane %v2757, 4
    %v2907 = vadd.f32 %v2757, %v2906
    %v2908 = vrot.slane %v2907, 2
    %v2909 = vadd.f32 %v2907, %v2908
    %v2910 = vrot.slane %v2909, 1
    %v2911 = vadd.f32 %v2909, %v2910
    %v2912 = vrot.slane %v2762, 4
    %v2913 = vadd.f32 %v2762, %v2912
    %v2914 = vrot.slane %v2913, 2
    %v2915 = vadd.f32 %v2913, %v2914
    %v2916 = vrot.slane %v2915, 1
    %v2917 = vadd.f32 %v2915, %v2916
    %v2918 = vrot.slane %v2765, 4
    %v2919 = vadd.f32 %v2765, %v2918
    %v2920 = vrot.slane %v2919, 2
    %v2921 = vadd.f32 %v2919, %v2920
    %v2922 = vrot.slane %v2921, 1
    %v2923 = vadd.f32 %v2921, %v2922
    %v2924 = vrot.slane %v2770, 4
    %v2925 = vadd.f32 %v2770, %v2924
    %v2926 = vrot.slane %v2925, 2
    %v2927 = vadd.f32 %v2925, %v2926
    %v2928 = vrot.slane %v2927, 1
    %v2929 = vadd.f32 %v2927, %v2928
    %v2930 = vrot.slane %v2773, 4
    %v2931 = vadd.f32 %v2773, %v2930
    %v2932 = vrot.slane %v2931, 2
    %v2933 = vadd.f32 %v2931, %v2932
    %v2934 = vrot.slane %v2933, 1
    %v2935 = vadd.f32 %v2933, %v2934
    %v2936 = vrot.slane %v2778, 4
    %v2937 = vadd.f32 %v2778, %v2936
    %v2938 = vrot.slane %v2937, 2
    %v2939 = vadd.f32 %v2937, %v2938
    %v2940 = vrot.slane %v2939, 1
    %v2941 = vadd.f32 %v2939, %v2940
    %v2942 = vrot.slane %v2781, 4
    %v2943 = vadd.f32 %v2781, %v2942
    %v2944 = vrot.slane %v2943, 2
    %v2945 = vadd.f32 %v2943, %v2944
    %v2946 = vrot.slane %v2945, 1
    %v2947 = vadd.f32 %v2945, %v2946
    %v2948 = vrot.slane %v2786, 4
    %v2949 = vadd.f32 %v2786, %v2948
    %v2950 = vrot.slane %v2949, 2
    %v2951 = vadd.f32 %v2949, %v2950
    %v2952 = vrot.slane %v2951, 1
    %v2953 = vadd.f32 %v2951, %v2952
    %v2954 = vrot.slane %v2789, 4
    %v2955 = vadd.f32 %v2789, %v2954
    %v2956 = vrot.slane %v2955, 2
    %v2957 = vadd.f32 %v2955, %v2956
    %v2958 = vrot.slane %v2957, 1
    %v2959 = vadd.f32 %v2957, %v2958
    %v2960 = vrot.slane %v2794, 4
    %v2961 = vadd.f32 %v2794, %v2960
    %v2962 = vrot.slane %v2961, 2
    %v2963 = vadd.f32 %v2961, %v2962
    %v2964 = vrot.slane %v2963, 1
    %v2965 = vadd.f32 %v2963, %v2964
    %v2966 = vrot.slane %v2797, 4
    %v2967 = vadd.f32 %v2797, %v2966
    %v2968 = vrot.slane %v2967, 2
    %v2969 = vadd.f32 %v2967, %v2968
    %v2970 = vrot.slane %v2969, 1
    %v2971 = vadd.f32 %v2969, %v2970
    %v2972 = vrot.slane %v2802, 4
    %v2973 = vadd.f32 %v2802, %v2972
    %v2974 = vrot.slane %v2973, 2
    %v2975 = vadd.f32 %v2973, %v2974
    %v2976 = vrot.slane %v2975, 1
    %v2977 = vadd.f32 %v2975, %v2976
    %v2978 = vrot.slane %v2805, 4
    %v2979 = vadd.f32 %v2805, %v2978
    %v2980 = vrot.slane %v2979, 2
    %v2981 = vadd.f32 %v2979, %v2980
    %v2982 = vrot.slane %v2981, 1
    %v2983 = vadd.f32 %v2981, %v2982
    %v2984 = vrot.slane %v2810, 4
    %v2985 = vadd.f32 %v2810, %v2984
    %v2986 = vrot.slane %v2985, 2
    %v2987 = vadd.f32 %v2985, %v2986
    %v2988 = vrot.slane %v2987, 1
    %v2989 = vadd.f32 %v2987, %v2988
    %v2990 = vrot.slane %v2813, 4
    %v2991 = vadd.f32 %v2813, %v2990
    %v2992 = vrot.slane %v2991, 2
    %v2993 = vadd.f32 %v2991, %v2992
    %v2994 = vrot.slane %v2993, 1
    %v2995 = vadd.f32 %v2993, %v2994
    %v2996 = vrot.slane %v2818, 4
    %v2997 = vadd.f32 %v2818, %v2996
    %v2998 = vrot.slane %v2997, 2
    %v2999 = vadd.f32 %v2997, %v2998
    %v3000 = vrot.slane %v2999, 1
    %v3001 = vadd.f32 %v2999, %v3000
    %v3002 = vrot.slane %v2821, 4
    %v3003 = vadd.f32 %v2821, %v3002
    %v3004 = vrot.slane %v3003, 2
    %v3005 = vadd.f32 %v3003, %v3004
    %v3006 = vrot.slane %v3005, 1
    %v3007 = vadd.f32 %v3005, %v3006
    %v3008 = vrot.slane %v2826, 4
    %v3009 = vadd.f32 %v2826, %v3008
    %v3010 = vrot.slane %v3009, 2
    %v3011 = vadd.f32 %v3009, %v3010
    %v3012 = vrot.slane %v3011, 1
    %v3013 = vadd.f32 %v3011, %v3012
    %v3014 = vrot.slane %v2829, 4
    %v3015 = vadd.f32 %v2829, %v3014
    %v3016 = vrot.slane %v3015, 2
    %v3017 = vadd.f32 %v3015, %v3016
    %v3018 = vrot.slane %v3017, 1
    %v3019 = vadd.f32 %v3017, %v3018
    %v3020 = vrot.slane %v2834, 4
    %v3021 = vadd.f32 %v2834, %v3020
    %v3022 = vrot.slane %v3021, 2
    %v3023 = vadd.f32 %v3021, %v3022
    %v3024 = vrot.slane %v3023, 1
    %v3025 = vadd.f32 %v3023, %v3024
    %v3026 = vrot.slane %v2837, 4
    %v3027 = vadd.f32 %v2837, %v3026
    %v3028 = vrot.slane %v3027, 2
    %v3029 = vadd.f32 %v3027, %v3028
    %v3030 = vrot.slane %v3029, 1
    %v3031 = vadd.f32 %v3029, %v3030
    %v3032 = vpack.c.bf16 %v2845, %v2845
    %v3033 = vpack.c.bf16 %v2851, %v2851
    %v3034 = vpack.c.bf16 %v2857, %v2857
    %v3035 = vpack.c.bf16 %v2863, %v2863
    %v3036 = vpack.c.bf16 %v2869, %v2869
    %v3037 = vpack.c.bf16 %v2875, %v2875
    %v3038 = vpack.c.bf16 %v2881, %v2881
    %v3039 = vpack.c.bf16 %v2887, %v2887
    %v3040 = vpack.c.bf16 %v2893, %v2893
    %v3041 = vpack.c.bf16 %v2899, %v2899
    %v3042 = vpack.c.bf16 %v2905, %v2905
    %v3043 = vpack.c.bf16 %v2911, %v2911
    %v3044 = vpack.c.bf16 %v2917, %v2917
    %v3045 = vpack.c.bf16 %v2923, %v2923
    %v3046 = vpack.c.bf16 %v2929, %v2929
    %v3047 = vpack.c.bf16 %v2935, %v2935
    %v3048 = vpack.c.bf16 %v2941, %v2941
    %v3049 = vpack.c.bf16 %v2947, %v2947
    %v3050 = vpack.c.bf16 %v2953, %v2953
    %v3051 = vpack.c.bf16 %v2959, %v2959
    %v3052 = vpack.c.bf16 %v2965, %v2965
    %v3053 = vpack.c.bf16 %v2971, %v2971
    %v3054 = vpack.c.bf16 %v2977, %v2977
    %v3055 = vpack.c.bf16 %v2983, %v2983
    %v3056 = vpack.c.bf16 %v2989, %v2989
    %v3057 = vpack.c.bf16 %v2995, %v2995
    %v3058 = vpack.c.bf16 %v3001, %v3001
    %v3059 = vpack.c.bf16 %v3007, %v3007
    %v3060 = vpack.c.bf16 %v3013, %v3013
    %v3061 = vpack.c.bf16 %v3019, %v3019
    %v3062 = vpack.c.bf16 %v3025, %v3025
    %v3063 = vpack.c.bf16 %v3031, %v3031
    %v3064 = vld [vmem:[#allocation4] sm:$0xf]
    %v3065 = vld [vmem:[#allocation4 + $0x4] sm:$0xf]
    %v3066 = vld [vmem:[#allocation4 + $0x8] sm:$0xf]
    %v3067 = vld [vmem:[#allocation4 + $0xc] sm:$0xf]
    %v3068 = vld [vmem:[#allocation4 + $0x10] sm:$0xf]
    %v3069 = vld [vmem:[#allocation4 + $0x14] sm:$0xf]
    %v3070 = vld [vmem:[#allocation4 + $0x18] sm:$0xf]
    %v3071 = vld [vmem:[#allocation4 + $0x1c] sm:$0xf]
    %v3072 = vld [vmem:[#allocation4 + $0x20] sm:$0xf]
    %v3073 = vld [vmem:[#allocation4 + $0x24] sm:$0xf]
    %v3074 = vld [vmem:[#allocation4 + $0x28] sm:$0xf]
    %v3075 = vld [vmem:[#allocation4 + $0x2c] sm:$0xf]
    %v3076 = vld [vmem:[#allocation4 + $0x30] sm:$0xf]
    %v3077 = vld [vmem:[#allocation4 + $0x34] sm:$0xf]
    %v3078 = vld [vmem:[#allocation4 + $0x38] sm:$0xf]
    %v3079 = vld [vmem:[#allocation4 + $0x3c] sm:$0xf]
    %v3080 = vld [vmem:[%s9] sm:$0x1]
    %v3082 = vlaneseq
    %v3083 = vshrl.u32 %v3082, 7
    %v3084 = vsub.s32 0, %v3083
    %v3085 = vrot.slane %v3080, %v3084
    %v3119 = vunpack.c.l.b16 %v3032
    %v3120 = vunpack.c.l.b16 %v3033
    %v3121 = vunpack.c.l.b16 %v3034
    %v3122 = vunpack.c.l.b16 %v3035
    %v3123 = vunpack.c.l.b16 %v3036
    %v3124 = vunpack.c.l.b16 %v3037
    %v3125 = vunpack.c.l.b16 %v3038
    %v3126 = vunpack.c.l.b16 %v3039
    %v3127 = vunpack.c.l.b16 %v3040
    %v3128 = vunpack.c.l.b16 %v3041
    %v3129 = vunpack.c.l.b16 %v3042
    %v3130 = vunpack.c.l.b16 %v3043
    %v3131 = vunpack.c.l.b16 %v3044
    %v3132 = vunpack.c.l.b16 %v3045
    %v3133 = vunpack.c.l.b16 %v3046
    %v3134 = vunpack.c.l.b16 %v3047
    %v3135 = vunpack.c.l.b16 %v3048
    %v3136 = vunpack.c.l.b16 %v3049
    %v3137 = vunpack.c.l.b16 %v3050
    %v3138 = vunpack.c.l.b16 %v3051
    %v3139 = vunpack.c.l.b16 %v3052
    %v3140 = vunpack.c.l.b16 %v3053
    %v3141 = vunpack.c.l.b16 %v3054
    %v3142 = vunpack.c.l.b16 %v3055
    %v3143 = vunpack.c.l.b16 %v3056
    %v3144 = vunpack.c.l.b16 %v3057
    %v3145 = vunpack.c.l.b16 %v3058
    %v3146 = vunpack.c.l.b16 %v3059
    %v3147 = vunpack.c.l.b16 %v3060
    %v3148 = vunpack.c.l.b16 %v3061
    %v3149 = vunpack.c.l.b16 %v3062
    %v3150 = vunpack.c.l.b16 %v3063
    %vm3151 = vcmask 1041409
    %v3152 = vsel %vm3151, %v3120, %v3119
    %vm3153 = vcmask 1042434
    %v3154 = vsel %vm3153, %v3121, %v3152
    %vm3155 = vcmask 1043459
    %v3156 = vsel %vm3155, %v3122, %v3154
    %vm3157 = vcmask 1044484
    %v3158 = vsel %vm3157, %v3123, %v3156
    %vm3159 = vcmask 1045509
    %v3160 = vsel %vm3159, %v3124, %v3158
    %vm3161 = vcmask 1046534
    %v3162 = vsel %vm3161, %v3125, %v3160
    %vm3163 = vcmask 1047559
    %v3164 = vsel %vm3163, %v3126, %v3162
    %v3165 = vsel %vm3151, %v3128, %v3127
    %v3166 = vsel %vm3153, %v3129, %v3165
    %v3167 = vsel %vm3155, %v3130, %v3166
    %v3168 = vsel %vm3157, %v3131, %v3167
    %v3169 = vsel %vm3159, %v3132, %v3168
    %v3170 = vsel %vm3161, %v3133, %v3169
    %v3171 = vsel %vm3163, %v3134, %v3170
    %v3172 = vsel %vm3151, %v3136, %v3135
    %v3173 = vsel %vm3153, %v3137, %v3172
    %v3174 = vsel %vm3155, %v3138, %v3173
    %v3175 = vsel %vm3157, %v3139, %v3174
    %v3176 = vsel %vm3159, %v3140, %v3175
    %v3177 = vsel %vm3161, %v3141, %v3176
    %v3178 = vsel %vm3163, %v3142, %v3177
    %v3179 = vsel %vm3151, %v3144, %v3143
    %v3180 = vsel %vm3153, %v3145, %v3179
    %v3181 = vsel %vm3155, %v3146, %v3180
    %v3182 = vsel %vm3157, %v3147, %v3181
    %v3183 = vsel %vm3159, %v3148, %v3182
    %v3184 = vsel %vm3161, %v3149, %v3183
    %v3185 = vsel %vm3163, %v3150, %v3184
    %v3186 = vpack.c.b16 %v3171, %v3164
    %v3187 = vpack.c.b16 %v3185, %v3178
    %v3206 = vunpack.c.l.b16 %v3064
    %v3207 = vunpack.c.l.b16 %v3065
    %v3208 = vunpack.c.l.b16 %v3066
    %v3209 = vunpack.c.l.b16 %v3067
    %v3210 = vunpack.c.l.b16 %v3068
    %v3211 = vunpack.c.l.b16 %v3069
    %v3212 = vunpack.c.l.b16 %v3070
    %v3213 = vunpack.c.l.b16 %v3071
    %v3214 = vunpack.c.l.b16 %v3072
    %v3215 = vunpack.c.l.b16 %v3073
    %v3216 = vunpack.c.l.b16 %v3074
    %v3217 = vunpack.c.l.b16 %v3075
    %v3218 = vunpack.c.l.b16 %v3076
    %v3219 = vunpack.c.l.b16 %v3077
    %v3220 = vunpack.c.l.b16 %v3078
    %v3221 = vunpack.c.l.b16 %v3079
    %v3222 = vpack.c.b16 %v3207, %v3206
    %v3223 = vpack.c.b16 %v3209, %v3208
    %v3224 = vpack.c.b16 %v3211, %v3210
    %v3225 = vpack.c.b16 %v3213, %v3212
    %v3226 = vpack.c.b16 %v3215, %v3214
    %v3227 = vpack.c.b16 %v3217, %v3216
    %v3228 = vpack.c.b16 %v3219, %v3218
    %v3229 = vpack.c.b16 %v3221, %v3220
    %3238 = vmatprep.subr.bf16.mxu0 0
    %3239 = vmatpush1.bf16.msra.mxu0 %v3229
    %3240 = vmatprep.subr.bf16.mxu0 0
    %3241 = vmatpush1.bf16.msra.mxu0 %v3228
    %3242 = vmatprep.subr.bf16.mxu0 0
    %3243 = vmatpush1.bf16.msra.mxu0 %v3227
    %3244 = vmatprep.subr.bf16.mxu0 0
    %3245 = vmatpush1.bf16.msra.mxu0 %v3226
    %3246 = vmatprep.subr.bf16.mxu0 0
    %3247 = vmatpush1.bf16.msra.mxu0 %v3225
    %3248 = vmatprep.subr.bf16.mxu0 0
    %3249 = vmatpush1.bf16.msra.mxu0 %v3224
    %3250 = vmatprep.subr.bf16.mxu0 0
    %3251 = vmatpush1.bf16.msra.mxu0 %v3223
    %3252 = vmatprep.subr.bf16.mxu0 0
    %3253 = vmatpush1.bf16.msra.mxu0 %v3222
    %3254 = vmatprep.subr.bf16.mxu0 0
    %3255 = vmatpush2.bf16.msra.mxu0 0
    %3256 = vmatprep.subr.bf16.mxu0 0
    %3257 = vmatpush2.bf16.msra.mxu0 0
    %3258 = vmatprep.subr.bf16.mxu0 0
    %3259 = vmatpush2.bf16.msra.mxu0 0
    %3260 = vmatprep.subr.bf16.mxu0 0
    %3261 = vmatpush2.bf16.msra.mxu0 0
    %3262 = vmatprep.subr.bf16.mxu0 0
    %3263 = vmatpush2.bf16.msra.mxu0 0
    %3264 = vmatprep.subr.bf16.mxu0 0
    %3265 = vmatpush2.bf16.msra.mxu0 0
    %3266 = vmatprep.subr.bf16.mxu0 0
    %3267 = vmatpush2.bf16.msra.mxu0 0
    %3268 = vmatprep.subr.bf16.mxu0 0
    %3269 = vmatpush2.bf16.msra.mxu0 0
    %3270 = vmatprep.mubr.bf16.mxu0 0
    %3271 = vmatmul.mubr.bf16.gmra.mxu0 %v3186
    %v3272 = vpop.f32.mrf.mxu0
    %v3273 = vadd.f32 %v3085, %v3272
    %v3274 = vpop.f32.mrf.mxu0
    %v3275 = vpop.f32.mrf.mxu0
    %v3276 = vadd.f32 %v3085, %v3275
    %v3277 = vpop.f32.mrf.mxu0
    %3278 = vmatprep.mubr.bf16.mxu0 0
    %3279 = vmatmul.mubr.bf16.gmra.mxu0 %v3187
    %v3280 = vpop.f32.mrf.mxu0
    %v3281 = vadd.f32 %v3085, %v3280
    %v3282 = vpop.f32.mrf.mxu0
    %v3283 = vpop.f32.mrf.mxu0
    %v3284 = vadd.f32 %v3085, %v3283
    %v3285 = vpop.f32.mrf.mxu0
    %3286 = vdwg.mxu0
    %3287 = vst [vmem:[%s10] sm:$0xff] %v3273
    %3288 = vst [vmem:[%s10 + $0x8] sm:$0xff] %v3276
    %3289 = vst [vmem:[%s10 + $0x10] sm:$0xff] %v3281
    %3290 = vst [vmem:[%s10 + $0x18] sm:$0xff] %v3284
    // Predicated region
    $region50: #{dgl_representation_forward.1} parent=1 // pred_check
      _
    $region51: #{dgl_representation_forward.1} parent=1 // pred_check_branch
      %3292 = sbr.rel (0) target = $region53
    $region52: #{dgl_representation_forward.1} parent=1 // pred_region
      _
    $region53: #{dgl_representation_forward.1} parent=1 // pred_fallthru
      _
    // Predicated region
    $region54: #{dgl_representation_forward.1} parent=1 // pred_check
      _
    $region55: #{dgl_representation_forward.1} parent=1 // pred_check_branch
      %3294 = sbr.rel (0) target = $region57
    $region56: #{dgl_representation_forward.1} parent=1 // pred_region
      _
    $region57: #{dgl_representation_forward.1} parent=1 // pred_fallthru
      _
    %3295 = vsyncpa [#allocation3], 1
    %3296 = vsyncpa [#allocation5], 1

</llo_original>
